<compile_context>
chip_gen: v7x
topology: tpu7x:2x2x1
jax: 0.10.0
libtpu: 0.0.40
codegen_flags: <defaults>
</compile_context>

<pallas_src>
import functools

import jax
import jax.numpy as jnp
from jax.experimental import pallas as pl
from jax.experimental.pallas import tpu as pltpu


_MASK_MIN = float(jnp.finfo(jnp.float16).min)  # matches torch.finfo(float16).min
_MB = 1024 * 1024


def _vmem_limit_bytes():
    # Per-chip scoped-VMEM budget with headroom for Mosaic internal scratch:
    # ~48 MB on v7x (64 MiB/TC), ~112 MB on v5e/v6e (128 MiB/TC).
    try:
        cap = int(pltpu.get_tpu_info().vmem_capacity_bytes)
    except Exception:
        cap = 64 * _MB
    return max(cap - 16 * _MB, 32 * _MB)


_VMEM_LIMIT = _vmem_limit_bytes()
_LM_TILE_V = 4096 if _VMEM_LIMIT >= 96 * _MB else 2048
_ATTN_PROB_DTYPE = jnp.float32      # bf16 halves writeback if tolerable downstream
_SINGLE_BUFFER_WEIGHTS = True       # flipped off at runtime if Buffered(1) unsupported


# ----------------------------------------------------------------------------
# In-kernel math helpers
# ----------------------------------------------------------------------------
def _layer_norm(x, gamma, beta, eps):
    # PyTorch nn.LayerNorm: biased variance over the last dim (float32).
    mu = jnp.mean(x, axis=-1, keepdims=True)
    var = jnp.mean(jnp.square(x - mu), axis=-1, keepdims=True)
    return (x - mu) * jax.lax.rsqrt(var + eps) * gamma + beta


def _gelu_tanh(x):
    # TODO(synk): reference nn.GELU() is exact erf; tanh form (EUP slot) is ~1e-3 off.
    c = 0.7978845608028654  # sqrt(2/pi)
    return 0.5 * x * (1.0 + jnp.tanh(c * (x + 0.044715 * x * x * x)))


# ----------------------------------------------------------------------------
# Pallas kernels
# ----------------------------------------------------------------------------
def gpt2_layer_kernel(
    x_ref, amask_ref,
    ln1_g_ref, ln1_b_ref, w_qkv_ref, b_qkv_ref, w_proj_ref, b_proj_ref,
    ln2_g_ref, ln2_b_ref, w_fc1_ref, b_fc1_ref, w_fc2_ref, b_fc2_ref,
    y_ref, attn_ref,
    ln1_s, acc_s,
    *, num_heads, d_head, ffn_chunk, eps):
    _, S, D = x_ref.shape
    Dh = d_head
    h_id = pl.program_id(1)

    # --- once per batch row: LayerNorm1 + residual/bias accumulator init -----
    @pl.when(h_id == 0)
    def _():
        x = x_ref[0]                                               # (S, D) f32
        ln1_s[...] = _layer_norm(x, ln1_g_ref[...], ln1_b_ref[...],
                                 eps).astype(jnp.bfloat16)
        acc_s[...] = x + b_proj_ref[...]          # residual + output-proj bias

    # --- this head's QKV projection (scale already folded into Q weight) -----
    qkv = jnp.dot(ln1_s[...], w_qkv_ref[0],
                  preferred_element_type=jnp.float32) + b_qkv_ref[0]  # (S, 3*Dh)
    q = qkv[:, :Dh].astype(jnp.bfloat16)
    k = qkv[:, Dh:2 * Dh].astype(jnp.bfloat16)
    v = qkv[:, 2 * Dh:].astype(jnp.bfloat16)

    # Additive causal+key-padding mask built in-kernel (value = fp16 min),
    # matching get_extended_attention_mask(autoregressive=True).
    keep_key = amask_ref[0] > 0.5                                   # (1, S)
    row = jax.lax.broadcasted_iota(jnp.int32, (S, S), 0)
    col = jax.lax.broadcasted_iota(jnp.int32, (S, S), 1)
    allowed = jnp.logical_and(col <= row, keep_key)                 # (S, S)
    add_mask = jnp.where(allowed, 0.0, _MASK_MIN).astype(jnp.float32)

    # scores = q @ k^T (contract last dims; no explicit transpose)
    scores = jax.lax.dot_general(q, k, (((1,), (1,)), ((), ())),
                                 preferred_element_type=jnp.float32) + add_mask
    scores = scores - jnp.max(scores, axis=-1, keepdims=True)
    e = jnp.exp(scores)
    prob = e * pl.reciprocal(jnp.sum(e, axis=-1, keepdims=True), approx=True)
    attn_ref[0, 0] = prob.astype(attn_ref.dtype)                    # (S, S)

    ctx = jnp.dot(prob.astype(jnp.bfloat16), v,
                  preferred_element_type=jnp.float32)               # (S, Dh)
    # Fold this head's context straight into the output projection:
    #   attn_out = sum_h ctx_h @ Wproj[h]   (no head concat needed)
    acc_s[...] += jnp.dot(ctx.astype(jnp.bfloat16), w_proj_ref[0],
                          preferred_element_type=jnp.float32)

    # --- after the last head: FFN + residual (row-chunked for small VMEM) ----
    def _ffn_rows(rows):
        x1 = acc_s[rows, :]                                         # residual
        h2 = _layer_norm(x1, ln2_g_ref[...], ln2_b_ref[...], eps)
        ff = jnp.dot(h2.astype(jnp.bfloat16), w_fc1_ref[...],
                     preferred_element_type=jnp.float32) + b_fc1_ref[...]
        ff = _gelu_tanh(ff)
        ff = jnp.dot(ff.astype(jnp.bfloat16), w_fc2_ref[...],
                     preferred_element_type=jnp.float32) + b_fc2_ref[...]
        y_ref[0, rows, :] = x1 + ff

    @pl.when(h_id == num_heads - 1)
    def _():
        n_chunks = S // ffn_chunk
        if n_chunks == 1:
            _ffn_rows(slice(None))
        else:
            @pl.loop(0, n_chunks)
            def _(c):
                r0 = pl.multiple_of(c * ffn_chunk, ffn_chunk)
                _ffn_rows(pl.ds(r0, ffn_chunk))


def lm_head_kernel(x_ref, ln_g_ref, ln_b_ref, w_out_ref, logits_ref, *, eps):
    # Final LayerNorm + vocab-tile matmul (LN recomputed per tile; negligible).
    h = _layer_norm(x_ref[0], ln_g_ref[...], ln_b_ref[...], eps)
    logits_ref[0] = jnp.dot(h.astype(jnp.bfloat16), w_out_ref[...],
                            preferred_element_type=jnp.float32)


# ----------------------------------------------------------------------------
# Wrappers around pallas_call
# ----------------------------------------------------------------------------
def _const_spec(arr, single_buffer):
    # Whole-array block with a constant block index.  Single-buffered when
    # supported (block never changes -> double-buffering only wastes VMEM).
    nd = arr.ndim
    idx = lambda *_, _nd=nd: (0,) * _nd
    if single_buffer:
        return pl.BlockSpec(arr.shape, idx, pipeline_mode=pl.Buffered(1))
    return pl.BlockSpec(arr.shape, idx)


def _ffn_chunk(S):
    # Bound the live (chunk, 4*D) FFN intermediate on small-VMEM parts (v7x).
    for c in (512, 256, 128):
        if S % c == 0 and S > c:
            return c
    return S


def _run_decoder_layer(x, amask_f, lw, *, num_heads, eps, single_buffer):
    B, S, D = x.shape
    d_head = D // num_heads
    ffn_chunk = _ffn_chunk(S)

    def const(a):
        return _const_spec(a, single_buffer)

    kernel = functools.partial(gpt2_layer_kernel, num_heads=num_heads,
                               d_head=d_head, ffn_chunk=ffn_chunk, eps=eps)

    in_specs = [
        pl.BlockSpec((1, S, D), lambda b, h: (b, 0, 0)),           # x
        pl.BlockSpec((1, 1, S), lambda b, h: (b, 0, 0)),           # key-pad mask
        const(lw["ln1_g"]), const(lw["ln1_b"]),
        pl.BlockSpec((1, D, 3 * d_head), lambda b, h: (h, 0, 0)),  # w_qkv (head h)
        pl.BlockSpec((1, 1, 3 * d_head), lambda b, h: (h, 0, 0)),  # b_qkv (head h)
        pl.BlockSpec((1, d_head, D), lambda b, h: (h, 0, 0)),      # w_proj (head h)
        const(lw["b_proj"]),
        const(lw["ln2_g"]), const(lw["ln2_b"]),
        const(lw["w_fc1"]), const(lw["b_fc1"]),
        const(lw["w_fc2"]), const(lw["b_fc2"]),
    ]
    out_specs = [
        pl.BlockSpec((1, S, D), lambda b, h: (b, 0, 0)),           # y (revisited over h)
        pl.BlockSpec((1, 1, S, S), lambda b, h: (b, h, 0, 0)),     # attn probs
    ]
    out_shape = [jax.ShapeDtypeStruct((B, S, D), jnp.float32),
                 jax.ShapeDtypeStruct((B, num_heads, S, S), _ATTN_PROB_DTYPE)]

    attn_bytes = jnp.dtype(_ATTN_PROB_DTYPE).itemsize
    cost = pl.CostEstimate(
        flops=24 * B * S * D * D + 4 * B * S * S * D,
        transcendentals=B * (num_heads * S * S + 4 * S * D),
        bytes_accessed=(24 * D * D
                        + B * (2 * S * D * 4 + num_heads * S * S * attn_bytes + 4 * S)))

    # TODO(synk): for v7x with B == 1 (single-sequence prefill/decode), add a
    # q-tile grid axis marked "parallel" so both TensorCores get work.
    y, attn_prob = pl.pallas_call(
        kernel,
        out_shape=out_shape,
        grid_spec=pltpu.PrefetchScalarGridSpec(
            num_scalar_prefetch=0, grid=(B, num_heads),
            in_specs=in_specs, out_specs=out_specs,
            scratch_shapes=[pltpu.VMEM((S, D), jnp.bfloat16),     # LN1(x)
                            pltpu.VMEM((S, D), jnp.float32)]),    # residual + attn acc
        compiler_params=pltpu.CompilerParams(
            dimension_semantics=("parallel", "arbitrary"),
            vmem_limit_bytes=_VMEM_LIMIT),
        cost_estimate=cost,
    )(x, amask_f, lw["ln1_g"], lw["ln1_b"], lw["w_qkv"], lw["b_qkv"],
      lw["w_proj"], lw["b_proj"], lw["ln2_g"], lw["ln2_b"],
      lw["w_fc1"], lw["b_fc1"], lw["w_fc2"], lw["b_fc2"])
    return y, attn_prob


def run_decoder_layer(x, amask_f, layer_params, *, num_heads, eps):
    global _SINGLE_BUFFER_WEIGHTS
    if _SINGLE_BUFFER_WEIGHTS:
        try:
            return _run_decoder_layer(x, amask_f, layer_params,
                                      num_heads=num_heads, eps=eps,
                                      single_buffer=True)
        except Exception:
            # pl.Buffered(1) not supported by this jax/libtpu combo; fall back
            # to default double-buffering (costs ~weight-size extra VMEM).
            _SINGLE_BUFFER_WEIGHTS = False
    return _run_decoder_layer(x, amask_f, layer_params,
                              num_heads=num_heads, eps=eps, single_buffer=False)


def _round_up(x, m):
    return ((x + m - 1) // m) * m


def _lm_head_tiling(vocab_size, tile_v=None):
    tile_v = _LM_TILE_V if tile_v is None else tile_v
    if vocab_size <= tile_v:
        v_pad = _round_up(vocab_size, 128)
        return v_pad, v_pad
    v_pad = _round_up(vocab_size, tile_v)
    return v_pad, tile_v


def run_lm_head(x, ln_g, ln_b, w_out, vocab_size, *, eps):
    B, S, D = x.shape
    v_pad, tv = _lm_head_tiling(vocab_size)
    assert w_out.shape == (D, v_pad) and v_pad % tv == 0

    kernel = functools.partial(lm_head_kernel, eps=eps)
    cost = pl.CostEstimate(
        flops=2 * B * S * D * v_pad,
        transcendentals=0,
        bytes_accessed=D * v_pad * 2 + B * S * D * 4 + B * S * v_pad * 4)

    # Grid = (vocab_tiles, batch): batch is innermost so the (D, tv) weight
    # block index is constant across B and each weight tile streams once total.
    logits = pl.pallas_call(
        kernel,
        out_shape=jax.ShapeDtypeStruct((B, S, v_pad), jnp.float32),
        grid_spec=pltpu.PrefetchScalarGridSpec(
            num_scalar_prefetch=0, grid=(v_pad // tv, B),
            in_specs=[pl.BlockSpec((1, S, D), lambda v, b: (b, 0, 0)),
                      pl.BlockSpec((1, D), lambda v, b: (0, 0)),
                      pl.BlockSpec((1, D), lambda v, b: (0, 0)),
                      pl.BlockSpec((D, tv), lambda v, b: (0, v))],
            out_specs=pl.BlockSpec((1, S, tv), lambda v, b: (b, 0, v))),
        compiler_params=pltpu.CompilerParams(
            dimension_semantics=("parallel", "parallel"),
            vmem_limit_bytes=_VMEM_LIMIT),
        cost_estimate=cost,
    )(x, ln_g, ln_b, w_out)
    # TODO(synk): emit bf16 logits if downstream tolerates it (halves writeback).
    return logits[:, :, :vocab_size]


# ----------------------------------------------------------------------------
# Host-side weight layout prep (Conv1D layout -> head-major, scale folded)
# ----------------------------------------------------------------------------
def _qkv_to_head_major(w_qkv, b_qkv, num_heads, d_head):
    # Conv1D weight (D, 3D) with columns [Q | K | V] -> (H, D, 3*Dh) head-major
    # with 1/sqrt(d_head) folded into the Q columns (and Q bias).
    D = w_qkv.shape[0]
    inv_scale = 1.0 / (float(d_head) ** 0.5)

    def wsplit(m):                                   # (D, D) -> (H, D, Dh)
        return m.reshape(D, num_heads, d_head).transpose(1, 0, 2)

    def bsplit(v):                                   # (D,) -> (H, 1, Dh)
        return v.reshape(num_heads, 1, d_head)

    wq, wk, wv = w_qkv[:, :D] * inv_scale, w_qkv[:, D:2 * D], w_qkv[:, 2 * D:]
    bq, bk, bv = b_qkv[:D] * inv_scale, b_qkv[D:2 * D], b_qkv[2 * D:]
    w_h = jnp.concatenate([wsplit(wq), wsplit(wk), wsplit(wv)], axis=-1)
    b_h = jnp.concatenate([bsplit(bq), bsplit(bk), bsplit(bv)], axis=-1)
    return w_h.astype(jnp.bfloat16), b_h.astype(jnp.float32)


def _proj_to_head_major(w_proj, num_heads, d_head):
    # Conv1D weight (D, D) -> (H, Dh, D): attn_out = sum_h ctx_h @ w_proj[h].
    D = w_proj.shape[0]
    return w_proj.reshape(num_heads, d_head, D).astype(jnp.bfloat16)


# ----------------------------------------------------------------------------
# Plain-JAX glue: embedding, parameter init, forward
# ----------------------------------------------------------------------------
def embed(params, input_ids, token_type_ids=None):
    # TODO(synk): the reference takes an external `embedding` module; here a
    # GPT2-style synthetic embedding (token + position + token-type) is used.
    B, S = input_ids.shape
    tok = params["wte"][input_ids]
    pos = params["wpe"][jnp.arange(S)][None, :, :]
    if token_type_ids is None:
        token_type_ids = jnp.zeros_like(input_ids)
    typ = params["wtt"][token_type_ids]
    return tok + pos + typ


def init_params(key, cfg):
    keys = iter(jax.random.split(key, 8 + 8 * cfg["num_dec_layers"]))
    std = 0.02

    def nrm(shape):
        return std * jax.random.normal(next(keys), shape, jnp.float32)

    D = cfg["d_model"]
    H = cfg["num_att_heads"]
    Dh = D // H
    V = cfg["vocab_size"]
    v_pad, _ = _lm_head_tiling(V)
    # nn.Linear(d_model, vocab_size, bias=False): logits = x @ W.T ; stored
    # pre-transposed as (D, V) and zero-padded to a lane-dense vocab in bf16.
    w_out = nrm((V, D)).T
    w_out = jnp.pad(w_out, ((0, 0), (0, v_pad - V))).astype(jnp.bfloat16)

    params = {
        "wte": nrm((V, D)),
        "wpe": nrm((cfg["max_seq_len"], D)),
        "wtt": nrm((cfg["type_vocab_size"], D)),
        "layers": [],
        "ln_f_g": jnp.ones((1, D), jnp.float32),
        "ln_f_b": jnp.zeros((1, D), jnp.float32),
        "w_out": w_out,
    }
    for _ in range(cfg["num_dec_layers"]):
        w_qkv = nrm((D, 3 * D))
        b_qkv = jnp.zeros((3 * D,), jnp.float32)
        w_qkv_h, b_qkv_h = _qkv_to_head_major(w_qkv, b_qkv, H, Dh)
        w_proj_h = _proj_to_head_major(nrm((D, D)), H, Dh)
        params["layers"].append(dict(
            ln1_g=jnp.ones((1, D), jnp.float32), ln1_b=jnp.zeros((1, D), jnp.float32),
            w_qkv=w_qkv_h, b_qkv=b_qkv_h,
            w_proj=w_proj_h, b_proj=jnp.zeros((1, D), jnp.float32),
            ln2_g=jnp.ones((1, D), jnp.float32), ln2_b=jnp.zeros((1, D), jnp.float32),
            w_fc1=nrm((D, 4 * D)).astype(jnp.bfloat16),
            b_fc1=jnp.zeros((1, 4 * D), jnp.float32),
            w_fc2=nrm((4 * D, D)).astype(jnp.bfloat16),
            b_fc2=jnp.zeros((1, D), jnp.float32),
        ))
    return params


def gpt2_decoder_forward(params, cfg, input_ids, token_type_ids=None, attention_mask=None):
    if attention_mask is None:
        attention_mask = (input_ids != cfg["pad_token_id"]).astype(jnp.int32)
    B, S = input_ids.shape
    # Thin (B, 1, S) key-padding mask; the (S, S) causal additive mask is built
    # inside the kernel (saves S^2 fp32 HBM bytes per batch per layer).
    amask_f = attention_mask.astype(jnp.float32).reshape(B, 1, S)

    x = embed(params, input_ids, token_type_ids)                    # (B, S, D)
    self_attn_probs = []
    for layer_params in params["layers"]:
        x, prob = run_decoder_layer(
            x, amask_f, layer_params,
            num_heads=cfg["num_att_heads"], eps=cfg["layer_norm_eps"])
        self_attn_probs.append(prob)

    logits = run_lm_head(x, params["ln_f_g"], params["ln_f_b"], params["w_out"],
                         cfg["vocab_size"], eps=cfg["layer_norm_eps"])
    return logits, self_attn_probs


# ----------------------------------------------------------------------------
if __name__ == "__main__":
    cfg = dict(
        d_model=32,
        num_att_heads=4,
        num_dec_layers=2,
        vocab_size=64,
        max_seq_len=8,
        type_vocab_size=2,
        layer_norm_eps=1e-5,
        pad_token_id=0,
        drop_out_raito=0.0,   # dropout is identity (eval semantics)
    )
    B, S = 2, 8

    key = jax.random.PRNGKey(0)
    pkey, dkey = jax.random.split(key)
    params = init_params(pkey, cfg)
    # Avoid the pad id so the attention mask is all-ones (arbitrary choice).
    input_ids = jax.random.randint(dkey, (B, S), 1, cfg["vocab_size"], dtype=jnp.int32)

    logits, self_attn_probs = gpt2_decoder_forward(params, cfg, input_ids)
    jax.block_until_ready(logits)
    jax.block_until_ready(self_attn_probs)

    assert logits.shape == (B, S, cfg["vocab_size"])
    assert len(self_attn_probs) == cfg["num_dec_layers"]
    assert self_attn_probs[0].shape == (B, cfg["num_att_heads"], S, S)
    # causal rows should sum to ~1 (approx reciprocal => loose tolerance)
    assert jnp.allclose(self_attn_probs[0].sum(-1), 1.0, atol=5e-2)
    print("KERNEL_OK")
</pallas_src>

<mosaic_0001>
module attributes {stable_mosaic.version = 11 : i64} {
  func.func @gpt2_layer_kernel(%arg0: i32, %arg1: i32, %arg2: memref<1x8x32xf32, #tpu.memory_space<vmem>>, %arg3: memref<1x1x8xf32, #tpu.memory_space<vmem>>, %arg4: memref<1x32xf32, #tpu.memory_space<vmem>>, %arg5: memref<1x32xf32, #tpu.memory_space<vmem>>, %arg6: memref<1x32x24xbf16, #tpu.memory_space<vmem>>, %arg7: memref<1x1x24xf32, #tpu.memory_space<vmem>>, %arg8: memref<1x8x32xbf16, #tpu.memory_space<vmem>>, %arg9: memref<1x32xf32, #tpu.memory_space<vmem>>, %arg10: memref<1x32xf32, #tpu.memory_space<vmem>>, %arg11: memref<1x32xf32, #tpu.memory_space<vmem>>, %arg12: memref<32x128xbf16, #tpu.memory_space<vmem>>, %arg13: memref<1x128xf32, #tpu.memory_space<vmem>>, %arg14: memref<128x32xbf16, #tpu.memory_space<vmem>>, %arg15: memref<1x32xf32, #tpu.memory_space<vmem>>, %arg16: memref<1x8x32xf32, #tpu.memory_space<vmem>>, %arg17: memref<1x1x8x8xf32, #tpu.memory_space<vmem>>, %arg18: memref<8x32xbf16, #tpu.memory_space<vmem>>, %arg19: memref<8x32xf32, #tpu.memory_space<vmem>>) attributes {dimension_semantics = [#tpu.dimension_semantics<parallel>, #tpu.dimension_semantics<arbitrary>], iteration_bounds = array<i64: 2, 4>, scalar_prefetch = 0 : i64, scratch_operands = 2 : i64, tpu.core_type = #tpu.core_type<tc>, window_params = [{transform_indices = @transform_0, window_bounds = array<i64: 1, 8, 32>}, {transform_indices = @transform_1, window_bounds = array<i64: 1, 1, 8>}, {pipeline_mode = #tpu.pipeline_mode<synchronous>, transform_indices = @transform_2, window_bounds = array<i64: 1, 32>}, {pipeline_mode = #tpu.pipeline_mode<synchronous>, transform_indices = @transform_3, window_bounds = array<i64: 1, 32>}, {transform_indices = @transform_4, window_bounds = array<i64: 1, 32, 24>}, {transform_indices = @transform_5, window_bounds = array<i64: 1, 1, 24>}, {transform_indices = @transform_6, window_bounds = array<i64: 1, 8, 32>}, {pipeline_mode = #tpu.pipeline_mode<synchronous>, transform_indices = @transform_7, window_bounds = array<i64: 1, 32>}, {pipeline_mode = #tpu.pipeline_mode<synchronous>, transform_indices = @transform_8, window_bounds = array<i64: 1, 32>}, {pipeline_mode = #tpu.pipeline_mode<synchronous>, transform_indices = @transform_9, window_bounds = array<i64: 1, 32>}, {pipeline_mode = #tpu.pipeline_mode<synchronous>, transform_indices = @transform_10, window_bounds = array<i64: 32, 128>}, {pipeline_mode = #tpu.pipeline_mode<synchronous>, transform_indices = @transform_11, window_bounds = array<i64: 1, 128>}, {pipeline_mode = #tpu.pipeline_mode<synchronous>, transform_indices = @transform_12, window_bounds = array<i64: 128, 32>}, {pipeline_mode = #tpu.pipeline_mode<synchronous>, transform_indices = @transform_13, window_bounds = array<i64: 1, 32>}, {transform_indices = @transform_14, window_bounds = array<i64: 1, 8, 32>}, {transform_indices = @transform_15, window_bounds = array<i64: 1, 1, 8, 8>}]} {
    %c0_i32 = arith.constant 0 : i32
    %0 = arith.cmpi eq, %arg1, %c0_i32 : i32
    %1 = arith.extui %0 : i1 to i32
    %c0_i32_0 = arith.constant 0 : i32
    %2 = arith.cmpi ne, %1, %c0_i32_0 : i32
    scf.if %2 {
      %c0_31 = arith.constant 0 : index
      %c0_32 = arith.constant 0 : index
      %c0_33 = arith.constant 0 : index
      %56 = vector.load %arg2[%c0_31, %c0_32, %c0_33] : memref<1x8x32xf32, #tpu.memory_space<vmem>>, vector<1x8x32xf32>
      %57 = vector.shape_cast %56 : vector<1x8x32xf32> to vector<8x32xf32>
      %c0_34 = arith.constant 0 : index
      %c0_35 = arith.constant 0 : index
      %58 = vector.load %arg4[%c0_34, %c0_35] : memref<1x32xf32, #tpu.memory_space<vmem>>, vector<1x32xf32>
      %c0_36 = arith.constant 0 : index
      %c0_37 = arith.constant 0 : index
      %59 = vector.load %arg5[%c0_36, %c0_37] : memref<1x32xf32, #tpu.memory_space<vmem>>, vector<1x32xf32>
      %cst_38 = arith.constant dense<0.000000e+00> : vector<8xf32>
      %60 = vector.multi_reduction <add>, %57, %cst_38 [1] : vector<8x32xf32> to vector<8xf32>
      %61 = vector.shape_cast %60 : vector<8xf32> to vector<8x1xf32>
      %cst_39 = arith.constant 3.200000e+01 : f32
      %62 = vector.broadcast %cst_39 : f32 to vector<8x1xf32>
      %63 = arith.divf %61, %62 : vector<8x1xf32>
      %64 = vector.broadcast %63 : vector<8x1xf32> to vector<8x32xf32>
      %65 = arith.subf %57, %64 : vector<8x32xf32>
      %66 = arith.mulf %65, %65 : vector<8x32xf32>
      %cst_40 = arith.constant dense<0.000000e+00> : vector<8xf32>
      %67 = vector.multi_reduction <add>, %66, %cst_40 [1] : vector<8x32xf32> to vector<8xf32>
      %68 = vector.shape_cast %67 : vector<8xf32> to vector<8x1xf32>
      %cst_41 = arith.constant 3.200000e+01 : f32
      %69 = vector.broadcast %cst_41 : f32 to vector<8x1xf32>
      %70 = arith.divf %68, %69 : vector<8x1xf32>
      %71 = vector.broadcast %63 : vector<8x1xf32> to vector<8x32xf32>
      %72 = arith.subf %57, %71 : vector<8x32xf32>
      %cst_42 = arith.constant 9.99999974E-6 : f32
      %73 = vector.broadcast %cst_42 : f32 to vector<8x1xf32>
      %74 = arith.addf %70, %73 : vector<8x1xf32>
      %75 = math.rsqrt %74 : vector<8x1xf32>
      %76 = vector.broadcast %75 : vector<8x1xf32> to vector<8x32xf32>
      %77 = arith.mulf %72, %76 : vector<8x32xf32>
      %78 = vector.broadcast %58 : vector<1x32xf32> to vector<8x32xf32>
      %79 = arith.mulf %77, %78 : vector<8x32xf32>
      %80 = vector.broadcast %59 : vector<1x32xf32> to vector<8x32xf32>
      %81 = arith.addf %79, %80 : vector<8x32xf32>
      %82 = arith.truncf %81 : vector<8x32xf32> to vector<8x32xbf16>
      %c0_43 = arith.constant 0 : index
      %c0_44 = arith.constant 0 : index
      %83 = vector.load %arg18[%c0_43, %c0_44] : memref<8x32xbf16, #tpu.memory_space<vmem>>, vector<8x32xbf16>
      tpu.vector_store %arg18[%c0_43, %c0_44], %82 {strides = array<i32>} : memref<8x32xbf16, #tpu.memory_space<vmem>>, vector<8x32xbf16>,
      %c0_45 = arith.constant 0 : index
      %c0_46 = arith.constant 0 : index
      %84 = vector.load %arg9[%c0_45, %c0_46] : memref<1x32xf32, #tpu.memory_space<vmem>>, vector<1x32xf32>
      %85 = vector.broadcast %84 : vector<1x32xf32> to vector<8x32xf32>
      %86 = arith.addf %57, %85 : vector<8x32xf32>
      %c0_47 = arith.constant 0 : index
      %c0_48 = arith.constant 0 : index
      %87 = vector.load %arg19[%c0_47, %c0_48] : memref<8x32xf32, #tpu.memory_space<vmem>>, vector<8x32xf32>
      tpu.vector_store %arg19[%c0_47, %c0_48], %86 {strides = array<i32>} : memref<8x32xf32, #tpu.memory_space<vmem>>, vector<8x32xf32>,
    } else {
    }
    %c0 = arith.constant 0 : index
    %c0_1 = arith.constant 0 : index
    %3 = vector.load %arg18[%c0, %c0_1] : memref<8x32xbf16, #tpu.memory_space<vmem>>, vector<8x32xbf16>
    %c0_2 = arith.constant 0 : index
    %c0_3 = arith.constant 0 : index
    %c0_4 = arith.constant 0 : index
    %4 = vector.load %arg6[%c0_2, %c0_3, %c0_4] : memref<1x32x24xbf16, #tpu.memory_space<vmem>>, vector<1x32x24xbf16>
    %5 = vector.shape_cast %4 : vector<1x32x24xbf16> to vector<32x24xbf16>
    %cst = arith.constant dense<0.000000e+00> : vector<8x24xf32>
    %6 = tpu.matmul %3, %5, %cst {dimension_numbers = #tpu.dot_dimension_numbers<[1], [0], [0], [1], [0, 0, 1, 1], [], []>} : vector<8x32xbf16>, vector<32x24xbf16>, vector<8x24xf32> -> vector<8x24xf32>
    %c0_5 = arith.constant 0 : index
    %c0_6 = arith.constant 0 : index
    %c0_7 = arith.constant 0 : index
    %7 = vector.load %arg7[%c0_5, %c0_6, %c0_7] : memref<1x1x24xf32, #tpu.memory_space<vmem>>, vector<1x1x24xf32>
    %8 = vector.shape_cast %7 : vector<1x1x24xf32> to vector<1x24xf32>
    %9 = vector.broadcast %8 : vector<1x24xf32> to vector<8x24xf32>
    %10 = arith.addf %6, %9 : vector<8x24xf32>
    %11 = vector.extract_strided_slice %10 {offsets = [0, 0], sizes = [8, 8], strides = [1, 1]} : vector<8x24xf32> to vector<8x8xf32>
    %12 = arith.truncf %11 : vector<8x8xf32> to vector<8x8xbf16>
    %13 = vector.extract_strided_slice %10 {offsets = [0, 8], sizes = [8, 8], strides = [1, 1]} : vector<8x24xf32> to vector<8x8xf32>
    %14 = arith.truncf %13 : vector<8x8xf32> to vector<8x8xbf16>
    %15 = vector.extract_strided_slice %10 {offsets = [0, 16], sizes = [8, 8], strides = [1, 1]} : vector<8x24xf32> to vector<8x8xf32>
    %16 = arith.truncf %15 : vector<8x8xf32> to vector<8x8xbf16>
    %c0_8 = arith.constant 0 : index
    %c0_9 = arith.constant 0 : index
    %c0_10 = arith.constant 0 : index
    %17 = vector.load %arg3[%c0_8, %c0_9, %c0_10] : memref<1x1x8xf32, #tpu.memory_space<vmem>>, vector<1x1x8xf32>
    %18 = vector.shape_cast %17 : vector<1x1x8xf32> to vector<1x8xf32>
    %cst_11 = arith.constant 5.000000e-01 : f32
    %19 = vector.broadcast %cst_11 : f32 to vector<1x8xf32>
    %20 = arith.cmpf ogt, %18, %19 : vector<1x8xf32>
    %21 = tpu.iota {dimensions = array<i32: 0>} : vector<8x8xi32>
    %22 = tpu.iota {dimensions = array<i32: 1>} : vector<8x8xi32>
    %23 = arith.cmpi sle, %22, %21 : vector<8x8xi32>
    %24 = vector.broadcast %20 : vector<1x8xi1> to vector<8x8xi1>
    %25 = arith.andi %23, %24 : vector<8x8xi1>
    %cst_12 = arith.constant 0.000000e+00 : f32
    %cst_13 = arith.constant -6.550400e+04 : f32
    %26 = vector.broadcast %cst_12 : f32 to vector<8x8xf32>
    %27 = vector.broadcast %cst_13 : f32 to vector<8x8xf32>
    %28 = arith.select %25, %26, %27 : vector<8x8xi1>, vector<8x8xf32>
    %cst_14 = arith.constant dense<0.000000e+00> : vector<8x8xf32>
    %29 = tpu.matmul %12, %14, %cst_14 {dimension_numbers = #tpu.dot_dimension_numbers<[1], [1], [0], [0], [0, 0, 1, 0], [], []>} : vector<8x8xbf16>, vector<8x8xbf16>, vector<8x8xf32> -> vector<8x8xf32>
    %30 = arith.addf %29, %28 : vector<8x8xf32>
    %cst_15 = arith.constant dense<0xFF800000> : vector<8xf32>
    %31 = vector.multi_reduction <maximumf>, %30, %cst_15 [1] : vector<8x8xf32> to vector<8xf32>
    %32 = vector.shape_cast %31 : vector<8xf32> to vector<8x1xf32>
    %33 = vector.broadcast %32 : vector<8x1xf32> to vector<8x8xf32>
    %34 = arith.subf %30, %33 : vector<8x8xf32>
    %35 = math.exp %34 : vector<8x8xf32>
    %cst_16 = arith.constant dense<0.000000e+00> : vector<8xf32>
    %36 = vector.multi_reduction <add>, %35, %cst_16 [1] : vector<8x8xf32> to vector<8xf32>
    %37 = vector.shape_cast %36 : vector<8xf32> to vector<8x1xf32>
    %38 = tpu.reciprocal %37 {approx = true} : vector<8x1xf32> -> vector<8x1xf32>
    %39 = vector.broadcast %38 : vector<8x1xf32> to vector<8x8xf32>
    %40 = arith.mulf %35, %39 : vector<8x8xf32>
    %c0_17 = arith.constant 0 : index
    %c0_18 = arith.constant 0 : index
    %c0_19 = arith.constant 0 : index
    %c0_20 = arith.constant 0 : index
    %41 = vector.load %arg17[%c0_17, %c0_18, %c0_19, %c0_20] : memref<1x1x8x8xf32, #tpu.memory_space<vmem>>, vector<1x1x8x8xf32>
    %42 = vector.shape_cast %41 : vector<1x1x8x8xf32> to vector<8x8xf32>
    %43 = vector.shape_cast %40 : vector<8x8xf32> to vector<1x1x8x8xf32>
    tpu.vector_store %arg17[%c0_17, %c0_18, %c0_19, %c0_20], %43 {strides = array<i32>} : memref<1x1x8x8xf32, #tpu.memory_space<vmem>>, vector<1x1x8x8xf32>,
    %44 = arith.truncf %40 : vector<8x8xf32> to vector<8x8xbf16>
    %cst_21 = arith.constant dense<0.000000e+00> : vector<8x8xf32>
    %45 = tpu.matmul %44, %16, %cst_21 {dimension_numbers = #tpu.dot_dimension_numbers<[1], [0], [0], [1], [0, 0, 1, 1], [], []>} : vector<8x8xbf16>, vector<8x8xbf16>, vector<8x8xf32> -> vector<8x8xf32>
    %c0_22 = arith.constant 0 : index
    %c0_23 = arith.constant 0 : index
    %46 = vector.load %arg19[%c0_22, %c0_23] : memref<8x32xf32, #tpu.memory_space<vmem>>, vector<8x32xf32>
    %47 = arith.truncf %45 : vector<8x8xf32> to vector<8x8xbf16>
    %c0_24 = arith.constant 0 : index
    %c0_25 = arith.constant 0 : index
    %c0_26 = arith.constant 0 : index
    %48 = vector.load %arg8[%c0_24, %c0_25, %c0_26] : memref<1x8x32xbf16, #tpu.memory_space<vmem>>, vector<1x8x32xbf16>
    %49 = vector.shape_cast %48 : vector<1x8x32xbf16> to vector<8x32xbf16>
    %cst_27 = arith.constant dense<0.000000e+00> : vector<8x32xf32>
    %50 = tpu.matmul %47, %49, %cst_27 {dimension_numbers = #tpu.dot_dimension_numbers<[1], [0], [0], [1], [0, 0, 1, 1], [], []>} : vector<8x8xbf16>, vector<8x32xbf16>, vector<8x32xf32> -> vector<8x32xf32>
    %51 = arith.addf %46, %50 : vector<8x32xf32>
    %c0_28 = arith.constant 0 : index
    %c0_29 = arith.constant 0 : index
    %52 = vector.load %arg19[%c0_28, %c0_29] : memref<8x32xf32, #tpu.memory_space<vmem>>, vector<8x32xf32>
    tpu.vector_store %arg19[%c0_28, %c0_29], %51 {strides = array<i32>} : memref<8x32xf32, #tpu.memory_space<vmem>>, vector<8x32xf32>,
    %c3_i32 = arith.constant 3 : i32
    %53 = arith.cmpi eq, %arg1, %c3_i32 : i32
    %54 = arith.extui %53 : i1 to i32
    %c0_i32_30 = arith.constant 0 : i32
    %55 = arith.cmpi ne, %54, %c0_i32_30 : i32
    scf.if %55 {
      %c0_31 = arith.constant 0 : index
      %c0_32 = arith.constant 0 : index
      %56 = vector.load %arg19[%c0_31, %c0_32] : memref<8x32xf32, #tpu.memory_space<vmem>>, vector<8x32xf32>
      %c0_33 = arith.constant 0 : index
      %c0_34 = arith.constant 0 : index
      %57 = vector.load %arg10[%c0_33, %c0_34] : memref<1x32xf32, #tpu.memory_space<vmem>>, vector<1x32xf32>
      %c0_35 = arith.constant 0 : index
      %c0_36 = arith.constant 0 : index
      %58 = vector.load %arg11[%c0_35, %c0_36] : memref<1x32xf32, #tpu.memory_space<vmem>>, vector<1x32xf32>
      %cst_37 = arith.constant dense<0.000000e+00> : vector<8xf32>
      %59 = vector.multi_reduction <add>, %56, %cst_37 [1] : vector<8x32xf32> to vector<8xf32>
      %60 = vector.shape_cast %59 : vector<8xf32> to vector<8x1xf32>
      %cst_38 = arith.constant 3.200000e+01 : f32
      %61 = vector.broadcast %cst_38 : f32 to vector<8x1xf32>
      %62 = arith.divf %60, %61 : vector<8x1xf32>
      %63 = vector.broadcast %62 : vector<8x1xf32> to vector<8x32xf32>
      %64 = arith.subf %56, %63 : vector<8x32xf32>
      %65 = arith.mulf %64, %64 : vector<8x32xf32>
      %cst_39 = arith.constant dense<0.000000e+00> : vector<8xf32>
      %66 = vector.multi_reduction <add>, %65, %cst_39 [1] : vector<8x32xf32> to vector<8xf32>
      %67 = vector.shape_cast %66 : vector<8xf32> to vector<8x1xf32>
      %cst_40 = arith.constant 3.200000e+01 : f32
      %68 = vector.broadcast %cst_40 : f32 to vector<8x1xf32>
      %69 = arith.divf %67, %68 : vector<8x1xf32>
      %70 = vector.broadcast %62 : vector<8x1xf32> to vector<8x32xf32>
      %71 = arith.subf %56, %70 : vector<8x32xf32>
      %cst_41 = arith.constant 9.99999974E-6 : f32
      %72 = vector.broadcast %cst_41 : f32 to vector<8x1xf32>
      %73 = arith.addf %69, %72 : vector<8x1xf32>
      %74 = math.rsqrt %73 : vector<8x1xf32>
      %75 = vector.broadcast %74 : vector<8x1xf32> to vector<8x32xf32>
      %76 = arith.mulf %71, %75 : vector<8x32xf32>
      %77 = vector.broadcast %57 : vector<1x32xf32> to vector<8x32xf32>
      %78 = arith.mulf %76, %77 : vector<8x32xf32>
      %79 = vector.broadcast %58 : vector<1x32xf32> to vector<8x32xf32>
      %80 = arith.addf %78, %79 : vector<8x32xf32>
      %81 = arith.truncf %80 : vector<8x32xf32> to vector<8x32xbf16>
      %c0_42 = arith.constant 0 : index
      %c0_43 = arith.constant 0 : index
      %82 = vector.load %arg12[%c0_42, %c0_43] : memref<32x128xbf16, #tpu.memory_space<vmem>>, vector<32x128xbf16>
      %cst_44 = arith.constant dense<0.000000e+00> : vector<8x128xf32>
      %83 = tpu.matmul %81, %82, %cst_44 {dimension_numbers = #tpu.dot_dimension_numbers<[1], [0], [0], [1], [0, 0, 1, 1], [], []>} : vector<8x32xbf16>, vector<32x128xbf16>, vector<8x128xf32> -> vector<8x128xf32>
      %c0_45 = arith.constant 0 : index
      %c0_46 = arith.constant 0 : index
      %84 = vector.load %arg13[%c0_45, %c0_46] : memref<1x128xf32, #tpu.memory_space<vmem>>, vector<1x128xf32>
      %85 = vector.broadcast %84 : vector<1x128xf32> to vector<8x128xf32>
      %86 = arith.addf %83, %85 : vector<8x128xf32>
      %cst_47 = arith.constant 5.000000e-01 : f32
      %87 = vector.broadcast %cst_47 : f32 to vector<8x128xf32>
      %88 = arith.mulf %87, %86 : vector<8x128xf32>
      %cst_48 = arith.constant 4.471500e-02 : f32
      %89 = vector.broadcast %cst_48 : f32 to vector<8x128xf32>
      %90 = arith.mulf %89, %86 : vector<8x128xf32>
      %91 = arith.mulf %90, %86 : vector<8x128xf32>
      %92 = arith.mulf %91, %86 : vector<8x128xf32>
      %93 = arith.addf %86, %92 : vector<8x128xf32>
      %cst_49 = arith.constant 0.797884583 : f32
      %94 = vector.broadcast %cst_49 : f32 to vector<8x128xf32>
      %95 = arith.mulf %94, %93 : vector<8x128xf32>
      %96 = math.tanh %95 : vector<8x128xf32>
      %cst_50 = arith.constant 1.000000e+00 : f32
      %97 = vector.broadcast %cst_50 : f32 to vector<8x128xf32>
      %98 = arith.addf %97, %96 : vector<8x128xf32>
      %99 = arith.mulf %88, %98 : vector<8x128xf32>
      %100 = arith.truncf %99 : vector<8x128xf32> to vector<8x128xbf16>
      %c0_51 = arith.constant 0 : index
      %c0_52 = arith.constant 0 : index
      %101 = vector.load %arg14[%c0_51, %c0_52] : memref<128x32xbf16, #tpu.memory_space<vmem>>, vector<128x32xbf16>
      %cst_53 = arith.constant dense<0.000000e+00> : vector<8x32xf32>
      %102 = tpu.matmul %100, %101, %cst_53 {dimension_numbers = #tpu.dot_dimension_numbers<[1], [0], [0], [1], [0, 0, 1, 1], [], []>} : vector<8x128xbf16>, vector<128x32xbf16>, vector<8x32xf32> -> vector<8x32xf32>
      %c0_54 = arith.constant 0 : index
      %c0_55 = arith.constant 0 : index
      %103 = vector.load %arg15[%c0_54, %c0_55] : memref<1x32xf32, #tpu.memory_space<vmem>>, vector<1x32xf32>
      %104 = vector.broadcast %103 : vector<1x32xf32> to vector<8x32xf32>
      %105 = arith.addf %102, %104 : vector<8x32xf32>
      %106 = arith.addf %56, %105 : vector<8x32xf32>
      %c0_56 = arith.constant 0 : index
      %c0_57 = arith.constant 0 : index
      %c0_58 = arith.constant 0 : index
      %107 = vector.load %arg16[%c0_56, %c0_57, %c0_58] : memref<1x8x32xf32, #tpu.memory_space<vmem>>, vector<1x8x32xf32>
      %108 = vector.shape_cast %107 : vector<1x8x32xf32> to vector<8x32xf32>
      %109 = vector.shape_cast %106 : vector<8x32xf32> to vector<1x8x32xf32>
      tpu.vector_store %arg16[%c0_56, %c0_57, %c0_58], %109 {strides = array<i32>} : memref<1x8x32xf32, #tpu.memory_space<vmem>>, vector<1x8x32xf32>,
    } else {
    }
    return
  }
  func.func @transform_0(%arg0: i32, %arg1: i32) -> (i32, i32, i32) {
    %c0_i32 = arith.constant 0 : i32
    %c0_i32_0 = arith.constant 0 : i32
    %c0_i32_1 = arith.constant 0 : i32
    return %arg0, %c0_i32, %c0_i32_0 : i32, i32, i32
  }
  func.func @transform_1(%arg0: i32, %arg1: i32) -> (i32, i32, i32) {
    %c0_i32 = arith.constant 0 : i32
    %c0_i32_0 = arith.constant 0 : i32
    %c0_i32_1 = arith.constant 0 : i32
    return %arg0, %c0_i32, %c0_i32_0 : i32, i32, i32
  }
  func.func @transform_2(%arg0: i32, %arg1: i32) -> (i32, i32) {
    %c0_i32 = arith.constant 0 : i32
    %c0_i32_0 = arith.constant 0 : i32
    %c0_i32_1 = arith.constant 0 : i32
    return %c0_i32, %c0_i32_0 : i32, i32
  }
  func.func @transform_3(%arg0: i32, %arg1: i32) -> (i32, i32) {
    %c0_i32 = arith.constant 0 : i32
    %c0_i32_0 = arith.constant 0 : i32
    %c0_i32_1 = arith.constant 0 : i32
    return %c0_i32, %c0_i32_0 : i32, i32
  }
  func.func @transform_4(%arg0: i32, %arg1: i32) -> (i32, i32, i32) {
    %c0_i32 = arith.constant 0 : i32
    %c0_i32_0 = arith.constant 0 : i32
    %c0_i32_1 = arith.constant 0 : i32
    return %arg1, %c0_i32, %c0_i32_0 : i32, i32, i32
  }
  func.func @transform_5(%arg0: i32, %arg1: i32) -> (i32, i32, i32) {
    %c0_i32 = arith.constant 0 : i32
    %c0_i32_0 = arith.constant 0 : i32
    %c0_i32_1 = arith.constant 0 : i32
    return %arg1, %c0_i32, %c0_i32_0 : i32, i32, i32
  }
  func.func @transform_6(%arg0: i32, %arg1: i32) -> (i32, i32, i32) {
    %c0_i32 = arith.constant 0 : i32
    %c0_i32_0 = arith.constant 0 : i32
    %c0_i32_1 = arith.constant 0 : i32
    return %arg1, %c0_i32, %c0_i32_0 : i32, i32, i32
  }
  func.func @transform_7(%arg0: i32, %arg1: i32) -> (i32, i32) {
    %c0_i32 = arith.constant 0 : i32
    %c0_i32_0 = arith.constant 0 : i32
    %c0_i32_1 = arith.constant 0 : i32
    return %c0_i32, %c0_i32_0 : i32, i32
  }
  func.func @transform_8(%arg0: i32, %arg1: i32) -> (i32, i32) {
    %c0_i32 = arith.constant 0 : i32
    %c0_i32_0 = arith.constant 0 : i32
    %c0_i32_1 = arith.constant 0 : i32
    return %c0_i32, %c0_i32_0 : i32, i32
  }
  func.func @transform_9(%arg0: i32, %arg1: i32) -> (i32, i32) {
    %c0_i32 = arith.constant 0 : i32
    %c0_i32_0 = arith.constant 0 : i32
    %c0_i32_1 = arith.constant 0 : i32
    return %c0_i32, %c0_i32_0 : i32, i32
  }
  func.func @transform_10(%arg0: i32, %arg1: i32) -> (i32, i32) {
    %c0_i32 = arith.constant 0 : i32
    %c0_i32_0 = arith.constant 0 : i32
    %c0_i32_1 = arith.constant 0 : i32
    return %c0_i32, %c0_i32_0 : i32, i32
  }
  func.func @transform_11(%arg0: i32, %arg1: i32) -> (i32, i32) {
    %c0_i32 = arith.constant 0 : i32
    %c0_i32_0 = arith.constant 0 : i32
    %c0_i32_1 = arith.constant 0 : i32
    return %c0_i32, %c0_i32_0 : i32, i32
  }
  func.func @transform_12(%arg0: i32, %arg1: i32) -> (i32, i32) {
    %c0_i32 = arith.constant 0 : i32
    %c0_i32_0 = arith.constant 0 : i32
    %c0_i32_1 = arith.constant 0 : i32
    return %c0_i32, %c0_i32_0 : i32, i32
  }
  func.func @transform_13(%arg0: i32, %arg1: i32) -> (i32, i32) {
    %c0_i32 = arith.constant 0 : i32
    %c0_i32_0 = arith.constant 0 : i32
    %c0_i32_1 = arith.constant 0 : i32
    return %c0_i32, %c0_i32_0 : i32, i32
  }
  func.func @transform_14(%arg0: i32, %arg1: i32) -> (i32, i32, i32) {
    %c0_i32 = arith.constant 0 : i32
    %c0_i32_0 = arith.constant 0 : i32
    %c0_i32_1 = arith.constant 0 : i32
    return %arg0, %c0_i32, %c0_i32_0 : i32, i32, i32
  }
  func.func @transform_15(%arg0: i32, %arg1: i32) -> (i32, i32, i32, i32) {
    %c0_i32 = arith.constant 0 : i32
    %c0_i32_0 = arith.constant 0 : i32
    %c0_i32_1 = arith.constant 0 : i32
    return %arg0, %arg1, %c0_i32, %c0_i32_0 : i32, i32, i32, i32
  }
}

module attributes {stable_mosaic.version = 11 : i64} {
  func.func @gpt2_layer_kernel(%arg0: i32, %arg1: i32, %arg2: memref<1x8x32xf32, #tpu.memory_space<vmem>>, %arg3: memref<1x1x8xf32, #tpu.memory_space<vmem>>, %arg4: memref<1x32xf32, #tpu.memory_space<vmem>>, %arg5: memref<1x32xf32, #tpu.memory_space<vmem>>, %arg6: memref<1x32x24xbf16, #tpu.memory_space<vmem>>, %arg7: memref<1x1x24xf32, #tpu.memory_space<vmem>>, %arg8: memref<1x8x32xbf16, #tpu.memory_space<vmem>>, %arg9: memref<1x32xf32, #tpu.memory_space<vmem>>, %arg10: memref<1x32xf32, #tpu.memory_space<vmem>>, %arg11: memref<1x32xf32, #tpu.memory_space<vmem>>, %arg12: memref<32x128xbf16, #tpu.memory_space<vmem>>, %arg13: memref<1x128xf32, #tpu.memory_space<vmem>>, %arg14: memref<128x32xbf16, #tpu.memory_space<vmem>>, %arg15: memref<1x32xf32, #tpu.memory_space<vmem>>, %arg16: memref<1x8x32xf32, #tpu.memory_space<vmem>>, %arg17: memref<1x1x8x8xf32, #tpu.memory_space<vmem>>, %arg18: memref<8x32xbf16, #tpu.memory_space<vmem>>, %arg19: memref<8x32xf32, #tpu.memory_space<vmem>>) attributes {dimension_semantics = [#tpu.dimension_semantics<parallel>, #tpu.dimension_semantics<arbitrary>], iteration_bounds = array<i64: 2, 4>, scalar_prefetch = 0 : i64, scratch_operands = 2 : i64, tpu.core_type = #tpu.core_type<tc>, window_params = [{transform_indices = @transform_0, window_bounds = array<i64: 1, 8, 32>}, {transform_indices = @transform_1, window_bounds = array<i64: 1, 1, 8>}, {pipeline_mode = #tpu.pipeline_mode<synchronous>, transform_indices = @transform_2, window_bounds = array<i64: 1, 32>}, {pipeline_mode = #tpu.pipeline_mode<synchronous>, transform_indices = @transform_3, window_bounds = array<i64: 1, 32>}, {transform_indices = @transform_4, window_bounds = array<i64: 1, 32, 24>}, {transform_indices = @transform_5, window_bounds = array<i64: 1, 1, 24>}, {transform_indices = @transform_6, window_bounds = array<i64: 1, 8, 32>}, {pipeline_mode = #tpu.pipeline_mode<synchronous>, transform_indices = @transform_7, window_bounds = array<i64: 1, 32>}, {pipeline_mode = #tpu.pipeline_mode<synchronous>, transform_indices = @transform_8, window_bounds = array<i64: 1, 32>}, {pipeline_mode = #tpu.pipeline_mode<synchronous>, transform_indices = @transform_9, window_bounds = array<i64: 1, 32>}, {pipeline_mode = #tpu.pipeline_mode<synchronous>, transform_indices = @transform_10, window_bounds = array<i64: 32, 128>}, {pipeline_mode = #tpu.pipeline_mode<synchronous>, transform_indices = @transform_11, window_bounds = array<i64: 1, 128>}, {pipeline_mode = #tpu.pipeline_mode<synchronous>, transform_indices = @transform_12, window_bounds = array<i64: 128, 32>}, {pipeline_mode = #tpu.pipeline_mode<synchronous>, transform_indices = @transform_13, window_bounds = array<i64: 1, 32>}, {transform_indices = @transform_14, window_bounds = array<i64: 1, 8, 32>}, {transform_indices = @transform_15, window_bounds = array<i64: 1, 1, 8, 8>}]} {
    %c0_i32 = arith.constant 0 : i32
    %0 = arith.cmpi eq, %arg1, %c0_i32 : i32
    %1 = arith.extui %0 : i1 to i32
    %c0_i32_0 = arith.constant 0 : i32
    %2 = arith.cmpi ne, %1, %c0_i32_0 : i32
    scf.if %2 {
      %c0_31 = arith.constant 0 : index
      %c0_32 = arith.constant 0 : index
      %c0_33 = arith.constant 0 : index
      %56 = vector.load %arg2[%c0_31, %c0_32, %c0_33] : memref<1x8x32xf32, #tpu.memory_space<vmem>>, vector<1x8x32xf32>
      %57 = vector.shape_cast %56 : vector<1x8x32xf32> to vector<8x32xf32>
      %c0_34 = arith.constant 0 : index
      %c0_35 = arith.constant 0 : index
      %58 = vector.load %arg4[%c0_34, %c0_35] : memref<1x32xf32, #tpu.memory_space<vmem>>, vector<1x32xf32>
      %c0_36 = arith.constant 0 : index
      %c0_37 = arith.constant 0 : index
      %59 = vector.load %arg5[%c0_36, %c0_37] : memref<1x32xf32, #tpu.memory_space<vmem>>, vector<1x32xf32>
      %cst_38 = arith.constant dense<0.000000e+00> : vector<8xf32>
      %60 = vector.multi_reduction <add>, %57, %cst_38 [1] : vector<8x32xf32> to vector<8xf32>
      %61 = vector.shape_cast %60 : vector<8xf32> to vector<8x1xf32>
      %cst_39 = arith.constant 3.200000e+01 : f32
      %62 = vector.broadcast %cst_39 : f32 to vector<8x1xf32>
      %63 = arith.divf %61, %62 : vector<8x1xf32>
      %64 = vector.broadcast %63 : vector<8x1xf32> to vector<8x32xf32>
      %65 = arith.subf %57, %64 : vector<8x32xf32>
      %66 = arith.mulf %65, %65 : vector<8x32xf32>
      %cst_40 = arith.constant dense<0.000000e+00> : vector<8xf32>
      %67 = vector.multi_reduction <add>, %66, %cst_40 [1] : vector<8x32xf32> to vector<8xf32>
      %68 = vector.shape_cast %67 : vector<8xf32> to vector<8x1xf32>
      %cst_41 = arith.constant 3.200000e+01 : f32
      %69 = vector.broadcast %cst_41 : f32 to vector<8x1xf32>
      %70 = arith.divf %68, %69 : vector<8x1xf32>
      %71 = vector.broadcast %63 : vector<8x1xf32> to vector<8x32xf32>
      %72 = arith.subf %57, %71 : vector<8x32xf32>
      %cst_42 = arith.constant 9.99999974E-6 : f32
      %73 = vector.broadcast %cst_42 : f32 to vector<8x1xf32>
      %74 = arith.addf %70, %73 : vector<8x1xf32>
      %75 = math.rsqrt %74 : vector<8x1xf32>
      %76 = vector.broadcast %75 : vector<8x1xf32> to vector<8x32xf32>
      %77 = arith.mulf %72, %76 : vector<8x32xf32>
      %78 = vector.broadcast %58 : vector<1x32xf32> to vector<8x32xf32>
      %79 = arith.mulf %77, %78 : vector<8x32xf32>
      %80 = vector.broadcast %59 : vector<1x32xf32> to vector<8x32xf32>
      %81 = arith.addf %79, %80 : vector<8x32xf32>
      %82 = arith.truncf %81 : vector<8x32xf32> to vector<8x32xbf16>
      %c0_43 = arith.constant 0 : index
      %c0_44 = arith.constant 0 : index
      %83 = vector.load %arg18[%c0_43, %c0_44] : memref<8x32xbf16, #tpu.memory_space<vmem>>, vector<8x32xbf16>
      tpu.vector_store %arg18[%c0_43, %c0_44], %82 {strides = array<i32>} : memref<8x32xbf16, #tpu.memory_space<vmem>>, vector<8x32xbf16>,
      %c0_45 = arith.constant 0 : index
      %c0_46 = arith.constant 0 : index
      %84 = vector.load %arg9[%c0_45, %c0_46] : memref<1x32xf32, #tpu.memory_space<vmem>>, vector<1x32xf32>
      %85 = vector.broadcast %84 : vector<1x32xf32> to vector<8x32xf32>
      %86 = arith.addf %57, %85 : vector<8x32xf32>
      %c0_47 = arith.constant 0 : index
      %c0_48 = arith.constant 0 : index
      %87 = vector.load %arg19[%c0_47, %c0_48] : memref<8x32xf32, #tpu.memory_space<vmem>>, vector<8x32xf32>
      tpu.vector_store %arg19[%c0_47, %c0_48], %86 {strides = array<i32>} : memref<8x32xf32, #tpu.memory_space<vmem>>, vector<8x32xf32>,
    } else {
    }
    %c0 = arith.constant 0 : index
    %c0_1 = arith.constant 0 : index
    %3 = vector.load %arg18[%c0, %c0_1] : memref<8x32xbf16, #tpu.memory_space<vmem>>, vector<8x32xbf16>
    %c0_2 = arith.constant 0 : index
    %c0_3 = arith.constant 0 : index
    %c0_4 = arith.constant 0 : index
    %4 = vector.load %arg6[%c0_2, %c0_3, %c0_4] : memref<1x32x24xbf16, #tpu.memory_space<vmem>>, vector<1x32x24xbf16>
    %5 = vector.shape_cast %4 : vector<1x32x24xbf16> to vector<32x24xbf16>
    %cst = arith.constant dense<0.000000e+00> : vector<8x24xf32>
    %6 = tpu.matmul %3, %5, %cst {dimension_numbers = #tpu.dot_dimension_numbers<[1], [0], [0], [1], [0, 0, 1, 1], [], []>} : vector<8x32xbf16>, vector<32x24xbf16>, vector<8x24xf32> -> vector<8x24xf32>
    %c0_5 = arith.constant 0 : index
    %c0_6 = arith.constant 0 : index
    %c0_7 = arith.constant 0 : index
    %7 = vector.load %arg7[%c0_5, %c0_6, %c0_7] : memref<1x1x24xf32, #tpu.memory_space<vmem>>, vector<1x1x24xf32>
    %8 = vector.shape_cast %7 : vector<1x1x24xf32> to vector<1x24xf32>
    %9 = vector.broadcast %8 : vector<1x24xf32> to vector<8x24xf32>
    %10 = arith.addf %6, %9 : vector<8x24xf32>
    %11 = vector.extract_strided_slice %10 {offsets = [0, 0], sizes = [8, 8], strides = [1, 1]} : vector<8x24xf32> to vector<8x8xf32>
    %12 = arith.truncf %11 : vector<8x8xf32> to vector<8x8xbf16>
    %13 = vector.extract_strided_slice %10 {offsets = [0, 8], sizes = [8, 8], strides = [1, 1]} : vector<8x24xf32> to vector<8x8xf32>
    %14 = arith.truncf %13 : vector<8x8xf32> to vector<8x8xbf16>
    %15 = vector.extract_strided_slice %10 {offsets = [0, 16], sizes = [8, 8], strides = [1, 1]} : vector<8x24xf32> to vector<8x8xf32>
    %16 = arith.truncf %15 : vector<8x8xf32> to vector<8x8xbf16>
    %c0_8 = arith.constant 0 : index
    %c0_9 = arith.constant 0 : index
    %c0_10 = arith.constant 0 : index
    %17 = vector.load %arg3[%c0_8, %c0_9, %c0_10] : memref<1x1x8xf32, #tpu.memory_space<vmem>>, vector<1x1x8xf32>
    %18 = vector.shape_cast %17 : vector<1x1x8xf32> to vector<1x8xf32>
    %cst_11 = arith.constant 5.000000e-01 : f32
    %19 = vector.broadcast %cst_11 : f32 to vector<1x8xf32>
    %20 = arith.cmpf ogt, %18, %19 : vector<1x8xf32>
    %21 = tpu.iota {dimensions = array<i32: 0>} : vector<8x8xi32>
    %22 = tpu.iota {dimensions = array<i32: 1>} : vector<8x8xi32>
    %23 = arith.cmpi sle, %22, %21 : vector<8x8xi32>
    %24 = vector.broadcast %20 : vector<1x8xi1> to vector<8x8xi1>
    %25 = arith.andi %23, %24 : vector<8x8xi1>
    %cst_12 = arith.constant 0.000000e+00 : f32
    %cst_13 = arith.constant -6.550400e+04 : f32
    %26 = vector.broadcast %cst_12 : f32 to vector<8x8xf32>
    %27 = vector.broadcast %cst_13 : f32 to vector<8x8xf32>
    %28 = arith.select %25, %26, %27 : vector<8x8xi1>, vector<8x8xf32>
    %cst_14 = arith.constant dense<0.000000e+00> : vector<8x8xf32>
    %29 = tpu.matmul %12, %14, %cst_14 {dimension_numbers = #tpu.dot_dimension_numbers<[1], [1], [0], [0], [0, 0, 1, 0], [], []>} : vector<8x8xbf16>, vector<8x8xbf16>, vector<8x8xf32> -> vector<8x8xf32>
    %30 = arith.addf %29, %28 : vector<8x8xf32>
    %cst_15 = arith.constant dense<0xFF800000> : vector<8xf32>
    %31 = vector.multi_reduction <maximumf>, %30, %cst_15 [1] : vector<8x8xf32> to vector<8xf32>
    %32 = vector.shape_cast %31 : vector<8xf32> to vector<8x1xf32>
    %33 = vector.broadcast %32 : vector<8x1xf32> to vector<8x8xf32>
    %34 = arith.subf %30, %33 : vector<8x8xf32>
    %35 = math.exp %34 : vector<8x8xf32>
    %cst_16 = arith.constant dense<0.000000e+00> : vector<8xf32>
    %36 = vector.multi_reduction <add>, %35, %cst_16 [1] : vector<8x8xf32> to vector<8xf32>
    %37 = vector.shape_cast %36 : vector<8xf32> to vector<8x1xf32>
    %38 = tpu.reciprocal %37 {approx = true} : vector<8x1xf32> -> vector<8x1xf32>
    %39 = vector.broadcast %38 : vector<8x1xf32> to vector<8x8xf32>
    %40 = arith.mulf %35, %39 : vector<8x8xf32>
    %c0_17 = arith.constant 0 : index
    %c0_18 = arith.constant 0 : index
    %c0_19 = arith.constant 0 : index
    %c0_20 = arith.constant 0 : index
    %41 = vector.load %arg17[%c0_17, %c0_18, %c0_19, %c0_20] : memref<1x1x8x8xf32, #tpu.memory_space<vmem>>, vector<1x1x8x8xf32>
    %42 = vector.shape_cast %41 : vector<1x1x8x8xf32> to vector<8x8xf32>
    %43 = vector.shape_cast %40 : vector<8x8xf32> to vector<1x1x8x8xf32>
    tpu.vector_store %arg17[%c0_17, %c0_18, %c0_19, %c0_20], %43 {strides = array<i32>} : memref<1x1x8x8xf32, #tpu.memory_space<vmem>>, vector<1x1x8x8xf32>,
    %44 = arith.truncf %40 : vector<8x8xf32> to vector<8x8xbf16>
    %cst_21 = arith.constant dense<0.000000e+00> : vector<8x8xf32>
    %45 = tpu.matmul %44, %16, %cst_21 {dimension_numbers = #tpu.dot_dimension_numbers<[1], [0], [0], [1], [0, 0, 1, 1], [], []>} : vector<8x8xbf16>, vector<8x8xbf16>, vector<8x8xf32> -> vector<8x8xf32>
    %c0_22 = arith.constant 0 : index
    %c0_23 = arith.constant 0 : index
    %46 = vector.load %arg19[%c0_22, %c0_23] : memref<8x32xf32, #tpu.memory_space<vmem>>, vector<8x32xf32>
    %47 = arith.truncf %45 : vector<8x8xf32> to vector<8x8xbf16>
    %c0_24 = arith.constant 0 : index
    %c0_25 = arith.constant 0 : index
    %c0_26 = arith.constant 0 : index
    %48 = vector.load %arg8[%c0_24, %c0_25, %c0_26] : memref<1x8x32xbf16, #tpu.memory_space<vmem>>, vector<1x8x32xbf16>
    %49 = vector.shape_cast %48 : vector<1x8x32xbf16> to vector<8x32xbf16>
    %cst_27 = arith.constant dense<0.000000e+00> : vector<8x32xf32>
    %50 = tpu.matmul %47, %49, %cst_27 {dimension_numbers = #tpu.dot_dimension_numbers<[1], [0], [0], [1], [0, 0, 1, 1], [], []>} : vector<8x8xbf16>, vector<8x32xbf16>, vector<8x32xf32> -> vector<8x32xf32>
    %51 = arith.addf %46, %50 : vector<8x32xf32>
    %c0_28 = arith.constant 0 : index
    %c0_29 = arith.constant 0 : index
    %52 = vector.load %arg19[%c0_28, %c0_29] : memref<8x32xf32, #tpu.memory_space<vmem>>, vector<8x32xf32>
    tpu.vector_store %arg19[%c0_28, %c0_29], %51 {strides = array<i32>} : memref<8x32xf32, #tpu.memory_space<vmem>>, vector<8x32xf32>,
    %c3_i32 = arith.constant 3 : i32
    %53 = arith.cmpi eq, %arg1, %c3_i32 : i32
    %54 = arith.extui %53 : i1 to i32
    %c0_i32_30 = arith.constant 0 : i32
    %55 = arith.cmpi ne, %54, %c0_i32_30 : i32
    scf.if %55 {
      %c0_31 = arith.constant 0 : index
      %c0_32 = arith.constant 0 : index
      %56 = vector.load %arg19[%c0_31, %c0_32] : memref<8x32xf32, #tpu.memory_space<vmem>>, vector<8x32xf32>
      %c0_33 = arith.constant 0 : index
      %c0_34 = arith.constant 0 : index
      %57 = vector.load %arg10[%c0_33, %c0_34] : memref<1x32xf32, #tpu.memory_space<vmem>>, vector<1x32xf32>
      %c0_35 = arith.constant 0 : index
      %c0_36 = arith.constant 0 : index
      %58 = vector.load %arg11[%c0_35, %c0_36] : memref<1x32xf32, #tpu.memory_space<vmem>>, vector<1x32xf32>
      %cst_37 = arith.constant dense<0.000000e+00> : vector<8xf32>
      %59 = vector.multi_reduction <add>, %56, %cst_37 [1] : vector<8x32xf32> to vector<8xf32>
      %60 = vector.shape_cast %59 : vector<8xf32> to vector<8x1xf32>
      %cst_38 = arith.constant 3.200000e+01 : f32
      %61 = vector.broadcast %cst_38 : f32 to vector<8x1xf32>
      %62 = arith.divf %60, %61 : vector<8x1xf32>
      %63 = vector.broadcast %62 : vector<8x1xf32> to vector<8x32xf32>
      %64 = arith.subf %56, %63 : vector<8x32xf32>
      %65 = arith.mulf %64, %64 : vector<8x32xf32>
      %cst_39 = arith.constant dense<0.000000e+00> : vector<8xf32>
      %66 = vector.multi_reduction <add>, %65, %cst_39 [1] : vector<8x32xf32> to vector<8xf32>
      %67 = vector.shape_cast %66 : vector<8xf32> to vector<8x1xf32>
      %cst_40 = arith.constant 3.200000e+01 : f32
      %68 = vector.broadcast %cst_40 : f32 to vector<8x1xf32>
      %69 = arith.divf %67, %68 : vector<8x1xf32>
      %70 = vector.broadcast %62 : vector<8x1xf32> to vector<8x32xf32>
      %71 = arith.subf %56, %70 : vector<8x32xf32>
      %cst_41 = arith.constant 9.99999974E-6 : f32
      %72 = vector.broadcast %cst_41 : f32 to vector<8x1xf32>
      %73 = arith.addf %69, %72 : vector<8x1xf32>
      %74 = math.rsqrt %73 : vector<8x1xf32>
      %75 = vector.broadcast %74 : vector<8x1xf32> to vector<8x32xf32>
      %76 = arith.mulf %71, %75 : vector<8x32xf32>
      %77 = vector.broadcast %57 : vector<1x32xf32> to vector<8x32xf32>
      %78 = arith.mulf %76, %77 : vector<8x32xf32>
      %79 = vector.broadcast %58 : vector<1x32xf32> to vector<8x32xf32>
      %80 = arith.addf %78, %79 : vector<8x32xf32>
      %81 = arith.truncf %80 : vector<8x32xf32> to vector<8x32xbf16>
      %c0_42 = arith.constant 0 : index
      %c0_43 = arith.constant 0 : index
      %82 = vector.load %arg12[%c0_42, %c0_43] : memref<32x128xbf16, #tpu.memory_space<vmem>>, vector<32x128xbf16>
      %cst_44 = arith.constant dense<0.000000e+00> : vector<8x128xf32>
      %83 = tpu.matmul %81, %82, %cst_44 {dimension_numbers = #tpu.dot_dimension_numbers<[1], [0], [0], [1], [0, 0, 1, 1], [], []>} : vector<8x32xbf16>, vector<32x128xbf16>, vector<8x128xf32> -> vector<8x128xf32>
      %c0_45 = arith.constant 0 : index
      %c0_46 = arith.constant 0 : index
      %84 = vector.load %arg13[%c0_45, %c0_46] : memref<1x128xf32, #tpu.memory_space<vmem>>, vector<1x128xf32>
      %85 = vector.broadcast %84 : vector<1x128xf32> to vector<8x128xf32>
      %86 = arith.addf %83, %85 : vector<8x128xf32>
      %cst_47 = arith.constant 5.000000e-01 : f32
      %87 = vector.broadcast %cst_47 : f32 to vector<8x128xf32>
      %88 = arith.mulf %87, %86 : vector<8x128xf32>
      %cst_48 = arith.constant 4.471500e-02 : f32
      %89 = vector.broadcast %cst_48 : f32 to vector<8x128xf32>
      %90 = arith.mulf %89, %86 : vector<8x128xf32>
      %91 = arith.mulf %90, %86 : vector<8x128xf32>
      %92 = arith.mulf %91, %86 : vector<8x128xf32>
      %93 = arith.addf %86, %92 : vector<8x128xf32>
      %cst_49 = arith.constant 0.797884583 : f32
      %94 = vector.broadcast %cst_49 : f32 to vector<8x128xf32>
      %95 = arith.mulf %94, %93 : vector<8x128xf32>
      %96 = math.tanh %95 : vector<8x128xf32>
      %cst_50 = arith.constant 1.000000e+00 : f32
      %97 = vector.broadcast %cst_50 : f32 to vector<8x128xf32>
      %98 = arith.addf %97, %96 : vector<8x128xf32>
      %99 = arith.mulf %88, %98 : vector<8x128xf32>
      %100 = arith.truncf %99 : vector<8x128xf32> to vector<8x128xbf16>
      %c0_51 = arith.constant 0 : index
      %c0_52 = arith.constant 0 : index
      %101 = vector.load %arg14[%c0_51, %c0_52] : memref<128x32xbf16, #tpu.memory_space<vmem>>, vector<128x32xbf16>
      %cst_53 = arith.constant dense<0.000000e+00> : vector<8x32xf32>
      %102 = tpu.matmul %100, %101, %cst_53 {dimension_numbers = #tpu.dot_dimension_numbers<[1], [0], [0], [1], [0, 0, 1, 1], [], []>} : vector<8x128xbf16>, vector<128x32xbf16>, vector<8x32xf32> -> vector<8x32xf32>
      %c0_54 = arith.constant 0 : index
      %c0_55 = arith.constant 0 : index
      %103 = vector.load %arg15[%c0_54, %c0_55] : memref<1x32xf32, #tpu.memory_space<vmem>>, vector<1x32xf32>
      %104 = vector.broadcast %103 : vector<1x32xf32> to vector<8x32xf32>
      %105 = arith.addf %102, %104 : vector<8x32xf32>
      %106 = arith.addf %56, %105 : vector<8x32xf32>
      %c0_56 = arith.constant 0 : index
      %c0_57 = arith.constant 0 : index
      %c0_58 = arith.constant 0 : index
      %107 = vector.load %arg16[%c0_56, %c0_57, %c0_58] : memref<1x8x32xf32, #tpu.memory_space<vmem>>, vector<1x8x32xf32>
      %108 = vector.shape_cast %107 : vector<1x8x32xf32> to vector<8x32xf32>
      %109 = vector.shape_cast %106 : vector<8x32xf32> to vector<1x8x32xf32>
      tpu.vector_store %arg16[%c0_56, %c0_57, %c0_58], %109 {strides = array<i32>} : memref<1x8x32xf32, #tpu.memory_space<vmem>>, vector<1x8x32xf32>,
    } else {
    }
    return
  }
  func.func @transform_0(%arg0: i32, %arg1: i32) -> (i32, i32, i32) {
    %c0_i32 = arith.constant 0 : i32
    %c0_i32_0 = arith.constant 0 : i32
    %c0_i32_1 = arith.constant 0 : i32
    return %arg0, %c0_i32, %c0_i32_0 : i32, i32, i32
  }
  func.func @transform_1(%arg0: i32, %arg1: i32) -> (i32, i32, i32) {
    %c0_i32 = arith.constant 0 : i32
    %c0_i32_0 = arith.constant 0 : i32
    %c0_i32_1 = arith.constant 0 : i32
    return %arg0, %c0_i32, %c0_i32_0 : i32, i32, i32
  }
  func.func @transform_2(%arg0: i32, %arg1: i32) -> (i32, i32) {
    %c0_i32 = arith.constant 0 : i32
    %c0_i32_0 = arith.constant 0 : i32
    %c0_i32_1 = arith.constant 0 : i32
    return %c0_i32, %c0_i32_0 : i32, i32
  }
  func.func @transform_3(%arg0: i32, %arg1: i32) -> (i32, i32) {
    %c0_i32 = arith.constant 0 : i32
    %c0_i32_0 = arith.constant 0 : i32
    %c0_i32_1 = arith.constant 0 : i32
    return %c0_i32, %c0_i32_0 : i32, i32
  }
  func.func @transform_4(%arg0: i32, %arg1: i32) -> (i32, i32, i32) {
    %c0_i32 = arith.constant 0 : i32
    %c0_i32_0 = arith.constant 0 : i32
    %c0_i32_1 = arith.constant 0 : i32
    return %arg1, %c0_i32, %c0_i32_0 : i32, i32, i32
  }
  func.func @transform_5(%arg0: i32, %arg1: i32) -> (i32, i32, i32) {
    %c0_i32 = arith.constant 0 : i32
    %c0_i32_0 = arith.constant 0 : i32
    %c0_i32_1 = arith.constant 0 : i32
    return %arg1, %c0_i32, %c0_i32_0 : i32, i32, i32
  }
  func.func @transform_6(%arg0: i32, %arg1: i32) -> (i32, i32, i32) {
    %c0_i32 = arith.constant 0 : i32
    %c0_i32_0 = arith.constant 0 : i32
    %c0_i32_1 = arith.constant 0 : i32
    return %arg1, %c0_i32, %c0_i32_0 : i32, i32, i32
  }
  func.func @transform_7(%arg0: i32, %arg1: i32) -> (i32, i32) {
    %c0_i32 = arith.constant 0 : i32
    %c0_i32_0 = arith.constant 0 : i32
    %c0_i32_1 = arith.constant 0 : i32
    return %c0_i32, %c0_i32_0 : i32, i32
  }
  func.func @transform_8(%arg0: i32, %arg1: i32) -> (i32, i32) {
    %c0_i32 = arith.constant 0 : i32
    %c0_i32_0 = arith.constant 0 : i32
    %c0_i32_1 = arith.constant 0 : i32
    return %c0_i32, %c0_i32_0 : i32, i32
  }
  func.func @transform_9(%arg0: i32, %arg1: i32) -> (i32, i32) {
    %c0_i32 = arith.constant 0 : i32
    %c0_i32_0 = arith.constant 0 : i32
    %c0_i32_1 = arith.constant 0 : i32
    return %c0_i32, %c0_i32_0 : i32, i32
  }
  func.func @transform_10(%arg0: i32, %arg1: i32) -> (i32, i32) {
    %c0_i32 = arith.constant 0 : i32
    %c0_i32_0 = arith.constant 0 : i32
    %c0_i32_1 = arith.constant 0 : i32
    return %c0_i32, %c0_i32_0 : i32, i32
  }
  func.func @transform_11(%arg0: i32, %arg1: i32) -> (i32, i32) {
    %c0_i32 = arith.constant 0 : i32
    %c0_i32_0 = arith.constant 0 : i32
    %c0_i32_1 = arith.constant 0 : i32
    return %c0_i32, %c0_i32_0 : i32, i32
  }
  func.func @transform_12(%arg0: i32, %arg1: i32) -> (i32, i32) {
    %c0_i32 = arith.constant 0 : i32
    %c0_i32_0 = arith.constant 0 : i32
    %c0_i32_1 = arith.constant 0 : i32
    return %c0_i32, %c0_i32_0 : i32, i32
  }
  func.func @transform_13(%arg0: i32, %arg1: i32) -> (i32, i32) {
    %c0_i32 = arith.constant 0 : i32
    %c0_i32_0 = arith.constant 0 : i32
    %c0_i32_1 = arith.constant 0 : i32
    return %c0_i32, %c0_i32_0 : i32, i32
  }
  func.func @transform_14(%arg0: i32, %arg1: i32) -> (i32, i32, i32) {
    %c0_i32 = arith.constant 0 : i32
    %c0_i32_0 = arith.constant 0 : i32
    %c0_i32_1 = arith.constant 0 : i32
    return %arg0, %c0_i32, %c0_i32_0 : i32, i32, i32
  }
  func.func @transform_15(%arg0: i32, %arg1: i32) -> (i32, i32, i32, i32) {
    %c0_i32 = arith.constant 0 : i32
    %c0_i32_0 = arith.constant 0 : i32
    %c0_i32_1 = arith.constant 0 : i32
    return %arg0, %arg1, %c0_i32, %c0_i32_0 : i32, i32, i32, i32
  }
}

</mosaic_0001>

<llo_original>
// kernel: tpu_custom_call.1
$region0: #{tpu_custom_call.1}
  #allocation0 [shape = 'u32[]', space=smem, size = 0x4, offset = 0x4, fixed_abs, tag = 'smem constant byte address 0x4 - core index']
  #allocation1 [shape = 'u32[144,128]{1,0:T(1,128)}', space=vmem, size = 0x12000, scoped, tag = 'internal scratch']
  #allocation2 [shape = 'bf16[8,32]{1,0:T(8,128)(2,1)}', space=vmem, size = 0x800, scoped, tag = 'scratch operand']
  #allocation3 [shape = 'f32[8,32]{1,0:T(8,128)}', space=vmem, size = 0x1000, scoped, tag = 'scratch operand']
  %s0 = inlined_call_operand.vmem [shape: f32[2,8,32], index: 0, kind: input, shape index: {}]
  %s1 = inlined_call_operand.vmem [shape: f32[2,1,8], index: 1, kind: input, shape index: {}]
  %s2 = inlined_call_operand.vmem [shape: f32[1,32], index: 2, kind: input, shape index: {}]
  %s3 = inlined_call_operand.vmem [shape: f32[1,32], index: 3, kind: input, shape index: {}]
  %s4 = inlined_call_operand.vmem [shape: bf16[4,32,24], index: 4, kind: input, shape index: {}]
  %s5 = inlined_call_operand.vmem [shape: f32[4,1,24], index: 5, kind: input, shape index: {}]
  %s6 = inlined_call_operand.vmem [shape: bf16[4,8,32], index: 6, kind: input, shape index: {}]
  %s7 = inlined_call_operand.vmem [shape: f32[1,32], index: 7, kind: input, shape index: {}]
  %s8 = inlined_call_operand.vmem [shape: f32[1,32], index: 8, kind: input, shape index: {}]
  %s9 = inlined_call_operand.vmem [shape: f32[1,32], index: 9, kind: input, shape index: {}]
  %s10 = inlined_call_operand.vmem [shape: bf16[32,128], index: 10, kind: input, shape index: {}]
  %s11 = inlined_call_operand.vmem [shape: f32[1,128], index: 11, kind: input, shape index: {}]
  %s12 = inlined_call_operand.vmem [shape: bf16[128,32], index: 12, kind: input, shape index: {}]
  %s13 = inlined_call_operand.vmem [shape: f32[1,32], index: 13, kind: input, shape index: {}]
  %s14 = inlined_call_operand.hbm [shape: f32[2,8,32], index: 14, kind: output, shape index: {0}]
  %s15 = inlined_call_operand.hbm [shape: f32[2,4,8,8], index: 15, kind: output, shape index: {1}]
  %16 = xla_tuple %s14, %s15
  %s17 = sld [smem:[#allocation0]]
  $region105: #{tpu_custom_call.1} parent=0
    _
  %s19 = ssub.s32 1, %s17
  %s20 = scalar_select 0, %s19, %s17
  $region1: #{tpu_custom_call.1} parent=0
    #allocation4 [shape = 'u8[8192]{0}', space=vmem, size = 0x2000, scoped, tag = 'output window, operand 0']
    #allocation5 [shape = 's32[2]{0}', space=sflag, size = 0x8, scoped, tag = 'scoped memory for tpu_custom_call.1']
    #allocation6 [shape = 'u8[8192]{0}', space=vmem, size = 0x2000, scoped, tag = 'output window, operand 1']
    #allocation7 [shape = 's32[2]{0}', space=sflag, size = 0x8, scoped, tag = 'scoped memory for tpu_custom_call.1']
    %21 = vsyncpa [#allocation5], 0
    %s22 = scalar_lea.sflag [#allocation5], 1
    %23 = vsyncpa %s22, 0
    %24 = vsyncpa [#allocation7], 0
    %s25 = scalar_lea.sflag [#allocation7], 1
    %26 = vsyncpa %s25, 0
    loop: start=0, step=1, limit=10
    $region2: #{tpu_custom_call.1} parent=1 // loop_pre_header
      _
    $region3: #{tpu_custom_call.1} parent=1 // loop_header
      %s28 = sphi 0, %s32
      %p29 = scmp.ge.s32.totalorder %s28, 10
      %s35 = sphi 0, %s47
      %s36 = sphi 0, %s43
      %s37 = sphi 0, %s35
      %s38 = sphi 0, %s36
      %s39 = sphi 0, %s37
      %s40 = sphi 0, %s38
      %s50 = sphi 0, %s52
      %s53 = sphi 0, %s50
      %s54 = sphi 0, %s53
      %s70 = sphi 0, %s54
      %s76 = sphi 0, %s78
      %s79 = sphi 0, %s76
      %s80 = sphi 0, %s79
      %s96 = sphi 0, %s80
      %s100 = sphi 0, %s100
      %s102 = sphi 0, %s100
      %s103 = sphi 0, %s102
      %s117 = sphi 0, %s103
      %s121 = sphi 0, %s121
      %s123 = sphi 0, %s121
      %s124 = sphi 0, %s123
      %s138 = sphi 0, %s124
      %s144 = sphi 0, %s146
      %s147 = sphi 0, %s144
      %s148 = sphi 0, %s147
      %s164 = sphi 0, %s148
      %s170 = sphi 0, %s172
      %s173 = sphi 0, %s170
      %s174 = sphi 0, %s173
      %s190 = sphi 0, %s174
      %s196 = sphi 0, %s198
      %s199 = sphi 0, %s196
      %s200 = sphi 0, %s199
      %s216 = sphi 0, %s200
      %s220 = sphi 0, %s220
      %s222 = sphi 0, %s220
      %s223 = sphi 0, %s222
      %s237 = sphi 0, %s223
      %s241 = sphi 0, %s241
      %s243 = sphi 0, %s241
      %s244 = sphi 0, %s243
      %s258 = sphi 0, %s244
      %s262 = sphi 0, %s262
      %s264 = sphi 0, %s262
      %s265 = sphi 0, %s264
      %s279 = sphi 0, %s265
      %s283 = sphi 0, %s283
      %s285 = sphi 0, %s283
      %s286 = sphi 0, %s285
      %s300 = sphi 0, %s286
      %s304 = sphi 0, %s304
      %s306 = sphi 0, %s304
      %s307 = sphi 0, %s306
      %s321 = sphi 0, %s307
      %s325 = sphi 0, %s325
      %s327 = sphi 0, %s325
      %s328 = sphi 0, %s327
      %s342 = sphi 0, %s328
      %s346 = sphi 0, %s346
      %s348 = sphi 0, %s346
      %s349 = sphi 0, %s348
      %s363 = sphi 0, %s349
      %s369 = sphi 0, %s371
      %s372 = sphi 0, %s369
      %s373 = sphi 0, %s372
      %s389 = sphi 0, %s373
      %s397 = sphi 0, %s399
      %s400 = sphi 0, %s397
      %s401 = sphi 0, %s400
      %s417 = sphi 0, %s401
    $region4: #{tpu_custom_call.1} parent=1 // loop_header_branch
      %31 = sbr.rel (%p29) target = $region8
    $region5: #{tpu_custom_call.1} parent=1 // loop_body
      %s33 = ssub.s32 %s28, 1
      %s34 = ssub.s32 %s28, 2
      %s41 = sadd.s32 1, %s36
      %p42 = scmp.ge.s32.totalorder %s41, 4
      %s43 = scalar_select %p42, 0, %s41
      %s44 = sadd.s32 1, %s35
      %s45 = scalar_select %p42, %s44, %s35
      %p46 = scmp.ge.s32.totalorder %s45, 2
      %s47 = scalar_select %p46, 0, %s45
      %s48 = ssub.s32 %s35, %s47
      %p49 = scmp.eq.s32.totalorder %s48, 0
      %s51 = sadd.s32 %s50, 1
      %s52 = scalar_select %p49, %s50, %s51
      %p55 = pneg %p49
      %p56 = scmp.eq.s32.totalorder %s28, 7
      %p57 = por %p55, %p56
      %p58 = scmp.ne.s32.totalorder %s50, %s53
      %p59 = scmp.eq.s32.totalorder %s28, 0
      %p60 = por %p58, %p59
      %p61 = scmp.ne.s32.totalorder %s50, %s53
      %p62 = scmp.eq.s32.totalorder %s33, 7
      %p63 = por %p61, %p62
      %p64 = scmp.ne.s32.totalorder %s53, %s54
      %p65 = scmp.eq.s32.totalorder %s33, 0
      %p66 = por %p64, %p65
      %p67 = scmp.ne.s32.totalorder %s53, %s54
      %p68 = scmp.eq.s32.totalorder %s34, 7
      %p69 = por %p67, %p68
      %p71 = scmp.ne.s32.totalorder %s54, %s70
      %p72 = scmp.eq.s32.totalorder %s34, 0
      %p73 = por %p71, %p72
      %s74 = ssub.s32 %s35, %s47
      %p75 = scmp.eq.s32.totalorder %s74, 0
      %s77 = sadd.s32 %s76, 1
      %s78 = scalar_select %p75, %s76, %s77
      %p81 = pneg %p75
      %p82 = scmp.eq.s32.totalorder %s28, 7
      %p83 = por %p81, %p82
      %p84 = scmp.ne.s32.totalorder %s76, %s79
      %p85 = scmp.eq.s32.totalorder %s28, 0
      %p86 = por %p84, %p85
      %p87 = scmp.ne.s32.totalorder %s76, %s79
      %p88 = scmp.eq.s32.totalorder %s33, 7
      %p89 = por %p87, %p88
      %p90 = scmp.ne.s32.totalorder %s79, %s80
      %p91 = scmp.eq.s32.totalorder %s33, 0
      %p92 = por %p90, %p91
      %p93 = scmp.ne.s32.totalorder %s79, %s80
      %p94 = scmp.eq.s32.totalorder %s34, 7
      %p95 = por %p93, %p94
      %p97 = scmp.ne.s32.totalorder %s80, %s96
      %p98 = scmp.eq.s32.totalorder %s34, 0
      %p99 = por %p97, %p98
      %s101 = sadd.s32 %s100, 1
      %p104 = scmp.eq.s32.totalorder %s28, 7
      %p105 = scmp.ne.s32.totalorder %s100, %s102
      %p106 = scmp.eq.s32.totalorder %s28, 0
      %p107 = por %p105, %p106
      %p108 = scmp.ne.s32.totalorder %s100, %s102
      %p109 = scmp.eq.s32.totalorder %s33, 7
      %p110 = por %p108, %p109
      %p111 = scmp.ne.s32.totalorder %s102, %s103
      %p112 = scmp.eq.s32.totalorder %s33, 0
      %p113 = por %p111, %p112
      %p114 = scmp.ne.s32.totalorder %s102, %s103
      %p115 = scmp.eq.s32.totalorder %s34, 7
      %p116 = por %p114, %p115
      %p118 = scmp.ne.s32.totalorder %s103, %s117
      %p119 = scmp.eq.s32.totalorder %s34, 0
      %p120 = por %p118, %p119
      %s122 = sadd.s32 %s121, 1
      %p125 = scmp.eq.s32.totalorder %s28, 7
      %p126 = scmp.ne.s32.totalorder %s121, %s123
      %p127 = scmp.eq.s32.totalorder %s28, 0
      %p128 = por %p126, %p127
      %p129 = scmp.ne.s32.totalorder %s121, %s123
      %p130 = scmp.eq.s32.totalorder %s33, 7
      %p131 = por %p129, %p130
      %p132 = scmp.ne.s32.totalorder %s123, %s124
      %p133 = scmp.eq.s32.totalorder %s33, 0
      %p134 = por %p132, %p133
      %p135 = scmp.ne.s32.totalorder %s123, %s124
      %p136 = scmp.eq.s32.totalorder %s34, 7
      %p137 = por %p135, %p136
      %p139 = scmp.ne.s32.totalorder %s124, %s138
      %p140 = scmp.eq.s32.totalorder %s34, 0
      %p141 = por %p139, %p140
      %s142 = ssub.s32 %s36, %s43
      %p143 = scmp.eq.s32.totalorder %s142, 0
      %s145 = sadd.s32 %s144, 1
      %s146 = scalar_select %p143, %s144, %s145
      %p149 = pneg %p143
      %p150 = scmp.eq.s32.totalorder %s28, 7
      %p151 = por %p149, %p150
      %p152 = scmp.ne.s32.totalorder %s144, %s147
      %p153 = scmp.eq.s32.totalorder %s28, 0
      %p154 = por %p152, %p153
      %p155 = scmp.ne.s32.totalorder %s144, %s147
      %p156 = scmp.eq.s32.totalorder %s33, 7
      %p157 = por %p155, %p156
      %p158 = scmp.ne.s32.totalorder %s147, %s148
      %p159 = scmp.eq.s32.totalorder %s33, 0
      %p160 = por %p158, %p159
      %p161 = scmp.ne.s32.totalorder %s147, %s148
      %p162 = scmp.eq.s32.totalorder %s34, 7
      %p163 = por %p161, %p162
      %p165 = scmp.ne.s32.totalorder %s148, %s164
      %p166 = scmp.eq.s32.totalorder %s34, 0
      %p167 = por %p165, %p166
      %s168 = ssub.s32 %s36, %s43
      %p169 = scmp.eq.s32.totalorder %s168, 0
      %s171 = sadd.s32 %s170, 1
      %s172 = scalar_select %p169, %s170, %s171
      %p175 = pneg %p169
      %p176 = scmp.eq.s32.totalorder %s28, 7
      %p177 = por %p175, %p176
      %p178 = scmp.ne.s32.totalorder %s170, %s173
      %p179 = scmp.eq.s32.totalorder %s28, 0
      %p180 = por %p178, %p179
      %p181 = scmp.ne.s32.totalorder %s170, %s173
      %p182 = scmp.eq.s32.totalorder %s33, 7
      %p183 = por %p181, %p182
      %p184 = scmp.ne.s32.totalorder %s173, %s174
      %p185 = scmp.eq.s32.totalorder %s33, 0
      %p186 = por %p184, %p185
      %p187 = scmp.ne.s32.totalorder %s173, %s174
      %p188 = scmp.eq.s32.totalorder %s34, 7
      %p189 = por %p187, %p188
      %p191 = scmp.ne.s32.totalorder %s174, %s190
      %p192 = scmp.eq.s32.totalorder %s34, 0
      %p193 = por %p191, %p192
      %s194 = ssub.s32 %s36, %s43
      %p195 = scmp.eq.s32.totalorder %s194, 0
      %s197 = sadd.s32 %s196, 1
      %s198 = scalar_select %p195, %s196, %s197
      %p201 = pneg %p195
      %p202 = scmp.eq.s32.totalorder %s28, 7
      %p203 = por %p201, %p202
      %p204 = scmp.ne.s32.totalorder %s196, %s199
      %p205 = scmp.eq.s32.totalorder %s28, 0
      %p206 = por %p204, %p205
      %p207 = scmp.ne.s32.totalorder %s196, %s199
      %p208 = scmp.eq.s32.totalorder %s33, 7
      %p209 = por %p207, %p208
      %p210 = scmp.ne.s32.totalorder %s199, %s200
      %p211 = scmp.eq.s32.totalorder %s33, 0
      %p212 = por %p210, %p211
      %p213 = scmp.ne.s32.totalorder %s199, %s200
      %p214 = scmp.eq.s32.totalorder %s34, 7
      %p215 = por %p213, %p214
      %p217 = scmp.ne.s32.totalorder %s200, %s216
      %p218 = scmp.eq.s32.totalorder %s34, 0
      %p219 = por %p217, %p218
      %s221 = sadd.s32 %s220, 1
      %p224 = scmp.eq.s32.totalorder %s28, 7
      %p225 = scmp.ne.s32.totalorder %s220, %s222
      %p226 = scmp.eq.s32.totalorder %s28, 0
      %p227 = por %p225, %p226
      %p228 = scmp.ne.s32.totalorder %s220, %s222
      %p229 = scmp.eq.s32.totalorder %s33, 7
      %p230 = por %p228, %p229
      %p231 = scmp.ne.s32.totalorder %s222, %s223
      %p232 = scmp.eq.s32.totalorder %s33, 0
      %p233 = por %p231, %p232
      %p234 = scmp.ne.s32.totalorder %s222, %s223
      %p235 = scmp.eq.s32.totalorder %s34, 7
      %p236 = por %p234, %p235
      %p238 = scmp.ne.s32.totalorder %s223, %s237
      %p239 = scmp.eq.s32.totalorder %s34, 0
      %p240 = por %p238, %p239
      %s242 = sadd.s32 %s241, 1
      %p245 = scmp.eq.s32.totalorder %s28, 7
      %p246 = scmp.ne.s32.totalorder %s241, %s243
      %p247 = scmp.eq.s32.totalorder %s28, 0
      %p248 = por %p246, %p247
      %p249 = scmp.ne.s32.totalorder %s241, %s243
      %p250 = scmp.eq.s32.totalorder %s33, 7
      %p251 = por %p249, %p250
      %p252 = scmp.ne.s32.totalorder %s243, %s244
      %p253 = scmp.eq.s32.totalorder %s33, 0
      %p254 = por %p252, %p253
      %p255 = scmp.ne.s32.totalorder %s243, %s244
      %p256 = scmp.eq.s32.totalorder %s34, 7
      %p257 = por %p255, %p256
      %p259 = scmp.ne.s32.totalorder %s244, %s258
      %p260 = scmp.eq.s32.totalorder %s34, 0
      %p261 = por %p259, %p260
      %s263 = sadd.s32 %s262, 1
      %p266 = scmp.eq.s32.totalorder %s28, 7
      %p267 = scmp.ne.s32.totalorder %s262, %s264
      %p268 = scmp.eq.s32.totalorder %s28, 0
      %p269 = por %p267, %p268
      %p270 = scmp.ne.s32.totalorder %s262, %s264
      %p271 = scmp.eq.s32.totalorder %s33, 7
      %p272 = por %p270, %p271
      %p273 = scmp.ne.s32.totalorder %s264, %s265
      %p274 = scmp.eq.s32.totalorder %s33, 0
      %p275 = por %p273, %p274
      %p276 = scmp.ne.s32.totalorder %s264, %s265
      %p277 = scmp.eq.s32.totalorder %s34, 7
      %p278 = por %p276, %p277
      %p280 = scmp.ne.s32.totalorder %s265, %s279
      %p281 = scmp.eq.s32.totalorder %s34, 0
      %p282 = por %p280, %p281
      %s284 = sadd.s32 %s283, 1
      %p287 = scmp.eq.s32.totalorder %s28, 7
      %p288 = scmp.ne.s32.totalorder %s283, %s285
      %p289 = scmp.eq.s32.totalorder %s28, 0
      %p290 = por %p288, %p289
      %p291 = scmp.ne.s32.totalorder %s283, %s285
      %p292 = scmp.eq.s32.totalorder %s33, 7
      %p293 = por %p291, %p292
      %p294 = scmp.ne.s32.totalorder %s285, %s286
      %p295 = scmp.eq.s32.totalorder %s33, 0
      %p296 = por %p294, %p295
      %p297 = scmp.ne.s32.totalorder %s285, %s286
      %p298 = scmp.eq.s32.totalorder %s34, 7
      %p299 = por %p297, %p298
      %p301 = scmp.ne.s32.totalorder %s286, %s300
      %p302 = scmp.eq.s32.totalorder %s34, 0
      %p303 = por %p301, %p302
      %s305 = sadd.s32 %s304, 1
      %p308 = scmp.eq.s32.totalorder %s28, 7
      %p309 = scmp.ne.s32.totalorder %s304, %s306
      %p310 = scmp.eq.s32.totalorder %s28, 0
      %p311 = por %p309, %p310
      %p312 = scmp.ne.s32.totalorder %s304, %s306
      %p313 = scmp.eq.s32.totalorder %s33, 7
      %p314 = por %p312, %p313
      %p315 = scmp.ne.s32.totalorder %s306, %s307
      %p316 = scmp.eq.s32.totalorder %s33, 0
      %p317 = por %p315, %p316
      %p318 = scmp.ne.s32.totalorder %s306, %s307
      %p319 = scmp.eq.s32.totalorder %s34, 7
      %p320 = por %p318, %p319
      %p322 = scmp.ne.s32.totalorder %s307, %s321
      %p323 = scmp.eq.s32.totalorder %s34, 0
      %p324 = por %p322, %p323
      %s326 = sadd.s32 %s325, 1
      %p329 = scmp.eq.s32.totalorder %s28, 7
      %p330 = scmp.ne.s32.totalorder %s325, %s327
      %p331 = scmp.eq.s32.totalorder %s28, 0
      %p332 = por %p330, %p331
      %p333 = scmp.ne.s32.totalorder %s325, %s327
      %p334 = scmp.eq.s32.totalorder %s33, 7
      %p335 = por %p333, %p334
      %p336 = scmp.ne.s32.totalorder %s327, %s328
      %p337 = scmp.eq.s32.totalorder %s33, 0
      %p338 = por %p336, %p337
      %p339 = scmp.ne.s32.totalorder %s327, %s328
      %p340 = scmp.eq.s32.totalorder %s34, 7
      %p341 = por %p339, %p340
      %p343 = scmp.ne.s32.totalorder %s328, %s342
      %p344 = scmp.eq.s32.totalorder %s34, 0
      %p345 = por %p343, %p344
      %s347 = sadd.s32 %s346, 1
      %p350 = scmp.eq.s32.totalorder %s28, 7
      %p351 = scmp.ne.s32.totalorder %s346, %s348
      %p352 = scmp.eq.s32.totalorder %s28, 0
      %p353 = por %p351, %p352
      %p354 = scmp.ne.s32.totalorder %s346, %s348
      %p355 = scmp.eq.s32.totalorder %s33, 7
      %p356 = por %p354, %p355
      %p357 = scmp.ne.s32.totalorder %s348, %s349
      %p358 = scmp.eq.s32.totalorder %s33, 0
      %p359 = por %p357, %p358
      %p360 = scmp.ne.s32.totalorder %s348, %s349
      %p361 = scmp.eq.s32.totalorder %s34, 7
      %p362 = por %p360, %p361
      %p364 = scmp.ne.s32.totalorder %s349, %s363
      %p365 = scmp.eq.s32.totalorder %s34, 0
      %p366 = por %p364, %p365
      %s367 = ssub.s32 %s35, %s47
      %p368 = scmp.eq.s32.totalorder %s367, 0
      %s370 = sadd.s32 %s369, 1
      %s371 = scalar_select %p368, %s369, %s370
      %p374 = pneg %p368
      %p375 = scmp.eq.s32.totalorder %s28, 7
      %p376 = por %p374, %p375
      %p377 = scmp.ne.s32.totalorder %s369, %s372
      %p378 = scmp.eq.s32.totalorder %s28, 0
      %p379 = por %p377, %p378
      %p380 = scmp.ne.s32.totalorder %s369, %s372
      %p381 = scmp.eq.s32.totalorder %s33, 7
      %p382 = por %p380, %p381
      %p383 = scmp.ne.s32.totalorder %s372, %s373
      %p384 = scmp.eq.s32.totalorder %s33, 0
      %p385 = por %p383, %p384
      %p386 = scmp.ne.s32.totalorder %s372, %s373
      %p387 = scmp.eq.s32.totalorder %s34, 7
      %p388 = por %p386, %p387
      %p390 = scmp.ne.s32.totalorder %s373, %s389
      %p391 = scmp.eq.s32.totalorder %s34, 0
      %p392 = por %p390, %p391
      %s393 = ssub.s32 %s35, %s47
      %s394 = ssub.s32 %s36, %s43
      %s395 = sor.u32 %s393, %s394
      %p396 = scmp.eq.s32.totalorder %s395, 0
      %s398 = sadd.s32 %s397, 1
      %s399 = scalar_select %p396, %s397, %s398
      %p402 = pneg %p396
      %p403 = scmp.eq.s32.totalorder %s28, 7
      %p404 = por %p402, %p403
      %p405 = scmp.ne.s32.totalorder %s397, %s400
      %p406 = scmp.eq.s32.totalorder %s28, 0
      %p407 = por %p405, %p406
      %p408 = scmp.ne.s32.totalorder %s397, %s400
      %p409 = scmp.eq.s32.totalorder %s33, 7
      %p410 = por %p408, %p409
      %p411 = scmp.ne.s32.totalorder %s400, %s401
      %p412 = scmp.eq.s32.totalorder %s33, 0
      %p413 = por %p411, %p412
      %p414 = scmp.ne.s32.totalorder %s400, %s401
      %p415 = scmp.eq.s32.totalorder %s34, 7
      %p416 = por %p414, %p415
      %p418 = scmp.ne.s32.totalorder %s401, %s417
      %p419 = scmp.eq.s32.totalorder %s34, 0
      %p420 = por %p418, %p419
      %p421 = scmp.le.s32.totalorder 1, %s28
      %p422 = scmp.lt.s32.totalorder %s28, 9
      %p423 = pnand %p421, %p422
      %p424 = pneg %p423
      // Predicated region
      $region9: #{tpu_custom_call.1} parent=5 // pred_check
        _
      $region10: #{tpu_custom_call.1} parent=5 // pred_check_branch
        %426 = sbr.rel (%p423) target = $region12
      $region11: #{tpu_custom_call.1} parent=5 // pred_region
        %s427 = ssub.s32 %s28, 1
        // Predicated region
        $region13: #{tpu_custom_call.1} parent=11 // pred_check
          %p428 = pneg %p113
        $region14: #{tpu_custom_call.1} parent=11 // pred_check_branch
          %430 = sbr.rel (%p428) target = $region16
        $region15: #{tpu_custom_call.1} parent=11 // pred_region
          _
        $region16: #{tpu_custom_call.1} parent=11 // pred_fallthru
          _
        // Predicated region
        $region17: #{tpu_custom_call.1} parent=11 // pred_check
          %p431 = pneg %p134
        $region18: #{tpu_custom_call.1} parent=11 // pred_check_branch
          %433 = sbr.rel (%p431) target = $region20
        $region19: #{tpu_custom_call.1} parent=11 // pred_region
          _
        $region20: #{tpu_custom_call.1} parent=11 // pred_fallthru
          _
        // Predicated region
        $region21: #{tpu_custom_call.1} parent=11 // pred_check
          %p434 = pneg %p233
        $region22: #{tpu_custom_call.1} parent=11 // pred_check_branch
          %436 = sbr.rel (%p434) target = $region24
        $region23: #{tpu_custom_call.1} parent=11 // pred_region
          _
        $region24: #{tpu_custom_call.1} parent=11 // pred_fallthru
          _
        // Predicated region
        $region25: #{tpu_custom_call.1} parent=11 // pred_check
          %p437 = pneg %p254
        $region26: #{tpu_custom_call.1} parent=11 // pred_check_branch
          %439 = sbr.rel (%p437) target = $region28
        $region27: #{tpu_custom_call.1} parent=11 // pred_region
          _
        $region28: #{tpu_custom_call.1} parent=11 // pred_fallthru
          _
        // Predicated region
        $region29: #{tpu_custom_call.1} parent=11 // pred_check
          %p440 = pneg %p275
        $region30: #{tpu_custom_call.1} parent=11 // pred_check_branch
          %442 = sbr.rel (%p440) target = $region32
        $region31: #{tpu_custom_call.1} parent=11 // pred_region
          _
        $region32: #{tpu_custom_call.1} parent=11 // pred_fallthru
          _
        // Predicated region
        $region33: #{tpu_custom_call.1} parent=11 // pred_check
          %p443 = pneg %p296
        $region34: #{tpu_custom_call.1} parent=11 // pred_check_branch
          %445 = sbr.rel (%p443) target = $region36
        $region35: #{tpu_custom_call.1} parent=11 // pred_region
          _
        $region36: #{tpu_custom_call.1} parent=11 // pred_fallthru
          _
        // Predicated region
        $region37: #{tpu_custom_call.1} parent=11 // pred_check
          %p446 = pneg %p317
        $region38: #{tpu_custom_call.1} parent=11 // pred_check_branch
          %448 = sbr.rel (%p446) target = $region40
        $region39: #{tpu_custom_call.1} parent=11 // pred_region
          _
        $region40: #{tpu_custom_call.1} parent=11 // pred_fallthru
          _
        // Predicated region
        $region41: #{tpu_custom_call.1} parent=11 // pred_check
          %p449 = pneg %p338
        $region42: #{tpu_custom_call.1} parent=11 // pred_check_branch
          %451 = sbr.rel (%p449) target = $region44
        $region43: #{tpu_custom_call.1} parent=11 // pred_region
          _
        $region44: #{tpu_custom_call.1} parent=11 // pred_fallthru
          _
        // Predicated region
        $region45: #{tpu_custom_call.1} parent=11 // pred_check
          %p452 = pneg %p359
        $region46: #{tpu_custom_call.1} parent=11 // pred_check_branch
          %454 = sbr.rel (%p452) target = $region48
        $region47: #{tpu_custom_call.1} parent=11 // pred_region
          _
        $region48: #{tpu_custom_call.1} parent=11 // pred_fallthru
          _
      $region12: #{tpu_custom_call.1} parent=5 // pred_fallthru
        _
      %p455 = scmp.lt.s32.totalorder %s28, 8
      // Predicated region
      $region49: #{tpu_custom_call.1} parent=5 // pred_check
        %p456 = pneg %p455
      $region50: #{tpu_custom_call.1} parent=5 // pred_check_branch
        %458 = sbr.rel (%p456) target = $region52
      $region51: #{tpu_custom_call.1} parent=5 // pred_region
        // Predicated region
        $region53: #{tpu_custom_call.1} parent=51 // pred_check
          %p459 = pneg %p60
        $region54: #{tpu_custom_call.1} parent=51 // pred_check_branch
          %461 = sbr.rel (%p459) target = $region56
        $region55: #{tpu_custom_call.1} parent=51 // pred_region
          %p462 = scmp.lt.s32.totalorder %s35, 1
          %s463 = scalar_select %p462, %s35, 1
          %s464 = smul.addr %s463, 8
          %s465 = scalar_lea.vmem %s0, %s464
        $region56: #{tpu_custom_call.1} parent=51 // pred_fallthru
          _
        // Predicated region
        $region57: #{tpu_custom_call.1} parent=51 // pred_check
          %p466 = pneg %p86
        $region58: #{tpu_custom_call.1} parent=51 // pred_check_branch
          %468 = sbr.rel (%p466) target = $region60
        $region59: #{tpu_custom_call.1} parent=51 // pred_region
          %p469 = scmp.lt.s32.totalorder %s35, 1
          %s470 = scalar_select %p469, %s35, 1
          %s471 = scalar_lea.vmem %s1, %s470
        $region60: #{tpu_custom_call.1} parent=51 // pred_fallthru
          _
        // Predicated region
        $region61: #{tpu_custom_call.1} parent=51 // pred_check
          %p472 = pneg %p154
        $region62: #{tpu_custom_call.1} parent=51 // pred_check_branch
          %474 = sbr.rel (%p472) target = $region64
        $region63: #{tpu_custom_call.1} parent=51 // pred_region
          %p475 = scmp.lt.s32.totalorder %s36, 3
          %s476 = scalar_select %p475, %s36, 3
          %s477 = smul.addr %s476, 4
          %s478 = smul.addr %s477, 4
          %s479 = scalar_lea.vmem %s4, %s478
        $region64: #{tpu_custom_call.1} parent=51 // pred_fallthru
          _
        // Predicated region
        $region65: #{tpu_custom_call.1} parent=51 // pred_check
          %p480 = pneg %p180
        $region66: #{tpu_custom_call.1} parent=51 // pred_check_branch
          %482 = sbr.rel (%p480) target = $region68
        $region67: #{tpu_custom_call.1} parent=51 // pred_region
          %p483 = scmp.lt.s32.totalorder %s36, 3
          %s484 = scalar_select %p483, %s36, 3
          %s485 = scalar_lea.vmem %s5, %s484
        $region68: #{tpu_custom_call.1} parent=51 // pred_fallthru
          _
        // Predicated region
        $region69: #{tpu_custom_call.1} parent=51 // pred_check
          %p486 = pneg %p206
        $region70: #{tpu_custom_call.1} parent=51 // pred_check_branch
          %488 = sbr.rel (%p486) target = $region72
        $region71: #{tpu_custom_call.1} parent=51 // pred_region
          %p489 = scmp.lt.s32.totalorder %s36, 3
          %s490 = scalar_select %p489, %s36, 3
          %s491 = smul.addr %s490, 4
          %s492 = scalar_lea.vmem %s6, %s491
        $region72: #{tpu_custom_call.1} parent=51 // pred_fallthru
          _
      $region52: #{tpu_custom_call.1} parent=5 // pred_fallthru
        _
      %p493 = scmp.le.s32.totalorder 1, %s28
      %p494 = scmp.lt.s32.totalorder %s28, 9
      %p495 = pnand %p493, %p494
      %p496 = pneg %p495
      // Predicated region
      $region73: #{tpu_custom_call.1} parent=5 // pred_check
        _
      $region74: #{tpu_custom_call.1} parent=5 // pred_check_branch
        %498 = sbr.rel (%p495) target = $region76
      $region75: #{tpu_custom_call.1} parent=5 // pred_region
        %s499 = ssub.s32 %s28, 1
        %p500 = scmp.lt.s32.totalorder %s37, 1
        %s501 = scalar_select %p500, %s37, 1
        %s502 = smul.addr %s501, 8
        %s503 = scalar_lea.vmem %s0, %s502
        %p504 = pneg %p66
        %p505 = pneg %p63
        %p506 = scmp.lt.s32.totalorder %s37, 1
        %s507 = scalar_select %p506, %s37, 1
        %s508 = scalar_lea.vmem %s1, %s507
        %p509 = pneg %p92
        %p510 = pneg %p89
        %p511 = pneg %p113
        %p512 = pneg %p110
        %p513 = pneg %p134
        %p514 = pneg %p131
        %p515 = scmp.lt.s32.totalorder %s38, 3
        %s516 = scalar_select %p515, %s38, 3
        %s517 = smul.addr %s516, 4
        %s518 = smul.addr %s517, 4
        %s519 = scalar_lea.vmem %s4, %s518
        %p520 = pneg %p160
        %p521 = pneg %p157
        %p522 = scmp.lt.s32.totalorder %s38, 3
        %s523 = scalar_select %p522, %s38, 3
        %s524 = scalar_lea.vmem %s5, %s523
        %p525 = pneg %p186
        %p526 = pneg %p183
        %p527 = scmp.lt.s32.totalorder %s38, 3
        %s528 = scalar_select %p527, %s38, 3
        %s529 = smul.addr %s528, 4
        %s530 = scalar_lea.vmem %s6, %s529
        %p531 = pneg %p212
        %p532 = pneg %p209
        %p533 = pneg %p233
        %p534 = pneg %p230
        %p535 = pneg %p254
        %p536 = pneg %p251
        %p537 = pneg %p275
        %p538 = pneg %p272
        %p539 = pneg %p296
        %p540 = pneg %p293
        %p541 = pneg %p317
        %p542 = pneg %p314
        %p543 = pneg %p338
        %p544 = pneg %p335
        %p545 = pneg %p359
        %p546 = pneg %p356
        %p547 = pneg %p385
        %p548 = pneg %p382
        %s549 = sand.u32 %s372, 1
        %s550 = scalar_lea.sflag [#allocation5], %s549
        %s551 = sand.u32 %s372, 1
        %s552 = smul.addr %s551, 8
        %s553 = scalar_lea.vmem [#allocation4], %s552
        %p554 = pneg %p413
        %p555 = pneg %p410
        %s556 = sand.u32 %s400, 1
        %s557 = scalar_lea.sflag [#allocation7], %s556
        %s558 = sand.u32 %s400, 1
        %s559 = smul.addr %s558, 8
        %s560 = scalar_lea.vmem [#allocation6], %s559
        %p561 = scmp.lt.s32.totalorder %s37, 1
        %s562 = scalar_select %p561, %s37, 1
        %s563 = smul.addr %s562, 8
        %s564 = scalar_lea.vmem %s0, %s563
        %p565 = scmp.lt.s32.totalorder %s37, 1
        %s566 = scalar_select %p565, %s37, 1
        %s567 = scalar_lea.vmem %s1, %s566
        %p568 = scmp.lt.s32.totalorder %s38, 3
        %s569 = scalar_select %p568, %s38, 3
        %s570 = smul.addr %s569, 4
        %s571 = smul.addr %s570, 4
        %s572 = scalar_lea.vmem %s4, %s571
        %p573 = scmp.lt.s32.totalorder %s38, 3
        %s574 = scalar_select %p573, %s38, 3
        %s575 = scalar_lea.vmem %s5, %s574
        %p576 = scmp.lt.s32.totalorder %s38, 3
        %s577 = scalar_select %p576, %s38, 3
        %s578 = smul.addr %s577, 4
        %s579 = scalar_lea.vmem %s6, %s578
        %p581 = scmp.eq.s32.totalorder %s38, 0
        // Predicated region
        $region77: #{tpu_custom_call.1} parent=75 // pred_check
          %p582 = pneg %p581
        $region78: #{tpu_custom_call.1} parent=75 // pred_check_branch
          %584 = sbr.rel (%p582) target = $region80
        $region79: #{tpu_custom_call.1} parent=75 // pred_region
          %v585 = vld [vmem:[%s564] sm:$0xff]
          %v586 = vld [vmem:[%s2] sm:$0x1]
          %v587 = vld [vmem:[%s3] sm:$0x1]
          %vm588 = vcmask 261120
          %v589 = vsel %vm588, %v585, 0.0
          %590 = vadd.xlane.f32.xlu0 %v589
          %v591 = vpop.xlane.xlu0 %590
          %v592 = vrcp.pop 32.0
          %v593 = vmul.f32 %v591, %v592
          %v594 = vsub.f32 %v585, %v593
          %v595 = vmul.f32 %v594, %v594
          %v596 = vsel %vm588, %v595, 0.0
          %597 = vadd.xlane.f32.xlu0 %v596
          %v598 = vpop.xlane.xlu0 %597
          %v599 = vmul.f32 %v598, %v592
          %v600 = vadd.f32 %v599, 1e-05
          %v601 = vrsqrt.pop %v600
          %v602 = vmul.f32 %v594, %v601
          %v604 = vlaneseq
          %v605 = vshrl.u32 %v604, 7
          %v606 = vsub.s32 0, %v605
          %v607 = vrot.slane %v586, %v606
          %v609 = vmul.f32 %v602, %v607
          %v611 = vlaneseq
          %v612 = vshrl.u32 %v611, 7
          %v613 = vsub.s32 0, %v612
          %v614 = vrot.slane %v587, %v613
          %v616 = vadd.f32 %v609, %v614
          %v617 = vpack.c.bf16 %v616, %v616
          %vm618 = vcmask 257024
          %619 = vst.msk [vmem:[#allocation2] sm:$0xf] %vm618, %v617
          %v620 = vld [vmem:[%s7] sm:$0x1]
          %v622 = vlaneseq
          %v623 = vshrl.u32 %v622, 7
          %v624 = vsub.s32 0, %v623
          %v625 = vrot.slane %v620, %v624
          %v627 = vadd.f32 %v585, %v625
          %628 = vst.msk [vmem:[#allocation3] sm:$0xff] %vm588, %v627
        $region80: #{tpu_custom_call.1} parent=75 // pred_fallthru
          _
        %v629 = vld [vmem:[#allocation2] sm:$0xf]
        %v630 = vld [vmem:[%s572] sm:$0xf]
        %v631 = vld [vmem:[%s572 + $0x4] sm:$0xf]
        %v632 = vld [vmem:[%s572 + $0x8] sm:$0xf]
        %v633 = vld [vmem:[%s572 + $0xc] sm:$0xf]
        %v634 = vld [vmem:[%s575] sm:$0x1]
        %v636 = vlaneseq
        %v637 = vshrl.u32 %v636, 7
        %v638 = vsub.s32 0, %v637
        %v639 = vrot.slane %v634, %v638
        %v645 = vunpack.c.l.b16 %v630
        %v646 = vunpack.c.l.b16 %v631
        %v647 = vunpack.c.l.b16 %v632
        %v648 = vunpack.c.l.b16 %v633
        %v649 = vpack.c.b16 %v646, %v645
        %v650 = vpack.c.b16 %v648, %v647
        %vm653 = vcmask 261120
        %v655 = vsel %vm653, %v629, 0
        %657 = vmatprep.subr.bf16.mxu0 0
        %658 = vmatpush1.bf16.msra.mxu0 %v649
        %659 = vmatprep.subr.bf16.mxu0 0
        %660 = vmatpush1.bf16.msra.mxu0 %v650
        %661 = vmatprep.subr.bf16.mxu0 0
        %662 = vmatpush1.bf16.msra.mxu0 0
        %663 = vmatprep.subr.bf16.mxu0 0
        %664 = vmatpush1.bf16.msra.mxu0 0
        %665 = vmatprep.subr.bf16.mxu0 0
        %666 = vmatpush1.bf16.msra.mxu0 0
        %667 = vmatprep.subr.bf16.mxu0 0
        %668 = vmatpush1.bf16.msra.mxu0 0
        %669 = vmatprep.subr.bf16.mxu0 0
        %670 = vmatpush1.bf16.msra.mxu0 0
        %671 = vmatprep.subr.bf16.mxu0 0
        %672 = vmatpush1.bf16.msra.mxu0 0
        %673 = vmatprep.subr.bf16.mxu0 0
        %674 = vmatpush1.bf16.msra.mxu0 0
        %675 = vmatprep.subr.bf16.mxu0 0
        %676 = vmatpush1.bf16.msra.mxu0 0
        %677 = vmatprep.subr.bf16.mxu0 0
        %678 = vmatpush1.bf16.msra.mxu0 0
        %679 = vmatprep.subr.bf16.mxu0 0
        %680 = vmatpush1.bf16.msra.mxu0 0
        %681 = vmatprep.subr.bf16.mxu0 0
        %682 = vmatpush1.bf16.msra.mxu0 0
        %683 = vmatprep.subr.bf16.mxu0 0
        %684 = vmatpush1.bf16.msra.mxu0 0
        %685 = vmatprep.subr.bf16.mxu0 0
        %686 = vmatpush1.bf16.msra.mxu0 0
        %687 = vmatprep.subr.bf16.mxu0 0
        %688 = vmatpush1.bf16.msra.mxu0 0
        %689 = vmatprep.mubr.bf16.mxu0 0
        %690 = vmatmul.mubr.bf16.gmra.mrb[0].mxu0 %v655
        %v691 = vpop.f32.mrb[0].mxu0
        %v692 = vadd.f32 %v639, %v691
        %v693 = vpop.f32.mrb[0].mxu0
        %v694 = vpop.f32.mrb[0].mxu0
        %v695 = vpop.f32.mrb[0].mxu0
        %696 = vdwg.mxu0
        %v697 = vpack.c.bf16 %v692, %v692
        %v698 = vld [vmem:[%s567] sm:$0x1]
        %vm699 = vcmp.gt.f32.partialorder %v698, 0.5
        %v700 = vlaneseq
        %v701 = vshrl.u32 %v700, 7
        %v702 = vlaneseq
        %v703 = vand.u32 %v702, 127
        %vm704 = vcmp.le.s32.totalorder %v703, %v701
        %v705 = vsel %vm699, 1, 0
        %v706 = vlaneseq
        %v707 = vshrl.u32 %v706, 7
        %v708 = vsub.s32 0, %v707
        %v709 = vrot.slane %v705, %v708
        %vm710 = vcmp.eq.s32.totalorder %v709, 1
        %vm711 = vmand %vm704, %vm710
        %v712 = vsel %vm711, 0.0, -65504.0
        %714 = vrot.lane.b32.xlu0 %v697, 120
        %v715 = vpop.permute.xlu0 %714
        %vm716 = vcmask 64512
        %v718 = vsel %vm716, %v697, 0
        %v721 = vsel %vm716, %v715, 0
        %723 = vmatprep.subr.bf16.mxu0 0
        %724 = vmatpush1.bf16.xpose.msra.mxu0 %v721
        %725 = vmatprep.subr.bf16.mxu0 0
        %726 = vmatpush1.bf16.xpose.msra.mxu0 0
        %727 = vmatprep.subr.bf16.mxu0 0
        %728 = vmatpush1.bf16.xpose.msra.mxu0 0
        %729 = vmatprep.subr.bf16.mxu0 0
        %730 = vmatpush1.bf16.xpose.msra.mxu0 0
        %731 = vmatprep.subr.bf16.mxu0 0
        %732 = vmatpush1.bf16.xpose.msra.mxu0 0
        %733 = vmatprep.subr.bf16.mxu0 0
        %734 = vmatpush1.bf16.xpose.msra.mxu0 0
        %735 = vmatprep.subr.bf16.mxu0 0
        %736 = vmatpush1.bf16.xpose.msra.mxu0 0
        %737 = vmatprep.subr.bf16.mxu0 0
        %738 = vmatpush1.bf16.xpose.msra.mxu0 0
        %739 = vmatprep.subr.bf16.mxu0 0
        %740 = vmatpush1.bf16.xpose.msra.mxu0 0
        %741 = vmatprep.subr.bf16.mxu0 0
        %742 = vmatpush1.bf16.xpose.msra.mxu0 0
        %743 = vmatprep.subr.bf16.mxu0 0
        %744 = vmatpush1.bf16.xpose.msra.mxu0 0
        %745 = vmatprep.subr.bf16.mxu0 0
        %746 = vmatpush1.bf16.xpose.msra.mxu0 0
        %747 = vmatprep.subr.bf16.mxu0 0
        %748 = vmatpush1.bf16.xpose.msra.mxu0 0
        %749 = vmatprep.subr.bf16.mxu0 0
        %750 = vmatpush1.bf16.xpose.msra.mxu0 0
        %751 = vmatprep.subr.bf16.mxu0 0
        %752 = vmatpush1.bf16.xpose.msra.mxu0 0
        %753 = vmatprep.subr.bf16.mxu0 0
        %754 = vmatpush1.bf16.xpose.msra.mxu0 0
        %755 = vmatprep.mubr.bf16.mxu0 0
        %756 = vmatmul.mubr.bf16.gmra.mrb[0].mxu0 %v718
        %v757 = vpop.f32.mrb[0].mxu0
        %v758 = vadd.f32 %v712, %v757
        %v759 = vpop.f32.mrb[0].mxu0
        %v760 = vpop.f32.mrb[0].mxu0
        %v761 = vpop.f32.mrb[0].mxu0
        %762 = vdwg.mxu0
        %v763 = vsel %vm716, %v758, -inf
        %764 = vmax.xlane.f32.xlu0 %v763
        %v765 = vpop.xlane.xlu0 %764
        %v766 = vsub.f32 %v758, %v765
        %v767 = vmul.f32 %v766, 1.442695
        %v768 = vpow.pop %v767
        %v769 = vsel %vm716, %v768, 0.0
        %770 = vadd.xlane.f32.xlu0 %v769
        %v771 = vpop.xlane.xlu0 %770
        %v772 = vrcp.pop %v771
        %v773 = vmul.f32 %v768, %v772
        %774 = vst.msk [vmem:[%s560] sm:$0xff] %vm716, %v773
        %v775 = vpack.c.bf16 %v773, %v773
        %776 = vrot.lane.b32.xlu0 %v697, 112
        %v777 = vpop.permute.xlu0 %776
        %v779 = vsel %vm716, %v775, 0
        %vm781 = vcmask 1043456
        %v783 = vsel %vm781, %v777, 0
        %785 = vmatprep.subr.bf16.mxu0 0
        %786 = vmatpush1.bf16.msra.mxu0 %v783
        %787 = vmatprep.subr.bf16.mxu0 0
        %788 = vmatpush1.bf16.msra.mxu0 0
        %789 = vmatprep.subr.bf16.mxu0 0
        %790 = vmatpush1.bf16.msra.mxu0 0
        %791 = vmatprep.subr.bf16.mxu0 0
        %792 = vmatpush1.bf16.msra.mxu0 0
        %793 = vmatprep.subr.bf16.mxu0 0
        %794 = vmatpush1.bf16.msra.mxu0 0
        %795 = vmatprep.subr.bf16.mxu0 0
        %796 = vmatpush1.bf16.msra.mxu0 0
        %797 = vmatprep.subr.bf16.mxu0 0
        %798 = vmatpush1.bf16.msra.mxu0 0
        %799 = vmatprep.subr.bf16.mxu0 0
        %800 = vmatpush1.bf16.msra.mxu0 0
        %801 = vmatprep.subr.bf16.mxu0 0
        %802 = vmatpush1.bf16.msra.mxu0 0
        %803 = vmatprep.subr.bf16.mxu0 0
        %804 = vmatpush1.bf16.msra.mxu0 0
        %805 = vmatprep.subr.bf16.mxu0 0
        %806 = vmatpush1.bf16.msra.mxu0 0
        %807 = vmatprep.subr.bf16.mxu0 0
        %808 = vmatpush1.bf16.msra.mxu0 0
        %809 = vmatprep.subr.bf16.mxu0 0
        %810 = vmatpush1.bf16.msra.mxu0 0
        %811 = vmatprep.subr.bf16.mxu0 0
        %812 = vmatpush1.bf16.msra.mxu0 0
        %813 = vmatprep.subr.bf16.mxu0 0
        %814 = vmatpush1.bf16.msra.mxu0 0
        %815 = vmatprep.subr.bf16.mxu0 0
        %816 = vmatpush1.bf16.msra.mxu0 0
        %817 = vmatprep.mubr.bf16.mxu0 0
        %818 = vmatmul.mubr.bf16.gmra.mrb[0].mxu0 %v779
        %v819 = vpop.f32.mrb[0].mxu0
        %v820 = vadd.f32 0.0, %v819
        %v821 = vpop.f32.mrb[0].mxu0
        %v822 = vpop.f32.mrb[0].mxu0
        %v823 = vpop.f32.mrb[0].mxu0
        %824 = vdwg.mxu0
        %v825 = vld [vmem:[#allocation3] sm:$0xff]
        %v826 = vpack.c.bf16 %v820, %v820
        %v827 = vld [vmem:[%s579] sm:$0xf]
        %v829 = vsel %vm716, %v826, 0
        %v832 = vsel %vm781, %v827, 0
        %834 = vmatprep.subr.bf16.mxu0 0
        %835 = vmatpush1.bf16.msra.mxu0 %v832
        %836 = vmatprep.subr.bf16.mxu0 0
        %837 = vmatpush1.bf16.msra.mxu0 0
        %838 = vmatprep.subr.bf16.mxu0 0
        %839 = vmatpush1.bf16.msra.mxu0 0
        %840 = vmatprep.subr.bf16.mxu0 0
        %841 = vmatpush1.bf16.msra.mxu0 0
        %842 = vmatprep.subr.bf16.mxu0 0
        %843 = vmatpush1.bf16.msra.mxu0 0
        %844 = vmatprep.subr.bf16.mxu0 0
        %845 = vmatpush1.bf16.msra.mxu0 0
        %846 = vmatprep.subr.bf16.mxu0 0
        %847 = vmatpush1.bf16.msra.mxu0 0
        %848 = vmatprep.subr.bf16.mxu0 0
        %849 = vmatpush1.bf16.msra.mxu0 0
        %850 = vmatprep.subr.bf16.mxu0 0
        %851 = vmatpush1.bf16.msra.mxu0 0
        %852 = vmatprep.subr.bf16.mxu0 0
        %853 = vmatpush1.bf16.msra.mxu0 0
        %854 = vmatprep.subr.bf16.mxu0 0
        %855 = vmatpush1.bf16.msra.mxu0 0
        %856 = vmatprep.subr.bf16.mxu0 0
        %857 = vmatpush1.bf16.msra.mxu0 0
        %858 = vmatprep.subr.bf16.mxu0 0
        %859 = vmatpush1.bf16.msra.mxu0 0
        %860 = vmatprep.subr.bf16.mxu0 0
        %861 = vmatpush1.bf16.msra.mxu0 0
        %862 = vmatprep.subr.bf16.mxu0 0
        %863 = vmatpush1.bf16.msra.mxu0 0
        %864 = vmatprep.subr.bf16.mxu0 0
        %865 = vmatpush1.bf16.msra.mxu0 0
        %866 = vmatprep.mubr.bf16.mxu0 0
        %867 = vmatmul.mubr.bf16.gmra.mrb[0].mxu0 %v829
        %v868 = vpop.f32.mrb[0].mxu0
        %v869 = vadd.f32 0.0, %v868
        %v870 = vpop.f32.mrb[0].mxu0
        %v871 = vpop.f32.mrb[0].mxu0
        %v872 = vpop.f32.mrb[0].mxu0
        %873 = vdwg.mxu0
        %v874 = vadd.f32 %v825, %v869
        %875 = vst.msk [vmem:[#allocation3] sm:$0xff] %vm653, %v874
        %p876 = scmp.eq.s32.totalorder %s38, 3
        // Predicated region
        $region81: #{tpu_custom_call.1} parent=75 // pred_check
          %p877 = pneg %p876
        $region82: #{tpu_custom_call.1} parent=75 // pred_check_branch
          %879 = sbr.rel (%p877) target = $region84
        $region83: #{tpu_custom_call.1} parent=75 // pred_region
          %v880 = vld [vmem:[#allocation3] sm:$0xff]
          %v881 = vld [vmem:[%s8] sm:$0x1]
          %v882 = vld [vmem:[%s9] sm:$0x1]
          %v883 = vsel %vm653, %v880, 0.0
          %884 = vadd.xlane.f32.xlu0 %v883
          %v885 = vpop.xlane.xlu0 %884
          %v886 = vrcp.pop 32.0
          %v887 = vmul.f32 %v885, %v886
          %v888 = vsub.f32 %v880, %v887
          %v889 = vmul.f32 %v888, %v888
          %v890 = vsel %vm653, %v889, 0.0
          %891 = vadd.xlane.f32.xlu0 %v890
          %v892 = vpop.xlane.xlu0 %891
          %v893 = vmul.f32 %v892, %v886
          %v894 = vadd.f32 %v893, 1e-05
          %v895 = vrsqrt.pop %v894
          %v896 = vmul.f32 %v888, %v895
          %v898 = vlaneseq
          %v899 = vshrl.u32 %v898, 7
          %v900 = vsub.s32 0, %v899
          %v901 = vrot.slane %v881, %v900
          %v903 = vmul.f32 %v896, %v901
          %v905 = vlaneseq
          %v906 = vshrl.u32 %v905, 7
          %v907 = vsub.s32 0, %v906
          %v908 = vrot.slane %v882, %v907
          %v910 = vadd.f32 %v903, %v908
          %v911 = vpack.c.bf16 %v910, %v910
          %v912 = vld [vmem:[%s10] sm:$0xf]
          %v913 = vld [vmem:[%s10 + $0x4] sm:$0xf]
          %v914 = vld [vmem:[%s10 + $0x8] sm:$0xf]
          %v915 = vld [vmem:[%s10 + $0xc] sm:$0xf]
          %v916 = vld [vmem:[%s11] sm:$0x1]
          %v918 = vlaneseq
          %v919 = vshrl.u32 %v918, 7
          %v920 = vsub.s32 0, %v919
          %v921 = vrot.slane %v916, %v920
          %v927 = vunpack.c.l.b16 %v912
          %v928 = vunpack.c.l.b16 %v913
          %v929 = vunpack.c.l.b16 %v914
          %v930 = vunpack.c.l.b16 %v915
          %v931 = vpack.c.b16 %v928, %v927
          %v932 = vpack.c.b16 %v930, %v929
          %v936 = vsel %vm653, %v911, 0
          %938 = vmatprep.subr.bf16.mxu0 0
          %939 = vmatpush1.bf16.msra.mxu0 %v931
          %940 = vmatprep.subr.bf16.mxu0 0
          %941 = vmatpush1.bf16.msra.mxu0 %v932
          %942 = vmatprep.subr.bf16.mxu0 0
          %943 = vmatpush1.bf16.msra.mxu0 0
          %944 = vmatprep.subr.bf16.mxu0 0
          %945 = vmatpush1.bf16.msra.mxu0 0
          %946 = vmatprep.subr.bf16.mxu0 0
          %947 = vmatpush1.bf16.msra.mxu0 0
          %948 = vmatprep.subr.bf16.mxu0 0
          %949 = vmatpush1.bf16.msra.mxu0 0
          %950 = vmatprep.subr.bf16.mxu0 0
          %951 = vmatpush1.bf16.msra.mxu0 0
          %952 = vmatprep.subr.bf16.mxu0 0
          %953 = vmatpush1.bf16.msra.mxu0 0
          %954 = vmatprep.subr.bf16.mxu0 0
          %955 = vmatpush1.bf16.msra.mxu0 0
          %956 = vmatprep.subr.bf16.mxu0 0
          %957 = vmatpush1.bf16.msra.mxu0 0
          %958 = vmatprep.subr.bf16.mxu0 0
          %959 = vmatpush1.bf16.msra.mxu0 0
          %960 = vmatprep.subr.bf16.mxu0 0
          %961 = vmatpush1.bf16.msra.mxu0 0
          %962 = vmatprep.subr.bf16.mxu0 0
          %963 = vmatpush1.bf16.msra.mxu0 0
          %964 = vmatprep.subr.bf16.mxu0 0
          %965 = vmatpush1.bf16.msra.mxu0 0
          %966 = vmatprep.subr.bf16.mxu0 0
          %967 = vmatpush1.bf16.msra.mxu0 0
          %968 = vmatprep.subr.bf16.mxu0 0
          %969 = vmatpush1.bf16.msra.mxu0 0
          %970 = vmatprep.mubr.bf16.mxu0 0
          %971 = vmatmul.mubr.bf16.gmra.mrb[0].mxu0 %v936
          %v972 = vpop.f32.mrb[0].mxu0
          %v973 = vadd.f32 %v921, %v972
          %v974 = vpop.f32.mrb[0].mxu0
          %v975 = vpop.f32.mrb[0].mxu0
          %v976 = vpop.f32.mrb[0].mxu0
          %977 = vdwg.mxu0
          %v978 = vmul.f32 %v973, 0.5
          %v979 = vmul.f32 %v973, 0.044715
          %v980 = vmul.f32 %v979, %v973
          %v981 = vmul.f32 %v980, %v973
          %v982 = vadd.f32 %v973, %v981
          %v983 = vmul.f32 %v982, 0.7978846
          %v984 = vtanh.pop %v983
          %v985 = vadd.f32 %v984, 1.0
          %v986 = vmul.f32 %v978, %v985
          %v987 = vpack.c.bf16 %v986, %v986
          %v988 = vld [vmem:[%s12] sm:$0xf]
          %v989 = vld [vmem:[%s12 + $0x4] sm:$0xf]
          %v990 = vld [vmem:[%s12 + $0x8] sm:$0xf]
          %v991 = vld [vmem:[%s12 + $0xc] sm:$0xf]
          %v992 = vld [vmem:[%s12 + $0x10] sm:$0xf]
          %v993 = vld [vmem:[%s12 + $0x14] sm:$0xf]
          %v994 = vld [vmem:[%s12 + $0x18] sm:$0xf]
          %v995 = vld [vmem:[%s12 + $0x1c] sm:$0xf]
          %v996 = vld [vmem:[%s12 + $0x20] sm:$0xf]
          %v997 = vld [vmem:[%s12 + $0x24] sm:$0xf]
          %v998 = vld [vmem:[%s12 + $0x28] sm:$0xf]
          %v999 = vld [vmem:[%s12 + $0x2c] sm:$0xf]
          %v1000 = vld [vmem:[%s12 + $0x30] sm:$0xf]
          %v1001 = vld [vmem:[%s12 + $0x34] sm:$0xf]
          %v1002 = vld [vmem:[%s12 + $0x38] sm:$0xf]
          %v1003 = vld [vmem:[%s12 + $0x3c] sm:$0xf]
          %v1004 = vld [vmem:[%s13] sm:$0x1]
          %v1006 = vlaneseq
          %v1007 = vshrl.u32 %v1006, 7
          %v1008 = vsub.s32 0, %v1007
          %v1009 = vrot.slane %v1004, %v1008
          %v1027 = vunpack.c.l.b16 %v988
          %v1028 = vunpack.c.l.b16 %v989
          %v1029 = vunpack.c.l.b16 %v990
          %v1030 = vunpack.c.l.b16 %v991
          %v1031 = vunpack.c.l.b16 %v992
          %v1032 = vunpack.c.l.b16 %v993
          %v1033 = vunpack.c.l.b16 %v994
          %v1034 = vunpack.c.l.b16 %v995
          %v1035 = vunpack.c.l.b16 %v996
          %v1036 = vunpack.c.l.b16 %v997
          %v1037 = vunpack.c.l.b16 %v998
          %v1038 = vunpack.c.l.b16 %v999
          %v1039 = vunpack.c.l.b16 %v1000
          %v1040 = vunpack.c.l.b16 %v1001
          %v1041 = vunpack.c.l.b16 %v1002
          %v1042 = vunpack.c.l.b16 %v1003
          %v1043 = vpack.c.b16 %v1028, %v1027
          %v1044 = vpack.c.b16 %v1030, %v1029
          %v1045 = vpack.c.b16 %v1032, %v1031
          %v1046 = vpack.c.b16 %v1034, %v1033
          %v1047 = vpack.c.b16 %v1036, %v1035
          %v1048 = vpack.c.b16 %v1038, %v1037
          %v1049 = vpack.c.b16 %v1040, %v1039
          %v1050 = vpack.c.b16 %v1042, %v1041
          %1059 = vmatprep.subr.bf16.mxu0 0
          %1060 = vmatpush1.bf16.msra.mxu0 %v1043
          %1061 = vmatprep.subr.bf16.mxu0 0
          %1062 = vmatpush1.bf16.msra.mxu0 %v1044
          %1063 = vmatprep.subr.bf16.mxu0 0
          %1064 = vmatpush1.bf16.msra.mxu0 %v1045
          %1065 = vmatprep.subr.bf16.mxu0 0
          %1066 = vmatpush1.bf16.msra.mxu0 %v1046
          %1067 = vmatprep.subr.bf16.mxu0 0
          %1068 = vmatpush1.bf16.msra.mxu0 %v1047
          %1069 = vmatprep.subr.bf16.mxu0 0
          %1070 = vmatpush1.bf16.msra.mxu0 %v1048
          %1071 = vmatprep.subr.bf16.mxu0 0
          %1072 = vmatpush1.bf16.msra.mxu0 %v1049
          %1073 = vmatprep.subr.bf16.mxu0 0
          %1074 = vmatpush1.bf16.msra.mxu0 %v1050
          %1075 = vmatprep.subr.bf16.mxu0 0
          %1076 = vmatpush1.bf16.msra.mxu0 0
          %1077 = vmatprep.subr.bf16.mxu0 0
          %1078 = vmatpush1.bf16.msra.mxu0 0
          %1079 = vmatprep.subr.bf16.mxu0 0
          %1080 = vmatpush1.bf16.msra.mxu0 0
          %1081 = vmatprep.subr.bf16.mxu0 0
          %1082 = vmatpush1.bf16.msra.mxu0 0
          %1083 = vmatprep.subr.bf16.mxu0 0
          %1084 = vmatpush1.bf16.msra.mxu0 0
          %1085 = vmatprep.subr.bf16.mxu0 0
          %1086 = vmatpush1.bf16.msra.mxu0 0
          %1087 = vmatprep.subr.bf16.mxu0 0
          %1088 = vmatpush1.bf16.msra.mxu0 0
          %1089 = vmatprep.subr.bf16.mxu0 0
          %1090 = vmatpush1.bf16.msra.mxu0 0
          %1091 = vmatprep.mubr.bf16.mxu0 0
          %1092 = vmatmul.mubr.bf16.gmra.mrb[0].mxu0 %v987
          %v1093 = vpop.f32.mrb[0].mxu0
          %v1094 = vadd.f32 %v1009, %v1093
          %v1095 = vpop.f32.mrb[0].mxu0
          %v1096 = vpop.f32.mrb[0].mxu0
          %v1097 = vpop.f32.mrb[0].mxu0
          %1098 = vdwg.mxu0
          %v1099 = vadd.f32 %v880, %v1094
          %1100 = vst.msk [vmem:[%s553] sm:$0xff] %vm653, %v1099
        $region84: #{tpu_custom_call.1} parent=75 // pred_fallthru
          _
        %s1101 = sand.u32 %s372, 1
        %s1102 = scalar_lea.sflag [#allocation5], %s1101
        %s1103 = sand.u32 %s372, 1
        %s1104 = smul.addr %s1103, 8
        %s1105 = scalar_lea.vmem [#allocation4], %s1104
        %s1106 = sand.u32 %s400, 1
        %s1107 = scalar_lea.sflag [#allocation7], %s1106
        %s1108 = sand.u32 %s400, 1
        %s1109 = smul.addr %s1108, 8
        %s1110 = scalar_lea.vmem [#allocation6], %s1109
        // Predicated region
        $region85: #{tpu_custom_call.1} parent=75 // pred_check
          %p1111 = pneg %p382
        $region86: #{tpu_custom_call.1} parent=75 // pred_check_branch
          %1113 = sbr.rel (%p1111) target = $region88
        $region87: #{tpu_custom_call.1} parent=75 // pred_region
          %s1115 = ssub.s32 128, 128
          %1116 = vsyncadd %s1102, %s1115
          %s1117 = smul.addr %s37, 128
          %s1118 = scalar_lea.hbm %s14, %s1117
          %s1120 = sshll.u32 %s1105, 4
          %s1121 = int_to_ptr.vmem [resolvable:$true] %s1120
          %1123 = dma.vmem_to_hbm [thread:$0]  %s1121, 128, %s1118, %s1102
        $region88: #{tpu_custom_call.1} parent=75 // pred_fallthru
          _
        // Predicated region
        $region89: #{tpu_custom_call.1} parent=75 // pred_check
          %p1124 = pneg %p410
        $region90: #{tpu_custom_call.1} parent=75 // pred_check_branch
          %1126 = sbr.rel (%p1124) target = $region92
        $region91: #{tpu_custom_call.1} parent=75 // pred_region
          %s1128 = ssub.s32 128, 128
          %1129 = vsyncadd %s1107, %s1128
          %s1130 = smul.addr %s37, 4
          %s1131 = sadd.s32 %s38, %s1130
          %s1132 = smul.addr %s1131, 128
          %s1133 = scalar_lea.hbm %s15, %s1132
          %s1135 = sshll.u32 %s1110, 4
          %s1136 = int_to_ptr.vmem [resolvable:$true] %s1135
          %1138 = dma.vmem_to_hbm [thread:$0]  %s1136, 128, %s1133, %s1107
        $region92: #{tpu_custom_call.1} parent=75 // pred_fallthru
          _
      $region76: #{tpu_custom_call.1} parent=5 // pred_fallthru
        _
      %p1139 = scmp.le.s32.totalorder 2, %s28
      // Predicated region
      $region93: #{tpu_custom_call.1} parent=5 // pred_check
        %p1140 = pneg %p1139
      $region94: #{tpu_custom_call.1} parent=5 // pred_check_branch
        %1142 = sbr.rel (%p1140) target = $region96
      $region95: #{tpu_custom_call.1} parent=5 // pred_region
        %s1143 = ssub.s32 %s28, 2
        // Predicated region
        $region97: #{tpu_custom_call.1} parent=95 // pred_check
          %p1144 = pneg %p388
        $region98: #{tpu_custom_call.1} parent=95 // pred_check_branch
          %1146 = sbr.rel (%p1144) target = $region100
        $region99: #{tpu_custom_call.1} parent=95 // pred_region
          %s1147 = sand.u32 %s373, 1
          %s1148 = scalar_lea.sflag [#allocation5], %s1147
          %s1149 = sand.u32 %s373, 1
          %s1150 = smul.addr %s1149, 8
          %s1151 = scalar_lea.vmem [#allocation4], %s1150
          %1152 = dma.done %s1148, 128
        $region100: #{tpu_custom_call.1} parent=95 // pred_fallthru
          _
        // Predicated region
        $region101: #{tpu_custom_call.1} parent=95 // pred_check
          %p1153 = pneg %p416
        $region102: #{tpu_custom_call.1} parent=95 // pred_check_branch
          %1155 = sbr.rel (%p1153) target = $region104
        $region103: #{tpu_custom_call.1} parent=95 // pred_region
          %s1156 = sand.u32 %s401, 1
          %s1157 = scalar_lea.sflag [#allocation7], %s1156
          %s1158 = sand.u32 %s401, 1
          %s1159 = smul.addr %s1158, 8
          %s1160 = scalar_lea.vmem [#allocation6], %s1159
          %1161 = dma.done %s1157, 128
        $region104: #{tpu_custom_call.1} parent=95 // pred_fallthru
          _
      $region96: #{tpu_custom_call.1} parent=5 // pred_fallthru
        _
    $region6: #{tpu_custom_call.1} parent=1 // loop_footer
      %s32 = sadd.s32 1, %s28
    $region7: #{tpu_custom_call.1} parent=1 // loop_footer_branch
      %27 = sbr.rel target = $region3
    $region8: #{tpu_custom_call.1} parent=1 // loop_exit
      _
    %1162 = vsyncpa [#allocation5], 1
    %s1163 = scalar_lea.sflag [#allocation5], 1
    %1164 = vsyncpa %s1163, 1
    %1165 = vsyncpa [#allocation7], 1
    %s1166 = scalar_lea.sflag [#allocation7], 1
    %1167 = vsyncpa %s1166, 1

// kernel: tpu_custom_call.1
$region0: #{tpu_custom_call.1}
  #allocation0 [shape = 'u32[]', space=smem, size = 0x4, offset = 0x4, fixed_abs, tag = 'smem constant byte address 0x4 - core index']
  #allocation1 [shape = 'u32[144,128]{1,0:T(1,128)}', space=vmem, size = 0x12000, scoped, tag = 'internal scratch']
  #allocation2 [shape = 'bf16[8,32]{1,0:T(8,128)(2,1)}', space=vmem, size = 0x800, scoped, tag = 'scratch operand']
  #allocation3 [shape = 'f32[8,32]{1,0:T(8,128)}', space=vmem, size = 0x1000, scoped, tag = 'scratch operand']
  %s0 = inlined_call_operand.vmem [shape: f32[2,8,32], index: 0, kind: input, shape index: {}]
  %s1 = inlined_call_operand.vmem [shape: f32[2,1,8], index: 1, kind: input, shape index: {}]
  %s2 = inlined_call_operand.vmem [shape: f32[1,32], index: 2, kind: input, shape index: {}]
  %s3 = inlined_call_operand.vmem [shape: f32[1,32], index: 3, kind: input, shape index: {}]
  %s4 = inlined_call_operand.vmem [shape: bf16[4,32,24], index: 4, kind: input, shape index: {}]
  %s5 = inlined_call_operand.vmem [shape: f32[4,1,24], index: 5, kind: input, shape index: {}]
  %s6 = inlined_call_operand.vmem [shape: bf16[4,8,32], index: 6, kind: input, shape index: {}]
  %s7 = inlined_call_operand.vmem [shape: f32[1,32], index: 7, kind: input, shape index: {}]
  %s8 = inlined_call_operand.vmem [shape: f32[1,32], index: 8, kind: input, shape index: {}]
  %s9 = inlined_call_operand.vmem [shape: f32[1,32], index: 9, kind: input, shape index: {}]
  %s10 = inlined_call_operand.vmem [shape: bf16[32,128], index: 10, kind: input, shape index: {}]
  %s11 = inlined_call_operand.vmem [shape: f32[1,128], index: 11, kind: input, shape index: {}]
  %s12 = inlined_call_operand.vmem [shape: bf16[128,32], index: 12, kind: input, shape index: {}]
  %s13 = inlined_call_operand.vmem [shape: f32[1,32], index: 13, kind: input, shape index: {}]
  %s14 = inlined_call_operand.hbm [shape: f32[2,8,32], index: 14, kind: output, shape index: {0}]
  %s15 = inlined_call_operand.hbm [shape: f32[2,4,8,8], index: 15, kind: output, shape index: {1}]
  %16 = xla_tuple %s14, %s15
  %s17 = sld [smem:[#allocation0]]
  $region105: #{tpu_custom_call.1} parent=0
    _
  %s19 = ssub.s32 1, %s17
  %s20 = scalar_select 0, %s19, %s17
  $region1: #{tpu_custom_call.1} parent=0
    #allocation4 [shape = 'u8[8192]{0}', space=vmem, size = 0x2000, scoped, tag = 'output window, operand 0']
    #allocation5 [shape = 's32[2]{0}', space=sflag, size = 0x8, scoped, tag = 'scoped memory for tpu_custom_call.1']
    #allocation6 [shape = 'u8[8192]{0}', space=vmem, size = 0x2000, scoped, tag = 'output window, operand 1']
    #allocation7 [shape = 's32[2]{0}', space=sflag, size = 0x8, scoped, tag = 'scoped memory for tpu_custom_call.1']
    %21 = vsyncpa [#allocation5], 0
    %s22 = scalar_lea.sflag [#allocation5], 1
    %23 = vsyncpa %s22, 0
    %24 = vsyncpa [#allocation7], 0
    %s25 = scalar_lea.sflag [#allocation7], 1
    %26 = vsyncpa %s25, 0
    loop: start=0, step=1, limit=10
    $region2: #{tpu_custom_call.1} parent=1 // loop_pre_header
      _
    $region3: #{tpu_custom_call.1} parent=1 // loop_header
      %s28 = sphi 0, %s32
      %p29 = scmp.ge.s32.totalorder %s28, 10
      %s35 = sphi 0, %s47
      %s36 = sphi 0, %s43
      %s37 = sphi 0, %s35
      %s38 = sphi 0, %s36
      %s39 = sphi 0, %s37
      %s40 = sphi 0, %s38
      %s50 = sphi 0, %s52
      %s53 = sphi 0, %s50
      %s54 = sphi 0, %s53
      %s70 = sphi 0, %s54
      %s76 = sphi 0, %s78
      %s79 = sphi 0, %s76
      %s80 = sphi 0, %s79
      %s96 = sphi 0, %s80
      %s100 = sphi 0, %s100
      %s102 = sphi 0, %s100
      %s103 = sphi 0, %s102
      %s117 = sphi 0, %s103
      %s121 = sphi 0, %s121
      %s123 = sphi 0, %s121
      %s124 = sphi 0, %s123
      %s138 = sphi 0, %s124
      %s144 = sphi 0, %s146
      %s147 = sphi 0, %s144
      %s148 = sphi 0, %s147
      %s164 = sphi 0, %s148
      %s170 = sphi 0, %s172
      %s173 = sphi 0, %s170
      %s174 = sphi 0, %s173
      %s190 = sphi 0, %s174
      %s196 = sphi 0, %s198
      %s199 = sphi 0, %s196
      %s200 = sphi 0, %s199
      %s216 = sphi 0, %s200
      %s220 = sphi 0, %s220
      %s222 = sphi 0, %s220
      %s223 = sphi 0, %s222
      %s237 = sphi 0, %s223
      %s241 = sphi 0, %s241
      %s243 = sphi 0, %s241
      %s244 = sphi 0, %s243
      %s258 = sphi 0, %s244
      %s262 = sphi 0, %s262
      %s264 = sphi 0, %s262
      %s265 = sphi 0, %s264
      %s279 = sphi 0, %s265
      %s283 = sphi 0, %s283
      %s285 = sphi 0, %s283
      %s286 = sphi 0, %s285
      %s300 = sphi 0, %s286
      %s304 = sphi 0, %s304
      %s306 = sphi 0, %s304
      %s307 = sphi 0, %s306
      %s321 = sphi 0, %s307
      %s325 = sphi 0, %s325
      %s327 = sphi 0, %s325
      %s328 = sphi 0, %s327
      %s342 = sphi 0, %s328
      %s346 = sphi 0, %s346
      %s348 = sphi 0, %s346
      %s349 = sphi 0, %s348
      %s363 = sphi 0, %s349
      %s369 = sphi 0, %s371
      %s372 = sphi 0, %s369
      %s373 = sphi 0, %s372
      %s389 = sphi 0, %s373
      %s397 = sphi 0, %s399
      %s400 = sphi 0, %s397
      %s401 = sphi 0, %s400
      %s417 = sphi 0, %s401
    $region4: #{tpu_custom_call.1} parent=1 // loop_header_branch
      %31 = sbr.rel (%p29) target = $region8
    $region5: #{tpu_custom_call.1} parent=1 // loop_body
      %s33 = ssub.s32 %s28, 1
      %s34 = ssub.s32 %s28, 2
      %s41 = sadd.s32 1, %s36
      %p42 = scmp.ge.s32.totalorder %s41, 4
      %s43 = scalar_select %p42, 0, %s41
      %s44 = sadd.s32 1, %s35
      %s45 = scalar_select %p42, %s44, %s35
      %p46 = scmp.ge.s32.totalorder %s45, 2
      %s47 = scalar_select %p46, 0, %s45
      %s48 = ssub.s32 %s35, %s47
      %p49 = scmp.eq.s32.totalorder %s48, 0
      %s51 = sadd.s32 %s50, 1
      %s52 = scalar_select %p49, %s50, %s51
      %p55 = pneg %p49
      %p56 = scmp.eq.s32.totalorder %s28, 7
      %p57 = por %p55, %p56
      %p58 = scmp.ne.s32.totalorder %s50, %s53
      %p59 = scmp.eq.s32.totalorder %s28, 0
      %p60 = por %p58, %p59
      %p61 = scmp.ne.s32.totalorder %s50, %s53
      %p62 = scmp.eq.s32.totalorder %s33, 7
      %p63 = por %p61, %p62
      %p64 = scmp.ne.s32.totalorder %s53, %s54
      %p65 = scmp.eq.s32.totalorder %s33, 0
      %p66 = por %p64, %p65
      %p67 = scmp.ne.s32.totalorder %s53, %s54
      %p68 = scmp.eq.s32.totalorder %s34, 7
      %p69 = por %p67, %p68
      %p71 = scmp.ne.s32.totalorder %s54, %s70
      %p72 = scmp.eq.s32.totalorder %s34, 0
      %p73 = por %p71, %p72
      %s74 = ssub.s32 %s35, %s47
      %p75 = scmp.eq.s32.totalorder %s74, 0
      %s77 = sadd.s32 %s76, 1
      %s78 = scalar_select %p75, %s76, %s77
      %p81 = pneg %p75
      %p82 = scmp.eq.s32.totalorder %s28, 7
      %p83 = por %p81, %p82
      %p84 = scmp.ne.s32.totalorder %s76, %s79
      %p85 = scmp.eq.s32.totalorder %s28, 0
      %p86 = por %p84, %p85
      %p87 = scmp.ne.s32.totalorder %s76, %s79
      %p88 = scmp.eq.s32.totalorder %s33, 7
      %p89 = por %p87, %p88
      %p90 = scmp.ne.s32.totalorder %s79, %s80
      %p91 = scmp.eq.s32.totalorder %s33, 0
      %p92 = por %p90, %p91
      %p93 = scmp.ne.s32.totalorder %s79, %s80
      %p94 = scmp.eq.s32.totalorder %s34, 7
      %p95 = por %p93, %p94
      %p97 = scmp.ne.s32.totalorder %s80, %s96
      %p98 = scmp.eq.s32.totalorder %s34, 0
      %p99 = por %p97, %p98
      %s101 = sadd.s32 %s100, 1
      %p104 = scmp.eq.s32.totalorder %s28, 7
      %p105 = scmp.ne.s32.totalorder %s100, %s102
      %p106 = scmp.eq.s32.totalorder %s28, 0
      %p107 = por %p105, %p106
      %p108 = scmp.ne.s32.totalorder %s100, %s102
      %p109 = scmp.eq.s32.totalorder %s33, 7
      %p110 = por %p108, %p109
      %p111 = scmp.ne.s32.totalorder %s102, %s103
      %p112 = scmp.eq.s32.totalorder %s33, 0
      %p113 = por %p111, %p112
      %p114 = scmp.ne.s32.totalorder %s102, %s103
      %p115 = scmp.eq.s32.totalorder %s34, 7
      %p116 = por %p114, %p115
      %p118 = scmp.ne.s32.totalorder %s103, %s117
      %p119 = scmp.eq.s32.totalorder %s34, 0
      %p120 = por %p118, %p119
      %s122 = sadd.s32 %s121, 1
      %p125 = scmp.eq.s32.totalorder %s28, 7
      %p126 = scmp.ne.s32.totalorder %s121, %s123
      %p127 = scmp.eq.s32.totalorder %s28, 0
      %p128 = por %p126, %p127
      %p129 = scmp.ne.s32.totalorder %s121, %s123
      %p130 = scmp.eq.s32.totalorder %s33, 7
      %p131 = por %p129, %p130
      %p132 = scmp.ne.s32.totalorder %s123, %s124
      %p133 = scmp.eq.s32.totalorder %s33, 0
      %p134 = por %p132, %p133
      %p135 = scmp.ne.s32.totalorder %s123, %s124
      %p136 = scmp.eq.s32.totalorder %s34, 7
      %p137 = por %p135, %p136
      %p139 = scmp.ne.s32.totalorder %s124, %s138
      %p140 = scmp.eq.s32.totalorder %s34, 0
      %p141 = por %p139, %p140
      %s142 = ssub.s32 %s36, %s43
      %p143 = scmp.eq.s32.totalorder %s142, 0
      %s145 = sadd.s32 %s144, 1
      %s146 = scalar_select %p143, %s144, %s145
      %p149 = pneg %p143
      %p150 = scmp.eq.s32.totalorder %s28, 7
      %p151 = por %p149, %p150
      %p152 = scmp.ne.s32.totalorder %s144, %s147
      %p153 = scmp.eq.s32.totalorder %s28, 0
      %p154 = por %p152, %p153
      %p155 = scmp.ne.s32.totalorder %s144, %s147
      %p156 = scmp.eq.s32.totalorder %s33, 7
      %p157 = por %p155, %p156
      %p158 = scmp.ne.s32.totalorder %s147, %s148
      %p159 = scmp.eq.s32.totalorder %s33, 0
      %p160 = por %p158, %p159
      %p161 = scmp.ne.s32.totalorder %s147, %s148
      %p162 = scmp.eq.s32.totalorder %s34, 7
      %p163 = por %p161, %p162
      %p165 = scmp.ne.s32.totalorder %s148, %s164
      %p166 = scmp.eq.s32.totalorder %s34, 0
      %p167 = por %p165, %p166
      %s168 = ssub.s32 %s36, %s43
      %p169 = scmp.eq.s32.totalorder %s168, 0
      %s171 = sadd.s32 %s170, 1
      %s172 = scalar_select %p169, %s170, %s171
      %p175 = pneg %p169
      %p176 = scmp.eq.s32.totalorder %s28, 7
      %p177 = por %p175, %p176
      %p178 = scmp.ne.s32.totalorder %s170, %s173
      %p179 = scmp.eq.s32.totalorder %s28, 0
      %p180 = por %p178, %p179
      %p181 = scmp.ne.s32.totalorder %s170, %s173
      %p182 = scmp.eq.s32.totalorder %s33, 7
      %p183 = por %p181, %p182
      %p184 = scmp.ne.s32.totalorder %s173, %s174
      %p185 = scmp.eq.s32.totalorder %s33, 0
      %p186 = por %p184, %p185
      %p187 = scmp.ne.s32.totalorder %s173, %s174
      %p188 = scmp.eq.s32.totalorder %s34, 7
      %p189 = por %p187, %p188
      %p191 = scmp.ne.s32.totalorder %s174, %s190
      %p192 = scmp.eq.s32.totalorder %s34, 0
      %p193 = por %p191, %p192
      %s194 = ssub.s32 %s36, %s43
      %p195 = scmp.eq.s32.totalorder %s194, 0
      %s197 = sadd.s32 %s196, 1
      %s198 = scalar_select %p195, %s196, %s197
      %p201 = pneg %p195
      %p202 = scmp.eq.s32.totalorder %s28, 7
      %p203 = por %p201, %p202
      %p204 = scmp.ne.s32.totalorder %s196, %s199
      %p205 = scmp.eq.s32.totalorder %s28, 0
      %p206 = por %p204, %p205
      %p207 = scmp.ne.s32.totalorder %s196, %s199
      %p208 = scmp.eq.s32.totalorder %s33, 7
      %p209 = por %p207, %p208
      %p210 = scmp.ne.s32.totalorder %s199, %s200
      %p211 = scmp.eq.s32.totalorder %s33, 0
      %p212 = por %p210, %p211
      %p213 = scmp.ne.s32.totalorder %s199, %s200
      %p214 = scmp.eq.s32.totalorder %s34, 7
      %p215 = por %p213, %p214
      %p217 = scmp.ne.s32.totalorder %s200, %s216
      %p218 = scmp.eq.s32.totalorder %s34, 0
      %p219 = por %p217, %p218
      %s221 = sadd.s32 %s220, 1
      %p224 = scmp.eq.s32.totalorder %s28, 7
      %p225 = scmp.ne.s32.totalorder %s220, %s222
      %p226 = scmp.eq.s32.totalorder %s28, 0
      %p227 = por %p225, %p226
      %p228 = scmp.ne.s32.totalorder %s220, %s222
      %p229 = scmp.eq.s32.totalorder %s33, 7
      %p230 = por %p228, %p229
      %p231 = scmp.ne.s32.totalorder %s222, %s223
      %p232 = scmp.eq.s32.totalorder %s33, 0
      %p233 = por %p231, %p232
      %p234 = scmp.ne.s32.totalorder %s222, %s223
      %p235 = scmp.eq.s32.totalorder %s34, 7
      %p236 = por %p234, %p235
      %p238 = scmp.ne.s32.totalorder %s223, %s237
      %p239 = scmp.eq.s32.totalorder %s34, 0
      %p240 = por %p238, %p239
      %s242 = sadd.s32 %s241, 1
      %p245 = scmp.eq.s32.totalorder %s28, 7
      %p246 = scmp.ne.s32.totalorder %s241, %s243
      %p247 = scmp.eq.s32.totalorder %s28, 0
      %p248 = por %p246, %p247
      %p249 = scmp.ne.s32.totalorder %s241, %s243
      %p250 = scmp.eq.s32.totalorder %s33, 7
      %p251 = por %p249, %p250
      %p252 = scmp.ne.s32.totalorder %s243, %s244
      %p253 = scmp.eq.s32.totalorder %s33, 0
      %p254 = por %p252, %p253
      %p255 = scmp.ne.s32.totalorder %s243, %s244
      %p256 = scmp.eq.s32.totalorder %s34, 7
      %p257 = por %p255, %p256
      %p259 = scmp.ne.s32.totalorder %s244, %s258
      %p260 = scmp.eq.s32.totalorder %s34, 0
      %p261 = por %p259, %p260
      %s263 = sadd.s32 %s262, 1
      %p266 = scmp.eq.s32.totalorder %s28, 7
      %p267 = scmp.ne.s32.totalorder %s262, %s264
      %p268 = scmp.eq.s32.totalorder %s28, 0
      %p269 = por %p267, %p268
      %p270 = scmp.ne.s32.totalorder %s262, %s264
      %p271 = scmp.eq.s32.totalorder %s33, 7
      %p272 = por %p270, %p271
      %p273 = scmp.ne.s32.totalorder %s264, %s265
      %p274 = scmp.eq.s32.totalorder %s33, 0
      %p275 = por %p273, %p274
      %p276 = scmp.ne.s32.totalorder %s264, %s265
      %p277 = scmp.eq.s32.totalorder %s34, 7
      %p278 = por %p276, %p277
      %p280 = scmp.ne.s32.totalorder %s265, %s279
      %p281 = scmp.eq.s32.totalorder %s34, 0
      %p282 = por %p280, %p281
      %s284 = sadd.s32 %s283, 1
      %p287 = scmp.eq.s32.totalorder %s28, 7
      %p288 = scmp.ne.s32.totalorder %s283, %s285
      %p289 = scmp.eq.s32.totalorder %s28, 0
      %p290 = por %p288, %p289
      %p291 = scmp.ne.s32.totalorder %s283, %s285
      %p292 = scmp.eq.s32.totalorder %s33, 7
      %p293 = por %p291, %p292
      %p294 = scmp.ne.s32.totalorder %s285, %s286
      %p295 = scmp.eq.s32.totalorder %s33, 0
      %p296 = por %p294, %p295
      %p297 = scmp.ne.s32.totalorder %s285, %s286
      %p298 = scmp.eq.s32.totalorder %s34, 7
      %p299 = por %p297, %p298
      %p301 = scmp.ne.s32.totalorder %s286, %s300
      %p302 = scmp.eq.s32.totalorder %s34, 0
      %p303 = por %p301, %p302
      %s305 = sadd.s32 %s304, 1
      %p308 = scmp.eq.s32.totalorder %s28, 7
      %p309 = scmp.ne.s32.totalorder %s304, %s306
      %p310 = scmp.eq.s32.totalorder %s28, 0
      %p311 = por %p309, %p310
      %p312 = scmp.ne.s32.totalorder %s304, %s306
      %p313 = scmp.eq.s32.totalorder %s33, 7
      %p314 = por %p312, %p313
      %p315 = scmp.ne.s32.totalorder %s306, %s307
      %p316 = scmp.eq.s32.totalorder %s33, 0
      %p317 = por %p315, %p316
      %p318 = scmp.ne.s32.totalorder %s306, %s307
      %p319 = scmp.eq.s32.totalorder %s34, 7
      %p320 = por %p318, %p319
      %p322 = scmp.ne.s32.totalorder %s307, %s321
      %p323 = scmp.eq.s32.totalorder %s34, 0
      %p324 = por %p322, %p323
      %s326 = sadd.s32 %s325, 1
      %p329 = scmp.eq.s32.totalorder %s28, 7
      %p330 = scmp.ne.s32.totalorder %s325, %s327
      %p331 = scmp.eq.s32.totalorder %s28, 0
      %p332 = por %p330, %p331
      %p333 = scmp.ne.s32.totalorder %s325, %s327
      %p334 = scmp.eq.s32.totalorder %s33, 7
      %p335 = por %p333, %p334
      %p336 = scmp.ne.s32.totalorder %s327, %s328
      %p337 = scmp.eq.s32.totalorder %s33, 0
      %p338 = por %p336, %p337
      %p339 = scmp.ne.s32.totalorder %s327, %s328
      %p340 = scmp.eq.s32.totalorder %s34, 7
      %p341 = por %p339, %p340
      %p343 = scmp.ne.s32.totalorder %s328, %s342
      %p344 = scmp.eq.s32.totalorder %s34, 0
      %p345 = por %p343, %p344
      %s347 = sadd.s32 %s346, 1
      %p350 = scmp.eq.s32.totalorder %s28, 7
      %p351 = scmp.ne.s32.totalorder %s346, %s348
      %p352 = scmp.eq.s32.totalorder %s28, 0
      %p353 = por %p351, %p352
      %p354 = scmp.ne.s32.totalorder %s346, %s348
      %p355 = scmp.eq.s32.totalorder %s33, 7
      %p356 = por %p354, %p355
      %p357 = scmp.ne.s32.totalorder %s348, %s349
      %p358 = scmp.eq.s32.totalorder %s33, 0
      %p359 = por %p357, %p358
      %p360 = scmp.ne.s32.totalorder %s348, %s349
      %p361 = scmp.eq.s32.totalorder %s34, 7
      %p362 = por %p360, %p361
      %p364 = scmp.ne.s32.totalorder %s349, %s363
      %p365 = scmp.eq.s32.totalorder %s34, 0
      %p366 = por %p364, %p365
      %s367 = ssub.s32 %s35, %s47
      %p368 = scmp.eq.s32.totalorder %s367, 0
      %s370 = sadd.s32 %s369, 1
      %s371 = scalar_select %p368, %s369, %s370
      %p374 = pneg %p368
      %p375 = scmp.eq.s32.totalorder %s28, 7
      %p376 = por %p374, %p375
      %p377 = scmp.ne.s32.totalorder %s369, %s372
      %p378 = scmp.eq.s32.totalorder %s28, 0
      %p379 = por %p377, %p378
      %p380 = scmp.ne.s32.totalorder %s369, %s372
      %p381 = scmp.eq.s32.totalorder %s33, 7
      %p382 = por %p380, %p381
      %p383 = scmp.ne.s32.totalorder %s372, %s373
      %p384 = scmp.eq.s32.totalorder %s33, 0
      %p385 = por %p383, %p384
      %p386 = scmp.ne.s32.totalorder %s372, %s373
      %p387 = scmp.eq.s32.totalorder %s34, 7
      %p388 = por %p386, %p387
      %p390 = scmp.ne.s32.totalorder %s373, %s389
      %p391 = scmp.eq.s32.totalorder %s34, 0
      %p392 = por %p390, %p391
      %s393 = ssub.s32 %s35, %s47
      %s394 = ssub.s32 %s36, %s43
      %s395 = sor.u32 %s393, %s394
      %p396 = scmp.eq.s32.totalorder %s395, 0
      %s398 = sadd.s32 %s397, 1
      %s399 = scalar_select %p396, %s397, %s398
      %p402 = pneg %p396
      %p403 = scmp.eq.s32.totalorder %s28, 7
      %p404 = por %p402, %p403
      %p405 = scmp.ne.s32.totalorder %s397, %s400
      %p406 = scmp.eq.s32.totalorder %s28, 0
      %p407 = por %p405, %p406
      %p408 = scmp.ne.s32.totalorder %s397, %s400
      %p409 = scmp.eq.s32.totalorder %s33, 7
      %p410 = por %p408, %p409
      %p411 = scmp.ne.s32.totalorder %s400, %s401
      %p412 = scmp.eq.s32.totalorder %s33, 0
      %p413 = por %p411, %p412
      %p414 = scmp.ne.s32.totalorder %s400, %s401
      %p415 = scmp.eq.s32.totalorder %s34, 7
      %p416 = por %p414, %p415
      %p418 = scmp.ne.s32.totalorder %s401, %s417
      %p419 = scmp.eq.s32.totalorder %s34, 0
      %p420 = por %p418, %p419
      %p421 = scmp.le.s32.totalorder 1, %s28
      %p422 = scmp.lt.s32.totalorder %s28, 9
      %p423 = pnand %p421, %p422
      %p424 = pneg %p423
      // Predicated region
      $region9: #{tpu_custom_call.1} parent=5 // pred_check
        _
      $region10: #{tpu_custom_call.1} parent=5 // pred_check_branch
        %426 = sbr.rel (%p423) target = $region12
      $region11: #{tpu_custom_call.1} parent=5 // pred_region
        %s427 = ssub.s32 %s28, 1
        // Predicated region
        $region13: #{tpu_custom_call.1} parent=11 // pred_check
          %p428 = pneg %p113
        $region14: #{tpu_custom_call.1} parent=11 // pred_check_branch
          %430 = sbr.rel (%p428) target = $region16
        $region15: #{tpu_custom_call.1} parent=11 // pred_region
          _
        $region16: #{tpu_custom_call.1} parent=11 // pred_fallthru
          _
        // Predicated region
        $region17: #{tpu_custom_call.1} parent=11 // pred_check
          %p431 = pneg %p134
        $region18: #{tpu_custom_call.1} parent=11 // pred_check_branch
          %433 = sbr.rel (%p431) target = $region20
        $region19: #{tpu_custom_call.1} parent=11 // pred_region
          _
        $region20: #{tpu_custom_call.1} parent=11 // pred_fallthru
          _
        // Predicated region
        $region21: #{tpu_custom_call.1} parent=11 // pred_check
          %p434 = pneg %p233
        $region22: #{tpu_custom_call.1} parent=11 // pred_check_branch
          %436 = sbr.rel (%p434) target = $region24
        $region23: #{tpu_custom_call.1} parent=11 // pred_region
          _
        $region24: #{tpu_custom_call.1} parent=11 // pred_fallthru
          _
        // Predicated region
        $region25: #{tpu_custom_call.1} parent=11 // pred_check
          %p437 = pneg %p254
        $region26: #{tpu_custom_call.1} parent=11 // pred_check_branch
          %439 = sbr.rel (%p437) target = $region28
        $region27: #{tpu_custom_call.1} parent=11 // pred_region
          _
        $region28: #{tpu_custom_call.1} parent=11 // pred_fallthru
          _
        // Predicated region
        $region29: #{tpu_custom_call.1} parent=11 // pred_check
          %p440 = pneg %p275
        $region30: #{tpu_custom_call.1} parent=11 // pred_check_branch
          %442 = sbr.rel (%p440) target = $region32
        $region31: #{tpu_custom_call.1} parent=11 // pred_region
          _
        $region32: #{tpu_custom_call.1} parent=11 // pred_fallthru
          _
        // Predicated region
        $region33: #{tpu_custom_call.1} parent=11 // pred_check
          %p443 = pneg %p296
        $region34: #{tpu_custom_call.1} parent=11 // pred_check_branch
          %445 = sbr.rel (%p443) target = $region36
        $region35: #{tpu_custom_call.1} parent=11 // pred_region
          _
        $region36: #{tpu_custom_call.1} parent=11 // pred_fallthru
          _
        // Predicated region
        $region37: #{tpu_custom_call.1} parent=11 // pred_check
          %p446 = pneg %p317
        $region38: #{tpu_custom_call.1} parent=11 // pred_check_branch
          %448 = sbr.rel (%p446) target = $region40
        $region39: #{tpu_custom_call.1} parent=11 // pred_region
          _
        $region40: #{tpu_custom_call.1} parent=11 // pred_fallthru
          _
        // Predicated region
        $region41: #{tpu_custom_call.1} parent=11 // pred_check
          %p449 = pneg %p338
        $region42: #{tpu_custom_call.1} parent=11 // pred_check_branch
          %451 = sbr.rel (%p449) target = $region44
        $region43: #{tpu_custom_call.1} parent=11 // pred_region
          _
        $region44: #{tpu_custom_call.1} parent=11 // pred_fallthru
          _
        // Predicated region
        $region45: #{tpu_custom_call.1} parent=11 // pred_check
          %p452 = pneg %p359
        $region46: #{tpu_custom_call.1} parent=11 // pred_check_branch
          %454 = sbr.rel (%p452) target = $region48
        $region47: #{tpu_custom_call.1} parent=11 // pred_region
          _
        $region48: #{tpu_custom_call.1} parent=11 // pred_fallthru
          _
      $region12: #{tpu_custom_call.1} parent=5 // pred_fallthru
        _
      %p455 = scmp.lt.s32.totalorder %s28, 8
      // Predicated region
      $region49: #{tpu_custom_call.1} parent=5 // pred_check
        %p456 = pneg %p455
      $region50: #{tpu_custom_call.1} parent=5 // pred_check_branch
        %458 = sbr.rel (%p456) target = $region52
      $region51: #{tpu_custom_call.1} parent=5 // pred_region
        // Predicated region
        $region53: #{tpu_custom_call.1} parent=51 // pred_check
          %p459 = pneg %p60
        $region54: #{tpu_custom_call.1} parent=51 // pred_check_branch
          %461 = sbr.rel (%p459) target = $region56
        $region55: #{tpu_custom_call.1} parent=51 // pred_region
          %p462 = scmp.lt.s32.totalorder %s35, 1
          %s463 = scalar_select %p462, %s35, 1
          %s464 = smul.addr %s463, 8
          %s465 = scalar_lea.vmem %s0, %s464
        $region56: #{tpu_custom_call.1} parent=51 // pred_fallthru
          _
        // Predicated region
        $region57: #{tpu_custom_call.1} parent=51 // pred_check
          %p466 = pneg %p86
        $region58: #{tpu_custom_call.1} parent=51 // pred_check_branch
          %468 = sbr.rel (%p466) target = $region60
        $region59: #{tpu_custom_call.1} parent=51 // pred_region
          %p469 = scmp.lt.s32.totalorder %s35, 1
          %s470 = scalar_select %p469, %s35, 1
          %s471 = scalar_lea.vmem %s1, %s470
        $region60: #{tpu_custom_call.1} parent=51 // pred_fallthru
          _
        // Predicated region
        $region61: #{tpu_custom_call.1} parent=51 // pred_check
          %p472 = pneg %p154
        $region62: #{tpu_custom_call.1} parent=51 // pred_check_branch
          %474 = sbr.rel (%p472) target = $region64
        $region63: #{tpu_custom_call.1} parent=51 // pred_region
          %p475 = scmp.lt.s32.totalorder %s36, 3
          %s476 = scalar_select %p475, %s36, 3
          %s477 = smul.addr %s476, 4
          %s478 = smul.addr %s477, 4
          %s479 = scalar_lea.vmem %s4, %s478
        $region64: #{tpu_custom_call.1} parent=51 // pred_fallthru
          _
        // Predicated region
        $region65: #{tpu_custom_call.1} parent=51 // pred_check
          %p480 = pneg %p180
        $region66: #{tpu_custom_call.1} parent=51 // pred_check_branch
          %482 = sbr.rel (%p480) target = $region68
        $region67: #{tpu_custom_call.1} parent=51 // pred_region
          %p483 = scmp.lt.s32.totalorder %s36, 3
          %s484 = scalar_select %p483, %s36, 3
          %s485 = scalar_lea.vmem %s5, %s484
        $region68: #{tpu_custom_call.1} parent=51 // pred_fallthru
          _
        // Predicated region
        $region69: #{tpu_custom_call.1} parent=51 // pred_check
          %p486 = pneg %p206
        $region70: #{tpu_custom_call.1} parent=51 // pred_check_branch
          %488 = sbr.rel (%p486) target = $region72
        $region71: #{tpu_custom_call.1} parent=51 // pred_region
          %p489 = scmp.lt.s32.totalorder %s36, 3
          %s490 = scalar_select %p489, %s36, 3
          %s491 = smul.addr %s490, 4
          %s492 = scalar_lea.vmem %s6, %s491
        $region72: #{tpu_custom_call.1} parent=51 // pred_fallthru
          _
      $region52: #{tpu_custom_call.1} parent=5 // pred_fallthru
        _
      %p493 = scmp.le.s32.totalorder 1, %s28
      %p494 = scmp.lt.s32.totalorder %s28, 9
      %p495 = pnand %p493, %p494
      %p496 = pneg %p495
      // Predicated region
      $region73: #{tpu_custom_call.1} parent=5 // pred_check
        _
      $region74: #{tpu_custom_call.1} parent=5 // pred_check_branch
        %498 = sbr.rel (%p495) target = $region76
      $region75: #{tpu_custom_call.1} parent=5 // pred_region
        %s499 = ssub.s32 %s28, 1
        %p500 = scmp.lt.s32.totalorder %s37, 1
        %s501 = scalar_select %p500, %s37, 1
        %s502 = smul.addr %s501, 8
        %s503 = scalar_lea.vmem %s0, %s502
        %p504 = pneg %p66
        %p505 = pneg %p63
        %p506 = scmp.lt.s32.totalorder %s37, 1
        %s507 = scalar_select %p506, %s37, 1
        %s508 = scalar_lea.vmem %s1, %s507
        %p509 = pneg %p92
        %p510 = pneg %p89
        %p511 = pneg %p113
        %p512 = pneg %p110
        %p513 = pneg %p134
        %p514 = pneg %p131
        %p515 = scmp.lt.s32.totalorder %s38, 3
        %s516 = scalar_select %p515, %s38, 3
        %s517 = smul.addr %s516, 4
        %s518 = smul.addr %s517, 4
        %s519 = scalar_lea.vmem %s4, %s518
        %p520 = pneg %p160
        %p521 = pneg %p157
        %p522 = scmp.lt.s32.totalorder %s38, 3
        %s523 = scalar_select %p522, %s38, 3
        %s524 = scalar_lea.vmem %s5, %s523
        %p525 = pneg %p186
        %p526 = pneg %p183
        %p527 = scmp.lt.s32.totalorder %s38, 3
        %s528 = scalar_select %p527, %s38, 3
        %s529 = smul.addr %s528, 4
        %s530 = scalar_lea.vmem %s6, %s529
        %p531 = pneg %p212
        %p532 = pneg %p209
        %p533 = pneg %p233
        %p534 = pneg %p230
        %p535 = pneg %p254
        %p536 = pneg %p251
        %p537 = pneg %p275
        %p538 = pneg %p272
        %p539 = pneg %p296
        %p540 = pneg %p293
        %p541 = pneg %p317
        %p542 = pneg %p314
        %p543 = pneg %p338
        %p544 = pneg %p335
        %p545 = pneg %p359
        %p546 = pneg %p356
        %p547 = pneg %p385
        %p548 = pneg %p382
        %s549 = sand.u32 %s372, 1
        %s550 = scalar_lea.sflag [#allocation5], %s549
        %s551 = sand.u32 %s372, 1
        %s552 = smul.addr %s551, 8
        %s553 = scalar_lea.vmem [#allocation4], %s552
        %p554 = pneg %p413
        %p555 = pneg %p410
        %s556 = sand.u32 %s400, 1
        %s557 = scalar_lea.sflag [#allocation7], %s556
        %s558 = sand.u32 %s400, 1
        %s559 = smul.addr %s558, 8
        %s560 = scalar_lea.vmem [#allocation6], %s559
        %p561 = scmp.lt.s32.totalorder %s37, 1
        %s562 = scalar_select %p561, %s37, 1
        %s563 = smul.addr %s562, 8
        %s564 = scalar_lea.vmem %s0, %s563
        %p565 = scmp.lt.s32.totalorder %s37, 1
        %s566 = scalar_select %p565, %s37, 1
        %s567 = scalar_lea.vmem %s1, %s566
        %p568 = scmp.lt.s32.totalorder %s38, 3
        %s569 = scalar_select %p568, %s38, 3
        %s570 = smul.addr %s569, 4
        %s571 = smul.addr %s570, 4
        %s572 = scalar_lea.vmem %s4, %s571
        %p573 = scmp.lt.s32.totalorder %s38, 3
        %s574 = scalar_select %p573, %s38, 3
        %s575 = scalar_lea.vmem %s5, %s574
        %p576 = scmp.lt.s32.totalorder %s38, 3
        %s577 = scalar_select %p576, %s38, 3
        %s578 = smul.addr %s577, 4
        %s579 = scalar_lea.vmem %s6, %s578
        %p581 = scmp.eq.s32.totalorder %s38, 0
        // Predicated region
        $region77: #{tpu_custom_call.1} parent=75 // pred_check
          %p582 = pneg %p581
        $region78: #{tpu_custom_call.1} parent=75 // pred_check_branch
          %584 = sbr.rel (%p582) target = $region80
        $region79: #{tpu_custom_call.1} parent=75 // pred_region
          %v585 = vld [vmem:[%s564] sm:$0xff]
          %v586 = vld [vmem:[%s2] sm:$0x1]
          %v587 = vld [vmem:[%s3] sm:$0x1]
          %vm588 = vcmask 261120
          %v589 = vsel %vm588, %v585, 0.0
          %590 = vadd.xlane.f32.xlu0 %v589
          %v591 = vpop.xlane.xlu0 %590
          %v592 = vrcp.pop 32.0
          %v593 = vmul.f32 %v591, %v592
          %v594 = vsub.f32 %v585, %v593
          %v595 = vmul.f32 %v594, %v594
          %v596 = vsel %vm588, %v595, 0.0
          %597 = vadd.xlane.f32.xlu0 %v596
          %v598 = vpop.xlane.xlu0 %597
          %v599 = vmul.f32 %v598, %v592
          %v600 = vadd.f32 %v599, 1e-05
          %v601 = vrsqrt.pop %v600
          %v602 = vmul.f32 %v594, %v601
          %v604 = vlaneseq
          %v605 = vshrl.u32 %v604, 7
          %v606 = vsub.s32 0, %v605
          %v607 = vrot.slane %v586, %v606
          %v609 = vmul.f32 %v602, %v607
          %v611 = vlaneseq
          %v612 = vshrl.u32 %v611, 7
          %v613 = vsub.s32 0, %v612
          %v614 = vrot.slane %v587, %v613
          %v616 = vadd.f32 %v609, %v614
          %v617 = vpack.c.bf16 %v616, %v616
          %vm618 = vcmask 257024
          %619 = vst.msk [vmem:[#allocation2] sm:$0xf] %vm618, %v617
          %v620 = vld [vmem:[%s7] sm:$0x1]
          %v622 = vlaneseq
          %v623 = vshrl.u32 %v622, 7
          %v624 = vsub.s32 0, %v623
          %v625 = vrot.slane %v620, %v624
          %v627 = vadd.f32 %v585, %v625
          %628 = vst.msk [vmem:[#allocation3] sm:$0xff] %vm588, %v627
        $region80: #{tpu_custom_call.1} parent=75 // pred_fallthru
          _
        %v629 = vld [vmem:[#allocation2] sm:$0xf]
        %v630 = vld [vmem:[%s572] sm:$0xf]
        %v631 = vld [vmem:[%s572 + $0x4] sm:$0xf]
        %v632 = vld [vmem:[%s572 + $0x8] sm:$0xf]
        %v633 = vld [vmem:[%s572 + $0xc] sm:$0xf]
        %v634 = vld [vmem:[%s575] sm:$0x1]
        %v636 = vlaneseq
        %v637 = vshrl.u32 %v636, 7
        %v638 = vsub.s32 0, %v637
        %v639 = vrot.slane %v634, %v638
        %v645 = vunpack.c.l.b16 %v630
        %v646 = vunpack.c.l.b16 %v631
        %v647 = vunpack.c.l.b16 %v632
        %v648 = vunpack.c.l.b16 %v633
        %v649 = vpack.c.b16 %v646, %v645
        %v650 = vpack.c.b16 %v648, %v647
        %vm653 = vcmask 261120
        %v655 = vsel %vm653, %v629, 0
        %657 = vmatprep.subr.bf16.mxu0 0
        %658 = vmatpush1.bf16.msra.mxu0 %v649
        %659 = vmatprep.subr.bf16.mxu0 0
        %660 = vmatpush1.bf16.msra.mxu0 %v650
        %661 = vmatprep.subr.bf16.mxu0 0
        %662 = vmatpush1.bf16.msra.mxu0 0
        %663 = vmatprep.subr.bf16.mxu0 0
        %664 = vmatpush1.bf16.msra.mxu0 0
        %665 = vmatprep.subr.bf16.mxu0 0
        %666 = vmatpush1.bf16.msra.mxu0 0
        %667 = vmatprep.subr.bf16.mxu0 0
        %668 = vmatpush1.bf16.msra.mxu0 0
        %669 = vmatprep.subr.bf16.mxu0 0
        %670 = vmatpush1.bf16.msra.mxu0 0
        %671 = vmatprep.subr.bf16.mxu0 0
        %672 = vmatpush1.bf16.msra.mxu0 0
        %673 = vmatprep.subr.bf16.mxu0 0
        %674 = vmatpush1.bf16.msra.mxu0 0
        %675 = vmatprep.subr.bf16.mxu0 0
        %676 = vmatpush1.bf16.msra.mxu0 0
        %677 = vmatprep.subr.bf16.mxu0 0
        %678 = vmatpush1.bf16.msra.mxu0 0
        %679 = vmatprep.subr.bf16.mxu0 0
        %680 = vmatpush1.bf16.msra.mxu0 0
        %681 = vmatprep.subr.bf16.mxu0 0
        %682 = vmatpush1.bf16.msra.mxu0 0
        %683 = vmatprep.subr.bf16.mxu0 0
        %684 = vmatpush1.bf16.msra.mxu0 0
        %685 = vmatprep.subr.bf16.mxu0 0
        %686 = vmatpush1.bf16.msra.mxu0 0
        %687 = vmatprep.subr.bf16.mxu0 0
        %688 = vmatpush1.bf16.msra.mxu0 0
        %689 = vmatprep.mubr.bf16.mxu0 0
        %690 = vmatmul.mubr.bf16.gmra.mrb[0].mxu0 %v655
        %v691 = vpop.f32.mrb[0].mxu0
        %v692 = vadd.f32 %v639, %v691
        %v693 = vpop.f32.mrb[0].mxu0
        %v694 = vpop.f32.mrb[0].mxu0
        %v695 = vpop.f32.mrb[0].mxu0
        %696 = vdwg.mxu0
        %v697 = vpack.c.bf16 %v692, %v692
        %v698 = vld [vmem:[%s567] sm:$0x1]
        %vm699 = vcmp.gt.f32.partialorder %v698, 0.5
        %v700 = vlaneseq
        %v701 = vshrl.u32 %v700, 7
        %v702 = vlaneseq
        %v703 = vand.u32 %v702, 127
        %vm704 = vcmp.le.s32.totalorder %v703, %v701
        %v705 = vsel %vm699, 1, 0
        %v706 = vlaneseq
        %v707 = vshrl.u32 %v706, 7
        %v708 = vsub.s32 0, %v707
        %v709 = vrot.slane %v705, %v708
        %vm710 = vcmp.eq.s32.totalorder %v709, 1
        %vm711 = vmand %vm704, %vm710
        %v712 = vsel %vm711, 0.0, -65504.0
        %714 = vrot.lane.b32.xlu0 %v697, 120
        %v715 = vpop.permute.xlu0 %714
        %vm716 = vcmask 64512
        %v718 = vsel %vm716, %v697, 0
        %v721 = vsel %vm716, %v715, 0
        %723 = vmatprep.subr.bf16.mxu0 0
        %724 = vmatpush1.bf16.xpose.msra.mxu0 %v721
        %725 = vmatprep.subr.bf16.mxu0 0
        %726 = vmatpush1.bf16.xpose.msra.mxu0 0
        %727 = vmatprep.subr.bf16.mxu0 0
        %728 = vmatpush1.bf16.xpose.msra.mxu0 0
        %729 = vmatprep.subr.bf16.mxu0 0
        %730 = vmatpush1.bf16.xpose.msra.mxu0 0
        %731 = vmatprep.subr.bf16.mxu0 0
        %732 = vmatpush1.bf16.xpose.msra.mxu0 0
        %733 = vmatprep.subr.bf16.mxu0 0
        %734 = vmatpush1.bf16.xpose.msra.mxu0 0
        %735 = vmatprep.subr.bf16.mxu0 0
        %736 = vmatpush1.bf16.xpose.msra.mxu0 0
        %737 = vmatprep.subr.bf16.mxu0 0
        %738 = vmatpush1.bf16.xpose.msra.mxu0 0
        %739 = vmatprep.subr.bf16.mxu0 0
        %740 = vmatpush1.bf16.xpose.msra.mxu0 0
        %741 = vmatprep.subr.bf16.mxu0 0
        %742 = vmatpush1.bf16.xpose.msra.mxu0 0
        %743 = vmatprep.subr.bf16.mxu0 0
        %744 = vmatpush1.bf16.xpose.msra.mxu0 0
        %745 = vmatprep.subr.bf16.mxu0 0
        %746 = vmatpush1.bf16.xpose.msra.mxu0 0
        %747 = vmatprep.subr.bf16.mxu0 0
        %748 = vmatpush1.bf16.xpose.msra.mxu0 0
        %749 = vmatprep.subr.bf16.mxu0 0
        %750 = vmatpush1.bf16.xpose.msra.mxu0 0
        %751 = vmatprep.subr.bf16.mxu0 0
        %752 = vmatpush1.bf16.xpose.msra.mxu0 0
        %753 = vmatprep.subr.bf16.mxu0 0
        %754 = vmatpush1.bf16.xpose.msra.mxu0 0
        %755 = vmatprep.mubr.bf16.mxu0 0
        %756 = vmatmul.mubr.bf16.gmra.mrb[0].mxu0 %v718
        %v757 = vpop.f32.mrb[0].mxu0
        %v758 = vadd.f32 %v712, %v757
        %v759 = vpop.f32.mrb[0].mxu0
        %v760 = vpop.f32.mrb[0].mxu0
        %v761 = vpop.f32.mrb[0].mxu0
        %762 = vdwg.mxu0
        %v763 = vsel %vm716, %v758, -inf
        %764 = vmax.xlane.f32.xlu0 %v763
        %v765 = vpop.xlane.xlu0 %764
        %v766 = vsub.f32 %v758, %v765
        %v767 = vmul.f32 %v766, 1.442695
        %v768 = vpow.pop %v767
        %v769 = vsel %vm716, %v768, 0.0
        %770 = vadd.xlane.f32.xlu0 %v769
        %v771 = vpop.xlane.xlu0 %770
        %v772 = vrcp.pop %v771
        %v773 = vmul.f32 %v768, %v772
        %774 = vst.msk [vmem:[%s560] sm:$0xff] %vm716, %v773
        %v775 = vpack.c.bf16 %v773, %v773
        %776 = vrot.lane.b32.xlu0 %v697, 112
        %v777 = vpop.permute.xlu0 %776
        %v779 = vsel %vm716, %v775, 0
        %vm781 = vcmask 1043456
        %v783 = vsel %vm781, %v777, 0
        %785 = vmatprep.subr.bf16.mxu0 0
        %786 = vmatpush1.bf16.msra.mxu0 %v783
        %787 = vmatprep.subr.bf16.mxu0 0
        %788 = vmatpush1.bf16.msra.mxu0 0
        %789 = vmatprep.subr.bf16.mxu0 0
        %790 = vmatpush1.bf16.msra.mxu0 0
        %791 = vmatprep.subr.bf16.mxu0 0
        %792 = vmatpush1.bf16.msra.mxu0 0
        %793 = vmatprep.subr.bf16.mxu0 0
        %794 = vmatpush1.bf16.msra.mxu0 0
        %795 = vmatprep.subr.bf16.mxu0 0
        %796 = vmatpush1.bf16.msra.mxu0 0
        %797 = vmatprep.subr.bf16.mxu0 0
        %798 = vmatpush1.bf16.msra.mxu0 0
        %799 = vmatprep.subr.bf16.mxu0 0
        %800 = vmatpush1.bf16.msra.mxu0 0
        %801 = vmatprep.subr.bf16.mxu0 0
        %802 = vmatpush1.bf16.msra.mxu0 0
        %803 = vmatprep.subr.bf16.mxu0 0
        %804 = vmatpush1.bf16.msra.mxu0 0
        %805 = vmatprep.subr.bf16.mxu0 0
        %806 = vmatpush1.bf16.msra.mxu0 0
        %807 = vmatprep.subr.bf16.mxu0 0
        %808 = vmatpush1.bf16.msra.mxu0 0
        %809 = vmatprep.subr.bf16.mxu0 0
        %810 = vmatpush1.bf16.msra.mxu0 0
        %811 = vmatprep.subr.bf16.mxu0 0
        %812 = vmatpush1.bf16.msra.mxu0 0
        %813 = vmatprep.subr.bf16.mxu0 0
        %814 = vmatpush1.bf16.msra.mxu0 0
        %815 = vmatprep.subr.bf16.mxu0 0
        %816 = vmatpush1.bf16.msra.mxu0 0
        %817 = vmatprep.mubr.bf16.mxu0 0
        %818 = vmatmul.mubr.bf16.gmra.mrb[0].mxu0 %v779
        %v819 = vpop.f32.mrb[0].mxu0
        %v820 = vadd.f32 0.0, %v819
        %v821 = vpop.f32.mrb[0].mxu0
        %v822 = vpop.f32.mrb[0].mxu0
        %v823 = vpop.f32.mrb[0].mxu0
        %824 = vdwg.mxu0
        %v825 = vld [vmem:[#allocation3] sm:$0xff]
        %v826 = vpack.c.bf16 %v820, %v820
        %v827 = vld [vmem:[%s579] sm:$0xf]
        %v829 = vsel %vm716, %v826, 0
        %v832 = vsel %vm781, %v827, 0
        %834 = vmatprep.subr.bf16.mxu0 0
        %835 = vmatpush1.bf16.msra.mxu0 %v832
        %836 = vmatprep.subr.bf16.mxu0 0
        %837 = vmatpush1.bf16.msra.mxu0 0
        %838 = vmatprep.subr.bf16.mxu0 0
        %839 = vmatpush1.bf16.msra.mxu0 0
        %840 = vmatprep.subr.bf16.mxu0 0
        %841 = vmatpush1.bf16.msra.mxu0 0
        %842 = vmatprep.subr.bf16.mxu0 0
        %843 = vmatpush1.bf16.msra.mxu0 0
        %844 = vmatprep.subr.bf16.mxu0 0
        %845 = vmatpush1.bf16.msra.mxu0 0
        %846 = vmatprep.subr.bf16.mxu0 0
        %847 = vmatpush1.bf16.msra.mxu0 0
        %848 = vmatprep.subr.bf16.mxu0 0
        %849 = vmatpush1.bf16.msra.mxu0 0
        %850 = vmatprep.subr.bf16.mxu0 0
        %851 = vmatpush1.bf16.msra.mxu0 0
        %852 = vmatprep.subr.bf16.mxu0 0
        %853 = vmatpush1.bf16.msra.mxu0 0
        %854 = vmatprep.subr.bf16.mxu0 0
        %855 = vmatpush1.bf16.msra.mxu0 0
        %856 = vmatprep.subr.bf16.mxu0 0
        %857 = vmatpush1.bf16.msra.mxu0 0
        %858 = vmatprep.subr.bf16.mxu0 0
        %859 = vmatpush1.bf16.msra.mxu0 0
        %860 = vmatprep.subr.bf16.mxu0 0
        %861 = vmatpush1.bf16.msra.mxu0 0
        %862 = vmatprep.subr.bf16.mxu0 0
        %863 = vmatpush1.bf16.msra.mxu0 0
        %864 = vmatprep.subr.bf16.mxu0 0
        %865 = vmatpush1.bf16.msra.mxu0 0
        %866 = vmatprep.mubr.bf16.mxu0 0
        %867 = vmatmul.mubr.bf16.gmra.mrb[0].mxu0 %v829
        %v868 = vpop.f32.mrb[0].mxu0
        %v869 = vadd.f32 0.0, %v868
        %v870 = vpop.f32.mrb[0].mxu0
        %v871 = vpop.f32.mrb[0].mxu0
        %v872 = vpop.f32.mrb[0].mxu0
        %873 = vdwg.mxu0
        %v874 = vadd.f32 %v825, %v869
        %875 = vst.msk [vmem:[#allocation3] sm:$0xff] %vm653, %v874
        %p876 = scmp.eq.s32.totalorder %s38, 3
        // Predicated region
        $region81: #{tpu_custom_call.1} parent=75 // pred_check
          %p877 = pneg %p876
        $region82: #{tpu_custom_call.1} parent=75 // pred_check_branch
          %879 = sbr.rel (%p877) target = $region84
        $region83: #{tpu_custom_call.1} parent=75 // pred_region
          %v880 = vld [vmem:[#allocation3] sm:$0xff]
          %v881 = vld [vmem:[%s8] sm:$0x1]
          %v882 = vld [vmem:[%s9] sm:$0x1]
          %v883 = vsel %vm653, %v880, 0.0
          %884 = vadd.xlane.f32.xlu0 %v883
          %v885 = vpop.xlane.xlu0 %884
          %v886 = vrcp.pop 32.0
          %v887 = vmul.f32 %v885, %v886
          %v888 = vsub.f32 %v880, %v887
          %v889 = vmul.f32 %v888, %v888
          %v890 = vsel %vm653, %v889, 0.0
          %891 = vadd.xlane.f32.xlu0 %v890
          %v892 = vpop.xlane.xlu0 %891
          %v893 = vmul.f32 %v892, %v886
          %v894 = vadd.f32 %v893, 1e-05
          %v895 = vrsqrt.pop %v894
          %v896 = vmul.f32 %v888, %v895
          %v898 = vlaneseq
          %v899 = vshrl.u32 %v898, 7
          %v900 = vsub.s32 0, %v899
          %v901 = vrot.slane %v881, %v900
          %v903 = vmul.f32 %v896, %v901
          %v905 = vlaneseq
          %v906 = vshrl.u32 %v905, 7
          %v907 = vsub.s32 0, %v906
          %v908 = vrot.slane %v882, %v907
          %v910 = vadd.f32 %v903, %v908
          %v911 = vpack.c.bf16 %v910, %v910
          %v912 = vld [vmem:[%s10] sm:$0xf]
          %v913 = vld [vmem:[%s10 + $0x4] sm:$0xf]
          %v914 = vld [vmem:[%s10 + $0x8] sm:$0xf]
          %v915 = vld [vmem:[%s10 + $0xc] sm:$0xf]
          %v916 = vld [vmem:[%s11] sm:$0x1]
          %v918 = vlaneseq
          %v919 = vshrl.u32 %v918, 7
          %v920 = vsub.s32 0, %v919
          %v921 = vrot.slane %v916, %v920
          %v927 = vunpack.c.l.b16 %v912
          %v928 = vunpack.c.l.b16 %v913
          %v929 = vunpack.c.l.b16 %v914
          %v930 = vunpack.c.l.b16 %v915
          %v931 = vpack.c.b16 %v928, %v927
          %v932 = vpack.c.b16 %v930, %v929
          %v936 = vsel %vm653, %v911, 0
          %938 = vmatprep.subr.bf16.mxu0 0
          %939 = vmatpush1.bf16.msra.mxu0 %v931
          %940 = vmatprep.subr.bf16.mxu0 0
          %941 = vmatpush1.bf16.msra.mxu0 %v932
          %942 = vmatprep.subr.bf16.mxu0 0
          %943 = vmatpush1.bf16.msra.mxu0 0
          %944 = vmatprep.subr.bf16.mxu0 0
          %945 = vmatpush1.bf16.msra.mxu0 0
          %946 = vmatprep.subr.bf16.mxu0 0
          %947 = vmatpush1.bf16.msra.mxu0 0
          %948 = vmatprep.subr.bf16.mxu0 0
          %949 = vmatpush1.bf16.msra.mxu0 0
          %950 = vmatprep.subr.bf16.mxu0 0
          %951 = vmatpush1.bf16.msra.mxu0 0
          %952 = vmatprep.subr.bf16.mxu0 0
          %953 = vmatpush1.bf16.msra.mxu0 0
          %954 = vmatprep.subr.bf16.mxu0 0
          %955 = vmatpush1.bf16.msra.mxu0 0
          %956 = vmatprep.subr.bf16.mxu0 0
          %957 = vmatpush1.bf16.msra.mxu0 0
          %958 = vmatprep.subr.bf16.mxu0 0
          %959 = vmatpush1.bf16.msra.mxu0 0
          %960 = vmatprep.subr.bf16.mxu0 0
          %961 = vmatpush1.bf16.msra.mxu0 0
          %962 = vmatprep.subr.bf16.mxu0 0
          %963 = vmatpush1.bf16.msra.mxu0 0
          %964 = vmatprep.subr.bf16.mxu0 0
          %965 = vmatpush1.bf16.msra.mxu0 0
          %966 = vmatprep.subr.bf16.mxu0 0
          %967 = vmatpush1.bf16.msra.mxu0 0
          %968 = vmatprep.subr.bf16.mxu0 0
          %969 = vmatpush1.bf16.msra.mxu0 0
          %970 = vmatprep.mubr.bf16.mxu0 0
          %971 = vmatmul.mubr.bf16.gmra.mrb[0].mxu0 %v936
          %v972 = vpop.f32.mrb[0].mxu0
          %v973 = vadd.f32 %v921, %v972
          %v974 = vpop.f32.mrb[0].mxu0
          %v975 = vpop.f32.mrb[0].mxu0
          %v976 = vpop.f32.mrb[0].mxu0
          %977 = vdwg.mxu0
          %v978 = vmul.f32 %v973, 0.5
          %v979 = vmul.f32 %v973, 0.044715
          %v980 = vmul.f32 %v979, %v973
          %v981 = vmul.f32 %v980, %v973
          %v982 = vadd.f32 %v973, %v981
          %v983 = vmul.f32 %v982, 0.7978846
          %v984 = vtanh.pop %v983
          %v985 = vadd.f32 %v984, 1.0
          %v986 = vmul.f32 %v978, %v985
          %v987 = vpack.c.bf16 %v986, %v986
          %v988 = vld [vmem:[%s12] sm:$0xf]
          %v989 = vld [vmem:[%s12 + $0x4] sm:$0xf]
          %v990 = vld [vmem:[%s12 + $0x8] sm:$0xf]
          %v991 = vld [vmem:[%s12 + $0xc] sm:$0xf]
          %v992 = vld [vmem:[%s12 + $0x10] sm:$0xf]
          %v993 = vld [vmem:[%s12 + $0x14] sm:$0xf]
          %v994 = vld [vmem:[%s12 + $0x18] sm:$0xf]
          %v995 = vld [vmem:[%s12 + $0x1c] sm:$0xf]
          %v996 = vld [vmem:[%s12 + $0x20] sm:$0xf]
          %v997 = vld [vmem:[%s12 + $0x24] sm:$0xf]
          %v998 = vld [vmem:[%s12 + $0x28] sm:$0xf]
          %v999 = vld [vmem:[%s12 + $0x2c] sm:$0xf]
          %v1000 = vld [vmem:[%s12 + $0x30] sm:$0xf]
          %v1001 = vld [vmem:[%s12 + $0x34] sm:$0xf]
          %v1002 = vld [vmem:[%s12 + $0x38] sm:$0xf]
          %v1003 = vld [vmem:[%s12 + $0x3c] sm:$0xf]
          %v1004 = vld [vmem:[%s13] sm:$0x1]
          %v1006 = vlaneseq
          %v1007 = vshrl.u32 %v1006, 7
          %v1008 = vsub.s32 0, %v1007
          %v1009 = vrot.slane %v1004, %v1008
          %v1027 = vunpack.c.l.b16 %v988
          %v1028 = vunpack.c.l.b16 %v989
          %v1029 = vunpack.c.l.b16 %v990
          %v1030 = vunpack.c.l.b16 %v991
          %v1031 = vunpack.c.l.b16 %v992
          %v1032 = vunpack.c.l.b16 %v993
          %v1033 = vunpack.c.l.b16 %v994
          %v1034 = vunpack.c.l.b16 %v995
          %v1035 = vunpack.c.l.b16 %v996
          %v1036 = vunpack.c.l.b16 %v997
          %v1037 = vunpack.c.l.b16 %v998
          %v1038 = vunpack.c.l.b16 %v999
          %v1039 = vunpack.c.l.b16 %v1000
          %v1040 = vunpack.c.l.b16 %v1001
          %v1041 = vunpack.c.l.b16 %v1002
          %v1042 = vunpack.c.l.b16 %v1003
          %v1043 = vpack.c.b16 %v1028, %v1027
          %v1044 = vpack.c.b16 %v1030, %v1029
          %v1045 = vpack.c.b16 %v1032, %v1031
          %v1046 = vpack.c.b16 %v1034, %v1033
          %v1047 = vpack.c.b16 %v1036, %v1035
          %v1048 = vpack.c.b16 %v1038, %v1037
          %v1049 = vpack.c.b16 %v1040, %v1039
          %v1050 = vpack.c.b16 %v1042, %v1041
          %1059 = vmatprep.subr.bf16.mxu0 0
          %1060 = vmatpush1.bf16.msra.mxu0 %v1043
          %1061 = vmatprep.subr.bf16.mxu0 0
          %1062 = vmatpush1.bf16.msra.mxu0 %v1044
          %1063 = vmatprep.subr.bf16.mxu0 0
          %1064 = vmatpush1.bf16.msra.mxu0 %v1045
          %1065 = vmatprep.subr.bf16.mxu0 0
          %1066 = vmatpush1.bf16.msra.mxu0 %v1046
          %1067 = vmatprep.subr.bf16.mxu0 0
          %1068 = vmatpush1.bf16.msra.mxu0 %v1047
          %1069 = vmatprep.subr.bf16.mxu0 0
          %1070 = vmatpush1.bf16.msra.mxu0 %v1048
          %1071 = vmatprep.subr.bf16.mxu0 0
          %1072 = vmatpush1.bf16.msra.mxu0 %v1049
          %1073 = vmatprep.subr.bf16.mxu0 0
          %1074 = vmatpush1.bf16.msra.mxu0 %v1050
          %1075 = vmatprep.subr.bf16.mxu0 0
          %1076 = vmatpush1.bf16.msra.mxu0 0
          %1077 = vmatprep.subr.bf16.mxu0 0
          %1078 = vmatpush1.bf16.msra.mxu0 0
          %1079 = vmatprep.subr.bf16.mxu0 0
          %1080 = vmatpush1.bf16.msra.mxu0 0
          %1081 = vmatprep.subr.bf16.mxu0 0
          %1082 = vmatpush1.bf16.msra.mxu0 0
          %1083 = vmatprep.subr.bf16.mxu0 0
          %1084 = vmatpush1.bf16.msra.mxu0 0
          %1085 = vmatprep.subr.bf16.mxu0 0
          %1086 = vmatpush1.bf16.msra.mxu0 0
          %1087 = vmatprep.subr.bf16.mxu0 0
          %1088 = vmatpush1.bf16.msra.mxu0 0
          %1089 = vmatprep.subr.bf16.mxu0 0
          %1090 = vmatpush1.bf16.msra.mxu0 0
          %1091 = vmatprep.mubr.bf16.mxu0 0
          %1092 = vmatmul.mubr.bf16.gmra.mrb[0].mxu0 %v987
          %v1093 = vpop.f32.mrb[0].mxu0
          %v1094 = vadd.f32 %v1009, %v1093
          %v1095 = vpop.f32.mrb[0].mxu0
          %v1096 = vpop.f32.mrb[0].mxu0
          %v1097 = vpop.f32.mrb[0].mxu0
          %1098 = vdwg.mxu0
          %v1099 = vadd.f32 %v880, %v1094
          %1100 = vst.msk [vmem:[%s553] sm:$0xff] %vm653, %v1099
        $region84: #{tpu_custom_call.1} parent=75 // pred_fallthru
          _
        %s1101 = sand.u32 %s372, 1
        %s1102 = scalar_lea.sflag [#allocation5], %s1101
        %s1103 = sand.u32 %s372, 1
        %s1104 = smul.addr %s1103, 8
        %s1105 = scalar_lea.vmem [#allocation4], %s1104
        %s1106 = sand.u32 %s400, 1
        %s1107 = scalar_lea.sflag [#allocation7], %s1106
        %s1108 = sand.u32 %s400, 1
        %s1109 = smul.addr %s1108, 8
        %s1110 = scalar_lea.vmem [#allocation6], %s1109
        // Predicated region
        $region85: #{tpu_custom_call.1} parent=75 // pred_check
          %p1111 = pneg %p382
        $region86: #{tpu_custom_call.1} parent=75 // pred_check_branch
          %1113 = sbr.rel (%p1111) target = $region88
        $region87: #{tpu_custom_call.1} parent=75 // pred_region
          %s1115 = ssub.s32 128, 128
          %1116 = vsyncadd %s1102, %s1115
          %s1117 = smul.addr %s37, 128
          %s1118 = scalar_lea.hbm %s14, %s1117
          %s1120 = sshll.u32 %s1105, 4
          %s1121 = int_to_ptr.vmem [resolvable:$true] %s1120
          %1123 = dma.vmem_to_hbm [thread:$0]  %s1121, 128, %s1118, %s1102
        $region88: #{tpu_custom_call.1} parent=75 // pred_fallthru
          _
        // Predicated region
        $region89: #{tpu_custom_call.1} parent=75 // pred_check
          %p1124 = pneg %p410
        $region90: #{tpu_custom_call.1} parent=75 // pred_check_branch
          %1126 = sbr.rel (%p1124) target = $region92
        $region91: #{tpu_custom_call.1} parent=75 // pred_region
          %s1128 = ssub.s32 128, 128
          %1129 = vsyncadd %s1107, %s1128
          %s1130 = smul.addr %s37, 4
          %s1131 = sadd.s32 %s38, %s1130
          %s1132 = smul.addr %s1131, 128
          %s1133 = scalar_lea.hbm %s15, %s1132
          %s1135 = sshll.u32 %s1110, 4
          %s1136 = int_to_ptr.vmem [resolvable:$true] %s1135
          %1138 = dma.vmem_to_hbm [thread:$0]  %s1136, 128, %s1133, %s1107
        $region92: #{tpu_custom_call.1} parent=75 // pred_fallthru
          _
      $region76: #{tpu_custom_call.1} parent=5 // pred_fallthru
        _
      %p1139 = scmp.le.s32.totalorder 2, %s28
      // Predicated region
      $region93: #{tpu_custom_call.1} parent=5 // pred_check
        %p1140 = pneg %p1139
      $region94: #{tpu_custom_call.1} parent=5 // pred_check_branch
        %1142 = sbr.rel (%p1140) target = $region96
      $region95: #{tpu_custom_call.1} parent=5 // pred_region
        %s1143 = ssub.s32 %s28, 2
        // Predicated region
        $region97: #{tpu_custom_call.1} parent=95 // pred_check
          %p1144 = pneg %p388
        $region98: #{tpu_custom_call.1} parent=95 // pred_check_branch
          %1146 = sbr.rel (%p1144) target = $region100
        $region99: #{tpu_custom_call.1} parent=95 // pred_region
          %s1147 = sand.u32 %s373, 1
          %s1148 = scalar_lea.sflag [#allocation5], %s1147
          %s1149 = sand.u32 %s373, 1
          %s1150 = smul.addr %s1149, 8
          %s1151 = scalar_lea.vmem [#allocation4], %s1150
          %1152 = dma.done %s1148, 128
        $region100: #{tpu_custom_call.1} parent=95 // pred_fallthru
          _
        // Predicated region
        $region101: #{tpu_custom_call.1} parent=95 // pred_check
          %p1153 = pneg %p416
        $region102: #{tpu_custom_call.1} parent=95 // pred_check_branch
          %1155 = sbr.rel (%p1153) target = $region104
        $region103: #{tpu_custom_call.1} parent=95 // pred_region
          %s1156 = sand.u32 %s401, 1
          %s1157 = scalar_lea.sflag [#allocation7], %s1156
          %s1158 = sand.u32 %s401, 1
          %s1159 = smul.addr %s1158, 8
          %s1160 = scalar_lea.vmem [#allocation6], %s1159
          %1161 = dma.done %s1157, 128
        $region104: #{tpu_custom_call.1} parent=95 // pred_fallthru
          _
      $region96: #{tpu_custom_call.1} parent=5 // pred_fallthru
        _
    $region6: #{tpu_custom_call.1} parent=1 // loop_footer
      %s32 = sadd.s32 1, %s28
    $region7: #{tpu_custom_call.1} parent=1 // loop_footer_branch
      %27 = sbr.rel target = $region3
    $region8: #{tpu_custom_call.1} parent=1 // loop_exit
      _
    %1162 = vsyncpa [#allocation5], 1
    %s1163 = scalar_lea.sflag [#allocation5], 1
    %1164 = vsyncpa %s1163, 1
    %1165 = vsyncpa [#allocation7], 1
    %s1166 = scalar_lea.sflag [#allocation7], 1
    %1167 = vsyncpa %s1166, 1

</llo_original>
